<compile_context>
chip_gen: v7x
topology: tpu7x:2x2x1
jax: 0.10.0
libtpu: 0.0.40
codegen_flags: <defaults>
</compile_context>

<pallas_src>
import numpy as np
import jax
import jax.numpy as jnp
from jax import lax
from jax.experimental import pallas as pl
from jax.experimental.pallas import tpu as pltpu


# ------------------------------ fused kernel --------------------------------

def _make_fused_fp_kernel(num_layers, use_bf16_matmul=False):
    """Kernel over one (batch, n_tile) grid step.

    refs = (unknown_T, known, skip_feats, known_feats,
            w0_interp, w0_skip, bias0,
            [w_l, bias_l] * (num_layers-1),
            out)
    """
    mm_dtype = jnp.bfloat16 if use_bf16_matmul else jnp.float32

    def _mm(a, b):
        return jnp.dot(a.astype(mm_dtype), b.astype(mm_dtype),
                       preferred_element_type=jnp.float32)

    def kernel(*refs):
        ut_ref, k_ref, uf_ref, kf_ref = refs[0], refs[1], refs[2], refs[3]
        out_ref = refs[-1]
        p = refs[4:-1]

        ut = ut_ref[0]                        # (3, tile_n)  lane-dense coord rows
        k = k_ref[0]                          # (m, 3)       coord columns
        m = k.shape[0]
        tile_n = ut.shape[1]

        # ---- squared-distance tile, oriented (m, tile_n); same op order as ref ----
        d = ((k[:, 0:1] - ut[0:1, :]) ** 2 +
             (k[:, 1:2] - ut[1:2, :]) ** 2 +
             (k[:, 2:3] - ut[2:3, :]) ** 2)

        # ---- fused 3-NN search; W accumulated in-loop (no masks kept alive) ----
        iota_m = lax.broadcasted_iota(jnp.int32, (m, tile_n), 0)
        BIG = jnp.float32(1e30)
        dw = d
        W = jnp.zeros((m, tile_n), jnp.float32)
        r_sum = jnp.zeros((1, tile_n), jnp.float32)
        for _ in range(3):
            dmin = jnp.min(dw, axis=0, keepdims=True)                  # (1, tile_n)
            imin = jnp.min(jnp.where(dw == dmin, iota_m, m),
                           axis=0, keepdims=True)                      # (1, tile_n)
            mask = iota_m == imin                                      # one-hot col
            r = 1.0 / (dmin + 1e-8)
            r_sum = r_sum + r
            W = W + jnp.where(mask, r, 0.0)
            dw = jnp.where(mask, BIG, dw)
        W = W * (1.0 / r_sum)                 # normalize: W[j, i] = weight_k(i) at j=idx_k(i)

        # ---- interpolation on the MXU: (C2, m) @ (m, tile_n) -> (C2, tile_n) ----
        interp = _mm(kf_ref[0], W)

        # ---- layer 0 with split weight (concat eliminated); BN scale pre-folded ----
        w0a, w0b, b0 = p[0], p[1], p[2]
        y = _mm(w0a[...], interp) + _mm(w0b[...], uf_ref[0])
        x = jnp.maximum(y + b0[...], 0.0)

        # ---- remaining Conv1x1(+folded BN) -> ReLU layers, all in VMEM ----
        off = 3
        for _ in range(1, num_layers):
            w, b = p[off], p[off + 1]
            off += 2
            x = jnp.maximum(_mm(w[...], x) + b[...], 0.0)

        out_ref[0] = x

    return kernel


# --------------------------------- wrapper -----------------------------------

def _pick_tile_n(n, m):
    """Largest lane-aligned point tile whose (m, tile_n) working set fits a
    conservative VMEM budget (sized for v7x's 64 MiB physical VMEM)."""
    budget = 6 * 1024 * 1024                  # bytes for the live (m, tile_n) arrays
    per_col = 4 * m * 4                       # ~4 live f32 (m, tile_n) arrays per column
    max_tile = max(128, (budget // per_col) // 128 * 128)
    n_up = ((n + 127) // 128) * 128
    return int(min(n_up, max_tile, 2048))


def pointnet_fp_forward(unknown, known, unknow_feats, known_feats, mlp_params,
                        *, tile_n=None, use_bf16_matmul=False):
    """mlp_params: list of (W (Cout,Cin), scale (Cout,1), bias (Cout,1)).

    unknown: (B, n, 3), known: (B, m, 3),
    unknow_feats: (B, C1, n) or None, known_feats: (B, C2, m).
    Returns (B, mlp[-1], n).
    """
    B, n, _ = unknown.shape
    m = known.shape[1]
    c2 = known_feats.shape[1]
    num_layers = len(mlp_params)

    if tile_n is None:
        tile_n = _pick_tile_n(n, m)

    # Fold eval-BN scale into conv weights host-side; split layer-0 weight.
    w0, s0, b0 = mlp_params[0]
    w0f = w0 * s0                              # (cout0, c2+c1) row-scaled
    cout0 = w0.shape[0]
    w0a = w0f[:, :c2]                          # applied to interpolated feats
    if unknow_feats is not None:
        uf = unknow_feats
        w0b = w0f[:, c2:]                      # applied to skip feats
    else:                                      # degenerate skip path (all zero)
        uf = jnp.zeros((B, 8, n), jnp.float32)
        w0b = jnp.zeros((cout0, 8), jnp.float32)
    c1 = uf.shape[1]

    # Pad the point axis up to a multiple of tile_n (padded cols sliced off).
    n_pad = ((n + tile_n - 1) // tile_n) * tile_n
    pad = n_pad - n
    if pad:
        unknown = jnp.pad(unknown, ((0, 0), (0, pad), (0, 0)))
        uf = jnp.pad(uf, ((0, 0), (0, 0), (0, pad)))

    # Pre-transpose unknown xyz once in XLA -> lane-dense (B, 3, n) inside kernel.
    unknown_t = jnp.transpose(unknown, (0, 2, 1))

    # Per-layer parameter arrays + VMEM-resident specs (constant index_maps).
    param_arrays = [w0a, w0b, b0]
    for (w, s, bi) in mlp_params[1:]:
        param_arrays.append(w * s)             # BN scale folded into weight
        param_arrays.append(bi)
    param_specs = [pl.BlockSpec(a.shape, lambda b, i: (0, 0)) for a in param_arrays]

    cout = mlp_params[-1][0].shape[0]
    grid = (B, n_pad // tile_n)

    out = pl.pallas_call(
        _make_fused_fp_kernel(num_layers, use_bf16_matmul),
        out_shape=jax.ShapeDtypeStruct((B, cout, n_pad), jnp.float32),
        grid=grid,
        in_specs=[
            pl.BlockSpec((1, 3, tile_n), lambda b, i: (b, 0, i)),   # unknown xyz^T tile
            pl.BlockSpec((1, m, 3),      lambda b, i: (b, 0, 0)),   # known xyz
            pl.BlockSpec((1, c1, tile_n), lambda b, i: (b, 0, i)),  # skip feats tile
            pl.BlockSpec((1, c2, m),     lambda b, i: (b, 0, 0)),   # known feats
        ] + param_specs,
        out_specs=pl.BlockSpec((1, cout, tile_n), lambda b, i: (b, 0, i)),
        compiler_params=pltpu.CompilerParams(
            dimension_semantics=("parallel", "parallel"),
            vmem_limit_bytes=32 * 1024 * 1024),
    )(unknown_t, known, uf, known_feats, *param_arrays)

    return out[:, :, :n]


# ------------------------- pure-JAX reference --------------------------------

def _reference_forward(unknown, known, unknow_feats, known_feats, mlp_params):
    hp = lax.Precision.HIGHEST
    d = jnp.sum((unknown[:, :, None, :] - known[:, None, :, :]) ** 2, axis=-1)
    neg_d, idx = lax.top_k(-d, 3)
    dist = -neg_d
    recip = 1.0 / (dist + 1e-8)
    weight = recip / jnp.sum(recip, axis=2, keepdims=True)            # (B, n, 3)
    onehot = jax.nn.one_hot(idx, known.shape[1], dtype=jnp.float32)   # (B, n, 3, m)
    Wmat = jnp.einsum('bnk,bnkm->bnm', weight, onehot, precision=hp)
    interp = jnp.einsum('bcm,bnm->bcn', known_feats, Wmat, precision=hp)
    x = (jnp.concatenate([interp, unknow_feats], axis=1)
         if unknow_feats is not None else interp)
    for (w, scale, bias) in mlp_params:
        y = jnp.einsum('oc,bcn->bon', w, x, precision=hp)
        y = y * scale[None, :, :] + bias[None, :, :]
        x = jnp.maximum(y, 0.0)
    return x


# --------------------------------- main --------------------------------------

if __name__ == "__main__":
    key = jax.random.PRNGKey(0)
    B, n, m = 2, 384, 128       # n unknown points (single 384-wide tile), m known
    C1, C2 = 4, 8               # skip-feature / known-feature channels
    mlp = [C1 + C2, 16, 8]      # shared MLP channel sizes

    ks = jax.random.split(key, 8)
    unknown = jax.random.uniform(ks[0], (B, n, 3), jnp.float32)
    known = jax.random.uniform(ks[1], (B, m, 3), jnp.float32)
    unknow_feats = jax.random.normal(ks[2], (B, C1, n), jnp.float32)
    known_feats = jax.random.normal(ks[3], (B, C2, m), jnp.float32)

    # Deterministic Conv2d(1x1, bias=False) weights + eval-mode BN folded.
    mlp_params = []
    wkeys = jax.random.split(ks[4], len(mlp) - 1)
    eps = 1e-5
    for k in range(len(mlp) - 1):
        cin, cout = mlp[k], mlp[k + 1]
        w = 0.1 * jax.random.normal(wkeys[k], (cout, cin), jnp.float32)
        gamma = 1.0 + 0.05 * jnp.arange(cout, dtype=jnp.float32)
        beta = 0.01 * jnp.arange(cout, dtype=jnp.float32)
        running_mean = jnp.zeros((cout,), jnp.float32)
        running_var = jnp.ones((cout,), jnp.float32)
        scale = gamma / jnp.sqrt(running_var + eps)
        bias = beta - running_mean * scale
        mlp_params.append((w, scale.reshape(cout, 1), bias.reshape(cout, 1)))

    out = pointnet_fp_forward(unknown, known, unknow_feats, known_feats, mlp_params)
    out = jax.block_until_ready(out)

    ref = _reference_forward(unknown, known, unknow_feats, known_feats, mlp_params)
    np.testing.assert_allclose(np.asarray(out), np.asarray(ref),
                               rtol=1e-4, atol=1e-4)
    assert out.shape == (B, mlp[-1], n)

    print("KERNEL_OK")
</pallas_src>

<mosaic_0001>
module attributes {stable_mosaic.version = 11 : i64} {
  func.func @kernel(%arg0: i32, %arg1: i32, %arg2: memref<1x3x384xf32, #tpu.memory_space<vmem>>, %arg3: memref<1x128x3xf32, #tpu.memory_space<vmem>>, %arg4: memref<1x4x384xf32, #tpu.memory_space<vmem>>, %arg5: memref<1x8x128xf32, #tpu.memory_space<vmem>>, %arg6: memref<16x8xf32, #tpu.memory_space<vmem>>, %arg7: memref<16x4xf32, #tpu.memory_space<vmem>>, %arg8: memref<16x1xf32, #tpu.memory_space<vmem>>, %arg9: memref<8x16xf32, #tpu.memory_space<vmem>>, %arg10: memref<8x1xf32, #tpu.memory_space<vmem>>, %arg11: memref<1x8x384xf32, #tpu.memory_space<vmem>>) attributes {dimension_semantics = [#tpu.dimension_semantics<parallel>, #tpu.dimension_semantics<parallel>], iteration_bounds = array<i64: 2, 1>, scalar_prefetch = 0 : i64, scratch_operands = 0 : i64, tpu.core_type = #tpu.core_type<tc>, window_params = [{transform_indices = @transform_0, window_bounds = array<i64: 1, 3, 384>}, {transform_indices = @transform_1, window_bounds = array<i64: 1, 128, 3>}, {transform_indices = @transform_2, window_bounds = array<i64: 1, 4, 384>}, {transform_indices = @transform_3, window_bounds = array<i64: 1, 8, 128>}, {pipeline_mode = #tpu.pipeline_mode<synchronous>, transform_indices = @transform_4, window_bounds = array<i64: 16, 8>}, {pipeline_mode = #tpu.pipeline_mode<synchronous>, transform_indices = @transform_5, window_bounds = array<i64: 16, 4>}, {pipeline_mode = #tpu.pipeline_mode<synchronous>, transform_indices = @transform_6, window_bounds = array<i64: 16, 1>}, {pipeline_mode = #tpu.pipeline_mode<synchronous>, transform_indices = @transform_7, window_bounds = array<i64: 8, 16>}, {pipeline_mode = #tpu.pipeline_mode<synchronous>, transform_indices = @transform_8, window_bounds = array<i64: 8, 1>}, {transform_indices = @transform_9, window_bounds = array<i64: 1, 8, 384>}]} {
    %c0 = arith.constant 0 : index
    %c0_0 = arith.constant 0 : index
    %c0_1 = arith.constant 0 : index
    %0 = vector.load %arg2[%c0, %c0_0, %c0_1] : memref<1x3x384xf32, #tpu.memory_space<vmem>>, vector<1x3x384xf32>
    %1 = vector.shape_cast %0 : vector<1x3x384xf32> to vector<3x384xf32>
    %c0_2 = arith.constant 0 : index
    %c0_3 = arith.constant 0 : index
    %c0_4 = arith.constant 0 : index
    %2 = vector.load %arg3[%c0_2, %c0_3, %c0_4] : memref<1x128x3xf32, #tpu.memory_space<vmem>>, vector<1x128x3xf32>
    %3 = vector.shape_cast %2 : vector<1x128x3xf32> to vector<128x3xf32>
    %4 = vector.extract_strided_slice %3 {offsets = [0, 0], sizes = [128, 1], strides = [1, 1]} : vector<128x3xf32> to vector<128x1xf32>
    %5 = vector.extract_strided_slice %1 {offsets = [0, 0], sizes = [1, 384], strides = [1, 1]} : vector<3x384xf32> to vector<1x384xf32>
    %6 = vector.broadcast %4 : vector<128x1xf32> to vector<128x384xf32>
    %7 = vector.broadcast %5 : vector<1x384xf32> to vector<128x384xf32>
    %8 = arith.subf %6, %7 : vector<128x384xf32>
    %9 = arith.mulf %8, %8 : vector<128x384xf32>
    %10 = vector.extract_strided_slice %3 {offsets = [0, 1], sizes = [128, 1], strides = [1, 1]} : vector<128x3xf32> to vector<128x1xf32>
    %11 = vector.extract_strided_slice %1 {offsets = [1, 0], sizes = [1, 384], strides = [1, 1]} : vector<3x384xf32> to vector<1x384xf32>
    %12 = vector.broadcast %10 : vector<128x1xf32> to vector<128x384xf32>
    %13 = vector.broadcast %11 : vector<1x384xf32> to vector<128x384xf32>
    %14 = arith.subf %12, %13 : vector<128x384xf32>
    %15 = arith.mulf %14, %14 : vector<128x384xf32>
    %16 = arith.addf %9, %15 : vector<128x384xf32>
    %17 = vector.extract_strided_slice %3 {offsets = [0, 2], sizes = [128, 1], strides = [1, 1]} : vector<128x3xf32> to vector<128x1xf32>
    %18 = vector.extract_strided_slice %1 {offsets = [2, 0], sizes = [1, 384], strides = [1, 1]} : vector<3x384xf32> to vector<1x384xf32>
    %19 = vector.broadcast %17 : vector<128x1xf32> to vector<128x384xf32>
    %20 = vector.broadcast %18 : vector<1x384xf32> to vector<128x384xf32>
    %21 = arith.subf %19, %20 : vector<128x384xf32>
    %22 = arith.mulf %21, %21 : vector<128x384xf32>
    %23 = arith.addf %16, %22 : vector<128x384xf32>
    %24 = tpu.iota {dimensions = array<i32: 0>} : vector<128x384xi32>
    %cst = arith.constant 0.000000e+00 : f32
    %25 = vector.broadcast %cst : f32 to vector<128x384xf32>
    %cst_5 = arith.constant 0.000000e+00 : f32
    %26 = vector.broadcast %cst_5 : f32 to vector<1x384xf32>
    %cst_6 = arith.constant dense<0x7F800000> : vector<384xf32>
    %27 = vector.multi_reduction <minimumf>, %23, %cst_6 [0] : vector<128x384xf32> to vector<384xf32>
    %28 = vector.shape_cast %27 : vector<384xf32> to vector<1x384xf32>
    %29 = vector.broadcast %28 : vector<1x384xf32> to vector<128x384xf32>
    %30 = arith.cmpf oeq, %23, %29 : vector<128x384xf32>
    %c128_i32 = arith.constant 128 : i32
    %31 = vector.broadcast %c128_i32 : i32 to vector<128x384xi32>
    %32 = arith.select %30, %24, %31 : vector<128x384xi1>, vector<128x384xi32>
    %cst_7 = arith.constant dense<2147483647> : vector<384xi32>
    %33 = vector.multi_reduction <minsi>, %32, %cst_7 [0] : vector<128x384xi32> to vector<384xi32>
    %34 = vector.shape_cast %33 : vector<384xi32> to vector<1x384xi32>
    %35 = vector.broadcast %34 : vector<1x384xi32> to vector<128x384xi32>
    %36 = arith.cmpi eq, %24, %35 : vector<128x384xi32>
    %cst_8 = arith.constant 9.99999993E-9 : f32
    %37 = vector.broadcast %cst_8 : f32 to vector<1x384xf32>
    %38 = arith.addf %28, %37 : vector<1x384xf32>
    %cst_9 = arith.constant 1.000000e+00 : f32
    %39 = vector.broadcast %cst_9 : f32 to vector<1x384xf32>
    %40 = arith.divf %39, %38 : vector<1x384xf32>
    %41 = arith.addf %26, %40 : vector<1x384xf32>
    %cst_10 = arith.constant 0.000000e+00 : f32
    %42 = vector.shape_cast %40 : vector<1x384xf32> to vector<1x384xf32>
    %43 = vector.broadcast %42 : vector<1x384xf32> to vector<128x384xf32>
    %44 = vector.broadcast %cst_10 : f32 to vector<128x384xf32>
    %45 = arith.select %36, %43, %44 : vector<128x384xi1>, vector<128x384xf32>
    %46 = arith.addf %25, %45 : vector<128x384xf32>
    %cst_11 = arith.constant 1.000000e+30 : f32
    %47 = vector.broadcast %cst_11 : f32 to vector<128x384xf32>
    %48 = arith.select %36, %47, %23 : vector<128x384xi1>, vector<128x384xf32>
    %cst_12 = arith.constant dense<0x7F800000> : vector<384xf32>
    %49 = vector.multi_reduction <minimumf>, %48, %cst_12 [0] : vector<128x384xf32> to vector<384xf32>
    %50 = vector.shape_cast %49 : vector<384xf32> to vector<1x384xf32>
    %51 = vector.broadcast %50 : vector<1x384xf32> to vector<128x384xf32>
    %52 = arith.cmpf oeq, %48, %51 : vector<128x384xf32>
    %c128_i32_13 = arith.constant 128 : i32
    %53 = vector.broadcast %c128_i32_13 : i32 to vector<128x384xi32>
    %54 = arith.select %52, %24, %53 : vector<128x384xi1>, vector<128x384xi32>
    %cst_14 = arith.constant dense<2147483647> : vector<384xi32>
    %55 = vector.multi_reduction <minsi>, %54, %cst_14 [0] : vector<128x384xi32> to vector<384xi32>
    %56 = vector.shape_cast %55 : vector<384xi32> to vector<1x384xi32>
    %57 = vector.broadcast %56 : vector<1x384xi32> to vector<128x384xi32>
    %58 = arith.cmpi eq, %24, %57 : vector<128x384xi32>
    %cst_15 = arith.constant 9.99999993E-9 : f32
    %59 = vector.broadcast %cst_15 : f32 to vector<1x384xf32>
    %60 = arith.addf %50, %59 : vector<1x384xf32>
    %cst_16 = arith.constant 1.000000e+00 : f32
    %61 = vector.broadcast %cst_16 : f32 to vector<1x384xf32>
    %62 = arith.divf %61, %60 : vector<1x384xf32>
    %63 = arith.addf %41, %62 : vector<1x384xf32>
    %cst_17 = arith.constant 0.000000e+00 : f32
    %64 = vector.shape_cast %62 : vector<1x384xf32> to vector<1x384xf32>
    %65 = vector.broadcast %64 : vector<1x384xf32> to vector<128x384xf32>
    %66 = vector.broadcast %cst_17 : f32 to vector<128x384xf32>
    %67 = arith.select %58, %65, %66 : vector<128x384xi1>, vector<128x384xf32>
    %68 = arith.addf %46, %67 : vector<128x384xf32>
    %cst_18 = arith.constant 1.000000e+30 : f32
    %69 = vector.broadcast %cst_18 : f32 to vector<128x384xf32>
    %70 = arith.select %58, %69, %48 : vector<128x384xi1>, vector<128x384xf32>
    %cst_19 = arith.constant dense<0x7F800000> : vector<384xf32>
    %71 = vector.multi_reduction <minimumf>, %70, %cst_19 [0] : vector<128x384xf32> to vector<384xf32>
    %72 = vector.shape_cast %71 : vector<384xf32> to vector<1x384xf32>
    %73 = vector.broadcast %72 : vector<1x384xf32> to vector<128x384xf32>
    %74 = arith.cmpf oeq, %70, %73 : vector<128x384xf32>
    %c128_i32_20 = arith.constant 128 : i32
    %75 = vector.broadcast %c128_i32_20 : i32 to vector<128x384xi32>
    %76 = arith.select %74, %24, %75 : vector<128x384xi1>, vector<128x384xi32>
    %cst_21 = arith.constant dense<2147483647> : vector<384xi32>
    %77 = vector.multi_reduction <minsi>, %76, %cst_21 [0] : vector<128x384xi32> to vector<384xi32>
    %78 = vector.shape_cast %77 : vector<384xi32> to vector<1x384xi32>
    %79 = vector.broadcast %78 : vector<1x384xi32> to vector<128x384xi32>
    %80 = arith.cmpi eq, %24, %79 : vector<128x384xi32>
    %cst_22 = arith.constant 9.99999993E-9 : f32
    %81 = vector.broadcast %cst_22 : f32 to vector<1x384xf32>
    %82 = arith.addf %72, %81 : vector<1x384xf32>
    %cst_23 = arith.constant 1.000000e+00 : f32
    %83 = vector.broadcast %cst_23 : f32 to vector<1x384xf32>
    %84 = arith.divf %83, %82 : vector<1x384xf32>
    %85 = arith.addf %63, %84 : vector<1x384xf32>
    %cst_24 = arith.constant 0.000000e+00 : f32
    %86 = vector.shape_cast %84 : vector<1x384xf32> to vector<1x384xf32>
    %87 = vector.broadcast %86 : vector<1x384xf32> to vector<128x384xf32>
    %88 = vector.broadcast %cst_24 : f32 to vector<128x384xf32>
    %89 = arith.select %80, %87, %88 : vector<128x384xi1>, vector<128x384xf32>
    %90 = arith.addf %68, %89 : vector<128x384xf32>
    %cst_25 = arith.constant 1.000000e+00 : f32
    %91 = vector.broadcast %cst_25 : f32 to vector<1x384xf32>
    %92 = arith.divf %91, %85 : vector<1x384xf32>
    %93 = vector.broadcast %92 : vector<1x384xf32> to vector<128x384xf32>
    %94 = arith.mulf %90, %93 : vector<128x384xf32>
    %c0_26 = arith.constant 0 : index
    %c0_27 = arith.constant 0 : index
    %c0_28 = arith.constant 0 : index
    %95 = vector.load %arg5[%c0_26, %c0_27, %c0_28] : memref<1x8x128xf32, #tpu.memory_space<vmem>>, vector<1x8x128xf32>
    %96 = vector.shape_cast %95 : vector<1x8x128xf32> to vector<8x128xf32>
    %cst_29 = arith.constant dense<0.000000e+00> : vector<8x384xf32>
    %97 = tpu.matmul %96, %94, %cst_29 {dimension_numbers = #tpu.dot_dimension_numbers<[1], [0], [0], [1], [0, 0, 1, 1], [], []>} : vector<8x128xf32>, vector<128x384xf32>, vector<8x384xf32> -> vector<8x384xf32>
    %c0_30 = arith.constant 0 : index
    %c0_31 = arith.constant 0 : index
    %98 = vector.load %arg6[%c0_30, %c0_31] : memref<16x8xf32, #tpu.memory_space<vmem>>, vector<16x8xf32>
    %cst_32 = arith.constant dense<0.000000e+00> : vector<16x384xf32>
    %99 = tpu.matmul %98, %97, %cst_32 {dimension_numbers = #tpu.dot_dimension_numbers<[1], [0], [0], [1], [0, 0, 1, 1], [], []>} : vector<16x8xf32>, vector<8x384xf32>, vector<16x384xf32> -> vector<16x384xf32>
    %c0_33 = arith.constant 0 : index
    %c0_34 = arith.constant 0 : index
    %100 = vector.load %arg7[%c0_33, %c0_34] : memref<16x4xf32, #tpu.memory_space<vmem>>, vector<16x4xf32>
    %c0_35 = arith.constant 0 : index
    %c0_36 = arith.constant 0 : index
    %c0_37 = arith.constant 0 : index
    %101 = vector.load %arg4[%c0_35, %c0_36, %c0_37] : memref<1x4x384xf32, #tpu.memory_space<vmem>>, vector<1x4x384xf32>
    %102 = vector.shape_cast %101 : vector<1x4x384xf32> to vector<4x384xf32>
    %cst_38 = arith.constant dense<0.000000e+00> : vector<16x384xf32>
    %103 = tpu.matmul %100, %102, %cst_38 {dimension_numbers = #tpu.dot_dimension_numbers<[1], [0], [0], [1], [0, 0, 1, 1], [], []>} : vector<16x4xf32>, vector<4x384xf32>, vector<16x384xf32> -> vector<16x384xf32>
    %104 = arith.addf %99, %103 : vector<16x384xf32>
    %c0_39 = arith.constant 0 : index
    %c0_40 = arith.constant 0 : index
    %105 = vector.load %arg8[%c0_39, %c0_40] : memref<16x1xf32, #tpu.memory_space<vmem>>, vector<16x1xf32>
    %106 = vector.broadcast %105 : vector<16x1xf32> to vector<16x384xf32>
    %107 = arith.addf %104, %106 : vector<16x384xf32>
    %cst_41 = arith.constant 0.000000e+00 : f32
    %108 = vector.broadcast %cst_41 : f32 to vector<16x384xf32>
    %109 = arith.maximumf %107, %108 : vector<16x384xf32>
    %c0_42 = arith.constant 0 : index
    %c0_43 = arith.constant 0 : index
    %110 = vector.load %arg9[%c0_42, %c0_43] : memref<8x16xf32, #tpu.memory_space<vmem>>, vector<8x16xf32>
    %cst_44 = arith.constant dense<0.000000e+00> : vector<8x384xf32>
    %111 = tpu.matmul %110, %109, %cst_44 {dimension_numbers = #tpu.dot_dimension_numbers<[1], [0], [0], [1], [0, 0, 1, 1], [], []>} : vector<8x16xf32>, vector<16x384xf32>, vector<8x384xf32> -> vector<8x384xf32>
    %c0_45 = arith.constant 0 : index
    %c0_46 = arith.constant 0 : index
    %112 = vector.load %arg10[%c0_45, %c0_46] : memref<8x1xf32, #tpu.memory_space<vmem>>, vector<8x1xf32>
    %113 = vector.broadcast %112 : vector<8x1xf32> to vector<8x384xf32>
    %114 = arith.addf %111, %113 : vector<8x384xf32>
    %cst_47 = arith.constant 0.000000e+00 : f32
    %115 = vector.broadcast %cst_47 : f32 to vector<8x384xf32>
    %116 = arith.maximumf %114, %115 : vector<8x384xf32>
    %c0_48 = arith.constant 0 : index
    %c0_49 = arith.constant 0 : index
    %c0_50 = arith.constant 0 : index
    %117 = vector.load %arg11[%c0_48, %c0_49, %c0_50] : memref<1x8x384xf32, #tpu.memory_space<vmem>>, vector<1x8x384xf32>
    %118 = vector.shape_cast %117 : vector<1x8x384xf32> to vector<8x384xf32>
    %119 = vector.shape_cast %116 : vector<8x384xf32> to vector<1x8x384xf32>
    tpu.vector_store %arg11[%c0_48, %c0_49, %c0_50], %119 {strides = array<i32>} : memref<1x8x384xf32, #tpu.memory_space<vmem>>, vector<1x8x384xf32>,
    return
  }
  func.func @transform_0(%arg0: i32, %arg1: i32) -> (i32, i32, i32) {
    %c0_i32 = arith.constant 0 : i32
    %c0_i32_0 = arith.constant 0 : i32
    return %arg0, %c0_i32, %arg1 : i32, i32, i32
  }
  func.func @transform_1(%arg0: i32, %arg1: i32) -> (i32, i32, i32) {
    %c0_i32 = arith.constant 0 : i32
    %c0_i32_0 = arith.constant 0 : i32
    %c0_i32_1 = arith.constant 0 : i32
    return %arg0, %c0_i32, %c0_i32_0 : i32, i32, i32
  }
  func.func @transform_2(%arg0: i32, %arg1: i32) -> (i32, i32, i32) {
    %c0_i32 = arith.constant 0 : i32
    %c0_i32_0 = arith.constant 0 : i32
    return %arg0, %c0_i32, %arg1 : i32, i32, i32
  }
  func.func @transform_3(%arg0: i32, %arg1: i32) -> (i32, i32, i32) {
    %c0_i32 = arith.constant 0 : i32
    %c0_i32_0 = arith.constant 0 : i32
    %c0_i32_1 = arith.constant 0 : i32
    return %arg0, %c0_i32, %c0_i32_0 : i32, i32, i32
  }
  func.func @transform_4(%arg0: i32, %arg1: i32) -> (i32, i32) {
    %c0_i32 = arith.constant 0 : i32
    %c0_i32_0 = arith.constant 0 : i32
    %c0_i32_1 = arith.constant 0 : i32
    return %c0_i32, %c0_i32_0 : i32, i32
  }
  func.func @transform_5(%arg0: i32, %arg1: i32) -> (i32, i32) {
    %c0_i32 = arith.constant 0 : i32
    %c0_i32_0 = arith.constant 0 : i32
    %c0_i32_1 = arith.constant 0 : i32
    return %c0_i32, %c0_i32_0 : i32, i32
  }
  func.func @transform_6(%arg0: i32, %arg1: i32) -> (i32, i32) {
    %c0_i32 = arith.constant 0 : i32
    %c0_i32_0 = arith.constant 0 : i32
    %c0_i32_1 = arith.constant 0 : i32
    return %c0_i32, %c0_i32_0 : i32, i32
  }
  func.func @transform_7(%arg0: i32, %arg1: i32) -> (i32, i32) {
    %c0_i32 = arith.constant 0 : i32
    %c0_i32_0 = arith.constant 0 : i32
    %c0_i32_1 = arith.constant 0 : i32
    return %c0_i32, %c0_i32_0 : i32, i32
  }
  func.func @transform_8(%arg0: i32, %arg1: i32) -> (i32, i32) {
    %c0_i32 = arith.constant 0 : i32
    %c0_i32_0 = arith.constant 0 : i32
    %c0_i32_1 = arith.constant 0 : i32
    return %c0_i32, %c0_i32_0 : i32, i32
  }
  func.func @transform_9(%arg0: i32, %arg1: i32) -> (i32, i32, i32) {
    %c0_i32 = arith.constant 0 : i32
    %c0_i32_0 = arith.constant 0 : i32
    return %arg0, %c0_i32, %arg1 : i32, i32, i32
  }
}

</mosaic_0001>

<llo_original>
// kernel: tpu_custom_call.1
$region0: #{tpu_custom_call.1}
  #allocation0 [shape = 'u32[]', space=smem, size = 0x4, offset = 0x4, fixed_abs, tag = 'smem constant byte address 0x4 - core index']
  #allocation1 [shape = 'u32[144,128]{1,0:T(1,128)}', space=vmem, size = 0x12000, scoped, tag = 'internal scratch']
  %s0 = inlined_call_operand.vmem [shape: f32[2,3,384], index: 0, kind: input, shape index: {}]
  %s1 = inlined_call_operand.vmem [shape: f32[2,128,3], index: 1, kind: input, shape index: {}]
  %s2 = inlined_call_operand.vmem [shape: f32[2,4,384], index: 2, kind: input, shape index: {}]
  %s3 = inlined_call_operand.vmem [shape: f32[2,8,128], index: 3, kind: input, shape index: {}]
  %s4 = inlined_call_operand.vmem [shape: f32[16,8], index: 4, kind: input, shape index: {}]
  %s5 = inlined_call_operand.vmem [shape: f32[16,4], index: 5, kind: input, shape index: {}]
  %s6 = inlined_call_operand.vmem [shape: f32[16,1], index: 6, kind: input, shape index: {}]
  %s7 = inlined_call_operand.vmem [shape: f32[8,16], index: 7, kind: input, shape index: {}]
  %s8 = inlined_call_operand.vmem [shape: f32[8,1], index: 8, kind: input, shape index: {}]
  %s9 = inlined_call_operand.hbm [shape: f32[2,8,384], index: 9, kind: output, shape index: {}]
  %s10 = sld [smem:[#allocation0]]
  $region69: #{tpu_custom_call.1} parent=0
    _
  %s12 = ssub.s32 1, %s10
  %s13 = scalar_select 0, %s12, %s10
  $region1: #{tpu_custom_call.1} parent=0
    #allocation2 [shape = 'u8[24576]{0}', space=vmem, size = 0x6000, scoped, tag = 'output window, operand 0']
    #allocation3 [shape = 's32[2]{0}', space=sflag, size = 0x8, scoped, tag = 'scoped memory for tpu_custom_call.1']
    %14 = vsyncpa [#allocation3], 0
    %s15 = scalar_lea.sflag [#allocation3], 1
    %16 = vsyncpa %s15, 0
    loop: start=0, step=1, limit=4
    $region2: #{tpu_custom_call.1} parent=1 // loop_pre_header
      _
    $region3: #{tpu_custom_call.1} parent=1 // loop_header
      %s18 = sphi 0, %s22
      %p19 = scmp.ge.s32.totalorder %s18, 4
      %s25 = sphi 0, %s37
      %s26 = sphi 0, %s33
      %s27 = sphi 0, %s25
      %s28 = sphi 0, %s26
      %s29 = sphi 0, %s27
      %s30 = sphi 0, %s28
      %s42 = sphi 0, %s44
      %s45 = sphi 0, %s42
      %s46 = sphi 0, %s45
      %s62 = sphi 0, %s46
      %s68 = sphi 0, %s70
      %s71 = sphi 0, %s68
      %s72 = sphi 0, %s71
      %s88 = sphi 0, %s72
      %s96 = sphi 0, %s98
      %s99 = sphi 0, %s96
      %s100 = sphi 0, %s99
      %s116 = sphi 0, %s100
      %s122 = sphi 0, %s124
      %s125 = sphi 0, %s122
      %s126 = sphi 0, %s125
      %s142 = sphi 0, %s126
      %s146 = sphi 0, %s146
      %s148 = sphi 0, %s146
      %s149 = sphi 0, %s148
      %s163 = sphi 0, %s149
      %s167 = sphi 0, %s167
      %s169 = sphi 0, %s167
      %s170 = sphi 0, %s169
      %s184 = sphi 0, %s170
      %s188 = sphi 0, %s188
      %s190 = sphi 0, %s188
      %s191 = sphi 0, %s190
      %s205 = sphi 0, %s191
      %s209 = sphi 0, %s209
      %s211 = sphi 0, %s209
      %s212 = sphi 0, %s211
      %s226 = sphi 0, %s212
      %s230 = sphi 0, %s230
      %s232 = sphi 0, %s230
      %s233 = sphi 0, %s232
      %s247 = sphi 0, %s233
      %s255 = sphi 0, %s257
      %s258 = sphi 0, %s255
      %s259 = sphi 0, %s258
      %s275 = sphi 0, %s259
    $region4: #{tpu_custom_call.1} parent=1 // loop_header_branch
      %21 = sbr.rel (%p19) target = $region8
    $region5: #{tpu_custom_call.1} parent=1 // loop_body
      %s23 = ssub.s32 %s18, 1
      %s24 = ssub.s32 %s18, 2
      %s31 = sadd.s32 1, %s26
      %p32 = scmp.ge.s32.totalorder %s31, 1
      %s33 = scalar_select %p32, 0, %s31
      %s34 = sadd.s32 1, %s25
      %s35 = scalar_select %p32, %s34, %s25
      %p36 = scmp.ge.s32.totalorder %s35, 2
      %s37 = scalar_select %p36, 0, %s35
      %s38 = ssub.s32 %s25, %s37
      %s39 = ssub.s32 %s26, %s33
      %s40 = sor.u32 %s38, %s39
      %p41 = scmp.eq.s32.totalorder %s40, 0
      %s43 = sadd.s32 %s42, 1
      %s44 = scalar_select %p41, %s42, %s43
      %p47 = pneg %p41
      %p48 = scmp.eq.s32.totalorder %s18, 1
      %p49 = por %p47, %p48
      %p50 = scmp.ne.s32.totalorder %s42, %s45
      %p51 = scmp.eq.s32.totalorder %s18, 0
      %p52 = por %p50, %p51
      %p53 = scmp.ne.s32.totalorder %s42, %s45
      %p54 = scmp.eq.s32.totalorder %s23, 1
      %p55 = por %p53, %p54
      %p56 = scmp.ne.s32.totalorder %s45, %s46
      %p57 = scmp.eq.s32.totalorder %s23, 0
      %p58 = por %p56, %p57
      %p59 = scmp.ne.s32.totalorder %s45, %s46
      %p60 = scmp.eq.s32.totalorder %s24, 1
      %p61 = por %p59, %p60
      %p63 = scmp.ne.s32.totalorder %s46, %s62
      %p64 = scmp.eq.s32.totalorder %s24, 0
      %p65 = por %p63, %p64
      %s66 = ssub.s32 %s25, %s37
      %p67 = scmp.eq.s32.totalorder %s66, 0
      %s69 = sadd.s32 %s68, 1
      %s70 = scalar_select %p67, %s68, %s69
      %p73 = pneg %p67
      %p74 = scmp.eq.s32.totalorder %s18, 1
      %p75 = por %p73, %p74
      %p76 = scmp.ne.s32.totalorder %s68, %s71
      %p77 = scmp.eq.s32.totalorder %s18, 0
      %p78 = por %p76, %p77
      %p79 = scmp.ne.s32.totalorder %s68, %s71
      %p80 = scmp.eq.s32.totalorder %s23, 1
      %p81 = por %p79, %p80
      %p82 = scmp.ne.s32.totalorder %s71, %s72
      %p83 = scmp.eq.s32.totalorder %s23, 0
      %p84 = por %p82, %p83
      %p85 = scmp.ne.s32.totalorder %s71, %s72
      %p86 = scmp.eq.s32.totalorder %s24, 1
      %p87 = por %p85, %p86
      %p89 = scmp.ne.s32.totalorder %s72, %s88
      %p90 = scmp.eq.s32.totalorder %s24, 0
      %p91 = por %p89, %p90
      %s92 = ssub.s32 %s25, %s37
      %s93 = ssub.s32 %s26, %s33
      %s94 = sor.u32 %s92, %s93
      %p95 = scmp.eq.s32.totalorder %s94, 0
      %s97 = sadd.s32 %s96, 1
      %s98 = scalar_select %p95, %s96, %s97
      %p101 = pneg %p95
      %p102 = scmp.eq.s32.totalorder %s18, 1
      %p103 = por %p101, %p102
      %p104 = scmp.ne.s32.totalorder %s96, %s99
      %p105 = scmp.eq.s32.totalorder %s18, 0
      %p106 = por %p104, %p105
      %p107 = scmp.ne.s32.totalorder %s96, %s99
      %p108 = scmp.eq.s32.totalorder %s23, 1
      %p109 = por %p107, %p108
      %p110 = scmp.ne.s32.totalorder %s99, %s100
      %p111 = scmp.eq.s32.totalorder %s23, 0
      %p112 = por %p110, %p111
      %p113 = scmp.ne.s32.totalorder %s99, %s100
      %p114 = scmp.eq.s32.totalorder %s24, 1
      %p115 = por %p113, %p114
      %p117 = scmp.ne.s32.totalorder %s100, %s116
      %p118 = scmp.eq.s32.totalorder %s24, 0
      %p119 = por %p117, %p118
      %s120 = ssub.s32 %s25, %s37
      %p121 = scmp.eq.s32.totalorder %s120, 0
      %s123 = sadd.s32 %s122, 1
      %s124 = scalar_select %p121, %s122, %s123
      %p127 = pneg %p121
      %p128 = scmp.eq.s32.totalorder %s18, 1
      %p129 = por %p127, %p128
      %p130 = scmp.ne.s32.totalorder %s122, %s125
      %p131 = scmp.eq.s32.totalorder %s18, 0
      %p132 = por %p130, %p131
      %p133 = scmp.ne.s32.totalorder %s122, %s125
      %p134 = scmp.eq.s32.totalorder %s23, 1
      %p135 = por %p133, %p134
      %p136 = scmp.ne.s32.totalorder %s125, %s126
      %p137 = scmp.eq.s32.totalorder %s23, 0
      %p138 = por %p136, %p137
      %p139 = scmp.ne.s32.totalorder %s125, %s126
      %p140 = scmp.eq.s32.totalorder %s24, 1
      %p141 = por %p139, %p140
      %p143 = scmp.ne.s32.totalorder %s126, %s142
      %p144 = scmp.eq.s32.totalorder %s24, 0
      %p145 = por %p143, %p144
      %s147 = sadd.s32 %s146, 1
      %p150 = scmp.eq.s32.totalorder %s18, 1
      %p151 = scmp.ne.s32.totalorder %s146, %s148
      %p152 = scmp.eq.s32.totalorder %s18, 0
      %p153 = por %p151, %p152
      %p154 = scmp.ne.s32.totalorder %s146, %s148
      %p155 = scmp.eq.s32.totalorder %s23, 1
      %p156 = por %p154, %p155
      %p157 = scmp.ne.s32.totalorder %s148, %s149
      %p158 = scmp.eq.s32.totalorder %s23, 0
      %p159 = por %p157, %p158
      %p160 = scmp.ne.s32.totalorder %s148, %s149
      %p161 = scmp.eq.s32.totalorder %s24, 1
      %p162 = por %p160, %p161
      %p164 = scmp.ne.s32.totalorder %s149, %s163
      %p165 = scmp.eq.s32.totalorder %s24, 0
      %p166 = por %p164, %p165
      %s168 = sadd.s32 %s167, 1
      %p171 = scmp.eq.s32.totalorder %s18, 1
      %p172 = scmp.ne.s32.totalorder %s167, %s169
      %p173 = scmp.eq.s32.totalorder %s18, 0
      %p174 = por %p172, %p173
      %p175 = scmp.ne.s32.totalorder %s167, %s169
      %p176 = scmp.eq.s32.totalorder %s23, 1
      %p177 = por %p175, %p176
      %p178 = scmp.ne.s32.totalorder %s169, %s170
      %p179 = scmp.eq.s32.totalorder %s23, 0
      %p180 = por %p178, %p179
      %p181 = scmp.ne.s32.totalorder %s169, %s170
      %p182 = scmp.eq.s32.totalorder %s24, 1
      %p183 = por %p181, %p182
      %p185 = scmp.ne.s32.totalorder %s170, %s184
      %p186 = scmp.eq.s32.totalorder %s24, 0
      %p187 = por %p185, %p186
      %s189 = sadd.s32 %s188, 1
      %p192 = scmp.eq.s32.totalorder %s18, 1
      %p193 = scmp.ne.s32.totalorder %s188, %s190
      %p194 = scmp.eq.s32.totalorder %s18, 0
      %p195 = por %p193, %p194
      %p196 = scmp.ne.s32.totalorder %s188, %s190
      %p197 = scmp.eq.s32.totalorder %s23, 1
      %p198 = por %p196, %p197
      %p199 = scmp.ne.s32.totalorder %s190, %s191
      %p200 = scmp.eq.s32.totalorder %s23, 0
      %p201 = por %p199, %p200
      %p202 = scmp.ne.s32.totalorder %s190, %s191
      %p203 = scmp.eq.s32.totalorder %s24, 1
      %p204 = por %p202, %p203
      %p206 = scmp.ne.s32.totalorder %s191, %s205
      %p207 = scmp.eq.s32.totalorder %s24, 0
      %p208 = por %p206, %p207
      %s210 = sadd.s32 %s209, 1
      %p213 = scmp.eq.s32.totalorder %s18, 1
      %p214 = scmp.ne.s32.totalorder %s209, %s211
      %p215 = scmp.eq.s32.totalorder %s18, 0
      %p216 = por %p214, %p215
      %p217 = scmp.ne.s32.totalorder %s209, %s211
      %p218 = scmp.eq.s32.totalorder %s23, 1
      %p219 = por %p217, %p218
      %p220 = scmp.ne.s32.totalorder %s211, %s212
      %p221 = scmp.eq.s32.totalorder %s23, 0
      %p222 = por %p220, %p221
      %p223 = scmp.ne.s32.totalorder %s211, %s212
      %p224 = scmp.eq.s32.totalorder %s24, 1
      %p225 = por %p223, %p224
      %p227 = scmp.ne.s32.totalorder %s212, %s226
      %p228 = scmp.eq.s32.totalorder %s24, 0
      %p229 = por %p227, %p228
      %s231 = sadd.s32 %s230, 1
      %p234 = scmp.eq.s32.totalorder %s18, 1
      %p235 = scmp.ne.s32.totalorder %s230, %s232
      %p236 = scmp.eq.s32.totalorder %s18, 0
      %p237 = por %p235, %p236
      %p238 = scmp.ne.s32.totalorder %s230, %s232
      %p239 = scmp.eq.s32.totalorder %s23, 1
      %p240 = por %p238, %p239
      %p241 = scmp.ne.s32.totalorder %s232, %s233
      %p242 = scmp.eq.s32.totalorder %s23, 0
      %p243 = por %p241, %p242
      %p244 = scmp.ne.s32.totalorder %s232, %s233
      %p245 = scmp.eq.s32.totalorder %s24, 1
      %p246 = por %p244, %p245
      %p248 = scmp.ne.s32.totalorder %s233, %s247
      %p249 = scmp.eq.s32.totalorder %s24, 0
      %p250 = por %p248, %p249
      %s251 = ssub.s32 %s25, %s37
      %s252 = ssub.s32 %s26, %s33
      %s253 = sor.u32 %s251, %s252
      %p254 = scmp.eq.s32.totalorder %s253, 0
      %s256 = sadd.s32 %s255, 1
      %s257 = scalar_select %p254, %s255, %s256
      %p260 = pneg %p254
      %p261 = scmp.eq.s32.totalorder %s18, 1
      %p262 = por %p260, %p261
      %p263 = scmp.ne.s32.totalorder %s255, %s258
      %p264 = scmp.eq.s32.totalorder %s18, 0
      %p265 = por %p263, %p264
      %p266 = scmp.ne.s32.totalorder %s255, %s258
      %p267 = scmp.eq.s32.totalorder %s23, 1
      %p268 = por %p266, %p267
      %p269 = scmp.ne.s32.totalorder %s258, %s259
      %p270 = scmp.eq.s32.totalorder %s23, 0
      %p271 = por %p269, %p270
      %p272 = scmp.ne.s32.totalorder %s258, %s259
      %p273 = scmp.eq.s32.totalorder %s24, 1
      %p274 = por %p272, %p273
      %p276 = scmp.ne.s32.totalorder %s259, %s275
      %p277 = scmp.eq.s32.totalorder %s24, 0
      %p278 = por %p276, %p277
      %p279 = scmp.le.s32.totalorder 1, %s18
      %p280 = scmp.lt.s32.totalorder %s18, 3
      %p281 = pnand %p279, %p280
      %p282 = pneg %p281
      // Predicated region
      $region9: #{tpu_custom_call.1} parent=5 // pred_check
        _
      $region10: #{tpu_custom_call.1} parent=5 // pred_check_branch
        %284 = sbr.rel (%p281) target = $region12
      $region11: #{tpu_custom_call.1} parent=5 // pred_region
        %s285 = ssub.s32 %s18, 1
        // Predicated region
        $region13: #{tpu_custom_call.1} parent=11 // pred_check
          %p286 = pneg %p159
        $region14: #{tpu_custom_call.1} parent=11 // pred_check_branch
          %288 = sbr.rel (%p286) target = $region16
        $region15: #{tpu_custom_call.1} parent=11 // pred_region
          _
        $region16: #{tpu_custom_call.1} parent=11 // pred_fallthru
          _
        // Predicated region
        $region17: #{tpu_custom_call.1} parent=11 // pred_check
          %p289 = pneg %p180
        $region18: #{tpu_custom_call.1} parent=11 // pred_check_branch
          %291 = sbr.rel (%p289) target = $region20
        $region19: #{tpu_custom_call.1} parent=11 // pred_region
          _
        $region20: #{tpu_custom_call.1} parent=11 // pred_fallthru
          _
        // Predicated region
        $region21: #{tpu_custom_call.1} parent=11 // pred_check
          %p292 = pneg %p201
        $region22: #{tpu_custom_call.1} parent=11 // pred_check_branch
          %294 = sbr.rel (%p292) target = $region24
        $region23: #{tpu_custom_call.1} parent=11 // pred_region
          _
        $region24: #{tpu_custom_call.1} parent=11 // pred_fallthru
          _
        // Predicated region
        $region25: #{tpu_custom_call.1} parent=11 // pred_check
          %p295 = pneg %p222
        $region26: #{tpu_custom_call.1} parent=11 // pred_check_branch
          %297 = sbr.rel (%p295) target = $region28
        $region27: #{tpu_custom_call.1} parent=11 // pred_region
          _
        $region28: #{tpu_custom_call.1} parent=11 // pred_fallthru
          _
        // Predicated region
        $region29: #{tpu_custom_call.1} parent=11 // pred_check
          %p298 = pneg %p243
        $region30: #{tpu_custom_call.1} parent=11 // pred_check_branch
          %300 = sbr.rel (%p298) target = $region32
        $region31: #{tpu_custom_call.1} parent=11 // pred_region
          _
        $region32: #{tpu_custom_call.1} parent=11 // pred_fallthru
          _
      $region12: #{tpu_custom_call.1} parent=5 // pred_fallthru
        _
      %p301 = scmp.lt.s32.totalorder %s18, 2
      // Predicated region
      $region33: #{tpu_custom_call.1} parent=5 // pred_check
        %p302 = pneg %p301
      $region34: #{tpu_custom_call.1} parent=5 // pred_check_branch
        %304 = sbr.rel (%p302) target = $region36
      $region35: #{tpu_custom_call.1} parent=5 // pred_region
        // Predicated region
        $region37: #{tpu_custom_call.1} parent=35 // pred_check
          %p305 = pneg %p52
        $region38: #{tpu_custom_call.1} parent=35 // pred_check_branch
          %307 = sbr.rel (%p305) target = $region40
        $region39: #{tpu_custom_call.1} parent=35 // pred_region
          %s308 = smul.u32 3, %s26
          %p309 = scmp.lt.s32.totalorder %s25, 1
          %s310 = scalar_select %p309, %s25, 1
          %p311 = scmp.lt.s32.totalorder %s308, 2
          %s312 = scalar_select %p311, %s308, 2
          %s313 = smul.addr %s310, 3
          %s314 = sadd.s32 %s312, %s313
          %s315 = smul.addr %s314, 4
          %s316 = scalar_lea.vmem %s0, %s315
          %s317 = smul.u32 3, %s26
        $region40: #{tpu_custom_call.1} parent=35 // pred_fallthru
          _
        // Predicated region
        $region41: #{tpu_custom_call.1} parent=35 // pred_check
          %p318 = pneg %p78
        $region42: #{tpu_custom_call.1} parent=35 // pred_check_branch
          %320 = sbr.rel (%p318) target = $region44
        $region43: #{tpu_custom_call.1} parent=35 // pred_region
          %p321 = scmp.lt.s32.totalorder %s25, 1
          %s322 = scalar_select %p321, %s25, 1
          %s323 = smul.addr %s322, 16
          %s324 = smul.addr %s323, 8
          %s325 = scalar_lea.vmem %s1, %s324
        $region44: #{tpu_custom_call.1} parent=35 // pred_fallthru
          _
        // Predicated region
        $region45: #{tpu_custom_call.1} parent=35 // pred_check
          %p326 = pneg %p106
        $region46: #{tpu_custom_call.1} parent=35 // pred_check_branch
          %328 = sbr.rel (%p326) target = $region48
        $region47: #{tpu_custom_call.1} parent=35 // pred_region
          %s329 = smul.u32 3, %s26
          %p330 = scmp.lt.s32.totalorder %s25, 1
          %s331 = scalar_select %p330, %s25, 1
          %p332 = scmp.lt.s32.totalorder %s329, 2
          %s333 = scalar_select %p332, %s329, 2
          %s334 = smul.addr %s331, 3
          %s335 = sadd.s32 %s333, %s334
          %s336 = smul.addr %s335, 4
          %s337 = scalar_lea.vmem %s2, %s336
          %s338 = smul.u32 3, %s26
        $region48: #{tpu_custom_call.1} parent=35 // pred_fallthru
          _
        // Predicated region
        $region49: #{tpu_custom_call.1} parent=35 // pred_check
          %p339 = pneg %p132
        $region50: #{tpu_custom_call.1} parent=35 // pred_check_branch
          %341 = sbr.rel (%p339) target = $region52
        $region51: #{tpu_custom_call.1} parent=35 // pred_region
          %p342 = scmp.lt.s32.totalorder %s25, 1
          %s343 = scalar_select %p342, %s25, 1
          %s344 = smul.addr %s343, 8
          %s345 = scalar_lea.vmem %s3, %s344
        $region52: #{tpu_custom_call.1} parent=35 // pred_fallthru
          _
      $region36: #{tpu_custom_call.1} parent=5 // pred_fallthru
        _
      %p346 = scmp.le.s32.totalorder 1, %s18
      %p347 = scmp.lt.s32.totalorder %s18, 3
      %p348 = pnand %p346, %p347
      %p349 = pneg %p348
      // Predicated region
      $region53: #{tpu_custom_call.1} parent=5 // pred_check
        _
      $region54: #{tpu_custom_call.1} parent=5 // pred_check_branch
        %351 = sbr.rel (%p348) target = $region56
      $region55: #{tpu_custom_call.1} parent=5 // pred_region
        %s352 = ssub.s32 %s18, 1
        %s353 = smul.u32 3, %s28
        %p354 = scmp.lt.s32.totalorder %s27, 1
        %s355 = scalar_select %p354, %s27, 1
        %p356 = scmp.lt.s32.totalorder %s353, 2
        %s357 = scalar_select %p356, %s353, 2
        %s358 = smul.addr %s355, 3
        %s359 = sadd.s32 %s357, %s358
        %s360 = smul.addr %s359, 4
        %s361 = scalar_lea.vmem %s0, %s360
        %p362 = pneg %p58
        %p363 = pneg %p55
        %p364 = scmp.lt.s32.totalorder %s27, 1
        %s365 = scalar_select %p364, %s27, 1
        %s366 = smul.addr %s365, 16
        %s367 = smul.addr %s366, 8
        %s368 = scalar_lea.vmem %s1, %s367
        %p369 = pneg %p84
        %p370 = pneg %p81
        %s371 = smul.u32 3, %s28
        %p372 = scmp.lt.s32.totalorder %s27, 1
        %s373 = scalar_select %p372, %s27, 1
        %p374 = scmp.lt.s32.totalorder %s371, 2
        %s375 = scalar_select %p374, %s371, 2
        %s376 = smul.addr %s373, 3
        %s377 = sadd.s32 %s375, %s376
        %s378 = smul.addr %s377, 4
        %s379 = scalar_lea.vmem %s2, %s378
        %p380 = pneg %p112
        %p381 = pneg %p109
        %p382 = scmp.lt.s32.totalorder %s27, 1
        %s383 = scalar_select %p382, %s27, 1
        %s384 = smul.addr %s383, 8
        %s385 = scalar_lea.vmem %s3, %s384
        %p386 = pneg %p138
        %p387 = pneg %p135
        %p388 = pneg %p159
        %p389 = pneg %p156
        %p390 = pneg %p180
        %p391 = pneg %p177
        %p392 = pneg %p201
        %p393 = pneg %p198
        %p394 = pneg %p222
        %p395 = pneg %p219
        %p396 = pneg %p243
        %p397 = pneg %p240
        %p398 = pneg %p271
        %p399 = pneg %p268
        %s400 = sand.u32 %s258, 1
        %s401 = scalar_lea.sflag [#allocation3], %s400
        %s402 = sand.u32 %s258, 1
        %s403 = smul.addr %s402, 24
        %s404 = scalar_lea.vmem [#allocation2], %s403
        %s405 = smul.u32 3, %s28
        %p406 = scmp.lt.s32.totalorder %s27, 1
        %s407 = scalar_select %p406, %s27, 1
        %p408 = scmp.lt.s32.totalorder %s405, 2
        %s409 = scalar_select %p408, %s405, 2
        %s410 = smul.addr %s407, 3
        %s411 = sadd.s32 %s409, %s410
        %s412 = smul.addr %s411, 4
        %s413 = scalar_lea.vmem %s0, %s412
        %s414 = smul.u32 3, %s28
        %p415 = scmp.lt.s32.totalorder %s27, 1
        %s416 = scalar_select %p415, %s27, 1
        %s417 = smul.addr %s416, 16
        %s418 = smul.addr %s417, 8
        %s419 = scalar_lea.vmem %s1, %s418
        %s420 = smul.u32 3, %s28
        %p421 = scmp.lt.s32.totalorder %s27, 1
        %s422 = scalar_select %p421, %s27, 1
        %p423 = scmp.lt.s32.totalorder %s420, 2
        %s424 = scalar_select %p423, %s420, 2
        %s425 = smul.addr %s422, 3
        %s426 = sadd.s32 %s424, %s425
        %s427 = smul.addr %s426, 4
        %s428 = scalar_lea.vmem %s2, %s427
        %s429 = smul.u32 3, %s28
        %p430 = scmp.lt.s32.totalorder %s27, 1
        %s431 = scalar_select %p430, %s27, 1
        %s432 = smul.addr %s431, 8
        %s433 = scalar_lea.vmem %s3, %s432
        %s434 = smul.u32 3, %s28
        %v435 = vld [vmem:[%s413] sm:$0x77]
        %v436 = vld [vmem:[%s413 + $0x8] sm:$0x7]
        %v437 = vld [vmem:[%s419] sm:$0xff]
        %v438 = vld [vmem:[%s419 + $0x8] sm:$0xff]
        %v439 = vld [vmem:[%s419 + $0x10] sm:$0xff]
        %v440 = vld [vmem:[%s419 + $0x18] sm:$0xff]
        %v441 = vld [vmem:[%s419 + $0x20] sm:$0xff]
        %v442 = vld [vmem:[%s419 + $0x28] sm:$0xff]
        %v443 = vld [vmem:[%s419 + $0x30] sm:$0xff]
        %v444 = vld [vmem:[%s419 + $0x38] sm:$0xff]
        %v445 = vld [vmem:[%s419 + $0x40] sm:$0xff]
        %v446 = vld [vmem:[%s419 + $0x48] sm:$0xff]
        %v447 = vld [vmem:[%s419 + $0x50] sm:$0xff]
        %v448 = vld [vmem:[%s419 + $0x58] sm:$0xff]
        %v449 = vld [vmem:[%s419 + $0x60] sm:$0xff]
        %v450 = vld [vmem:[%s419 + $0x68] sm:$0xff]
        %v451 = vld [vmem:[%s419 + $0x70] sm:$0xff]
        %v452 = vld [vmem:[%s419 + $0x78] sm:$0xff]
        %454 = vset.pattern.permute.xlu0 0
        %455 = vperm.xlu0 %454, %v437
        %v456 = vpop.permute.xlu0 %455
        %459 = vset.pattern.permute.xlu0 0
        %460 = vperm.xlu0 %459, %v438
        %v461 = vpop.permute.xlu0 %460
        %464 = vset.pattern.permute.xlu0 0
        %465 = vperm.xlu0 %464, %v439
        %v466 = vpop.permute.xlu0 %465
        %469 = vset.pattern.permute.xlu0 0
        %470 = vperm.xlu0 %469, %v440
        %v471 = vpop.permute.xlu0 %470
        %474 = vset.pattern.permute.xlu0 0
        %475 = vperm.xlu0 %474, %v441
        %v476 = vpop.permute.xlu0 %475
        %479 = vset.pattern.permute.xlu0 0
        %480 = vperm.xlu0 %479, %v442
        %v481 = vpop.permute.xlu0 %480
        %484 = vset.pattern.permute.xlu0 0
        %485 = vperm.xlu0 %484, %v443
        %v486 = vpop.permute.xlu0 %485
        %489 = vset.pattern.permute.xlu0 0
        %490 = vperm.xlu0 %489, %v444
        %v491 = vpop.permute.xlu0 %490
        %494 = vset.pattern.permute.xlu0 0
        %495 = vperm.xlu0 %494, %v445
        %v496 = vpop.permute.xlu0 %495
        %499 = vset.pattern.permute.xlu0 0
        %500 = vperm.xlu0 %499, %v446
        %v501 = vpop.permute.xlu0 %500
        %504 = vset.pattern.permute.xlu0 0
        %505 = vperm.xlu0 %504, %v447
        %v506 = vpop.permute.xlu0 %505
        %509 = vset.pattern.permute.xlu0 0
        %510 = vperm.xlu0 %509, %v448
        %v511 = vpop.permute.xlu0 %510
        %514 = vset.pattern.permute.xlu0 0
        %515 = vperm.xlu0 %514, %v449
        %v516 = vpop.permute.xlu0 %515
        %519 = vset.pattern.permute.xlu0 0
        %520 = vperm.xlu0 %519, %v450
        %v521 = vpop.permute.xlu0 %520
        %524 = vset.pattern.permute.xlu0 0
        %525 = vperm.xlu0 %524, %v451
        %v526 = vpop.permute.xlu0 %525
        %529 = vset.pattern.permute.xlu0 0
        %530 = vperm.xlu0 %529, %v452
        %v531 = vpop.permute.xlu0 %530
        %v535 = vlaneseq
        %v536 = vshrl.u32 %v535, 7
        %v537 = vsub.s32 0, %v536
        %v538 = vrot.slane %v435, %v537
        %v539 = vlaneseq
        %v540 = vshrl.u32 %v539, 7
        %v541 = vsub.s32 4, %v540
        %v542 = vrot.slane %v435, %v541
        %v543 = vlaneseq
        %v544 = vshrl.u32 %v543, 7
        %v545 = vsub.s32 0, %v544
        %v546 = vrot.slane %v436, %v545
        %v550 = vlaneseq
        %v551 = vshrl.u32 %v550, 7
        %v552 = vsub.s32 0, %v551
        %v553 = vrot.slane %v538, %v552
        %v554 = vlaneseq
        %v555 = vshrl.u32 %v554, 7
        %v556 = vsub.s32 0, %v555
        %v557 = vrot.slane %v542, %v556
        %v558 = vlaneseq
        %v559 = vshrl.u32 %v558, 7
        %v560 = vsub.s32 0, %v559
        %v561 = vrot.slane %v546, %v560
        %v562 = vsub.f32 %v456, %v553
        %v563 = vsub.f32 %v456, %v557
        %v564 = vsub.f32 %v456, %v561
        %v565 = vsub.f32 %v461, %v553
        %v566 = vsub.f32 %v461, %v557
        %v567 = vsub.f32 %v461, %v561
        %v568 = vsub.f32 %v466, %v553
        %v569 = vsub.f32 %v466, %v557
        %v570 = vsub.f32 %v466, %v561
        %v571 = vsub.f32 %v471, %v553
        %v572 = vsub.f32 %v471, %v557
        %v573 = vsub.f32 %v471, %v561
        %v574 = vsub.f32 %v476, %v553
        %v575 = vsub.f32 %v476, %v557
        %v576 = vsub.f32 %v476, %v561
        %v577 = vsub.f32 %v481, %v553
        %v578 = vsub.f32 %v481, %v557
        %v579 = vsub.f32 %v481, %v561
        %v580 = vsub.f32 %v486, %v553
        %v581 = vsub.f32 %v486, %v557
        %v582 = vsub.f32 %v486, %v561
        %v583 = vsub.f32 %v491, %v553
        %v584 = vsub.f32 %v491, %v557
        %v585 = vsub.f32 %v491, %v561
        %v586 = vsub.f32 %v496, %v553
        %v587 = vsub.f32 %v496, %v557
        %v588 = vsub.f32 %v496, %v561
        %v589 = vsub.f32 %v501, %v553
        %v590 = vsub.f32 %v501, %v557
        %v591 = vsub.f32 %v501, %v561
        %v592 = vsub.f32 %v506, %v553
        %v593 = vsub.f32 %v506, %v557
        %v594 = vsub.f32 %v506, %v561
        %v595 = vsub.f32 %v511, %v553
        %v596 = vsub.f32 %v511, %v557
        %v597 = vsub.f32 %v511, %v561
        %v598 = vsub.f32 %v516, %v553
        %v599 = vsub.f32 %v516, %v557
        %v600 = vsub.f32 %v516, %v561
        %v601 = vsub.f32 %v521, %v553
        %v602 = vsub.f32 %v521, %v557
        %v603 = vsub.f32 %v521, %v561
        %v604 = vsub.f32 %v526, %v553
        %v605 = vsub.f32 %v526, %v557
        %v606 = vsub.f32 %v526, %v561
        %v607 = vsub.f32 %v531, %v553
        %v608 = vsub.f32 %v531, %v557
        %v609 = vsub.f32 %v531, %v561
        %v610 = vmul.f32 %v562, %v562
        %v611 = vmul.f32 %v563, %v563
        %v612 = vmul.f32 %v564, %v564
        %v613 = vmul.f32 %v565, %v565
        %v614 = vmul.f32 %v566, %v566
        %v615 = vmul.f32 %v567, %v567
        %v616 = vmul.f32 %v568, %v568
        %v617 = vmul.f32 %v569, %v569
        %v618 = vmul.f32 %v570, %v570
        %v619 = vmul.f32 %v571, %v571
        %v620 = vmul.f32 %v572, %v572
        %v621 = vmul.f32 %v573, %v573
        %v622 = vmul.f32 %v574, %v574
        %v623 = vmul.f32 %v575, %v575
        %v624 = vmul.f32 %v576, %v576
        %v625 = vmul.f32 %v577, %v577
        %v626 = vmul.f32 %v578, %v578
        %v627 = vmul.f32 %v579, %v579
        %v628 = vmul.f32 %v580, %v580
        %v629 = vmul.f32 %v581, %v581
        %v630 = vmul.f32 %v582, %v582
        %v631 = vmul.f32 %v583, %v583
        %v632 = vmul.f32 %v584, %v584
        %v633 = vmul.f32 %v585, %v585
        %v634 = vmul.f32 %v586, %v586
        %v635 = vmul.f32 %v587, %v587
        %v636 = vmul.f32 %v588, %v588
        %v637 = vmul.f32 %v589, %v589
        %v638 = vmul.f32 %v590, %v590
        %v639 = vmul.f32 %v591, %v591
        %v640 = vmul.f32 %v592, %v592
        %v641 = vmul.f32 %v593, %v593
        %v642 = vmul.f32 %v594, %v594
        %v643 = vmul.f32 %v595, %v595
        %v644 = vmul.f32 %v596, %v596
        %v645 = vmul.f32 %v597, %v597
        %v646 = vmul.f32 %v598, %v598
        %v647 = vmul.f32 %v599, %v599
        %v648 = vmul.f32 %v600, %v600
        %v649 = vmul.f32 %v601, %v601
        %v650 = vmul.f32 %v602, %v602
        %v651 = vmul.f32 %v603, %v603
        %v652 = vmul.f32 %v604, %v604
        %v653 = vmul.f32 %v605, %v605
        %v654 = vmul.f32 %v606, %v606
        %v655 = vmul.f32 %v607, %v607
        %v656 = vmul.f32 %v608, %v608
        %v657 = vmul.f32 %v609, %v609
        %658 = vset.pattern.permute.xlu0 1
        %659 = vperm.xlu0 %658, %v437
        %v660 = vpop.permute.xlu0 %659
        %662 = vset.pattern.permute.xlu0 1
        %663 = vperm.xlu0 %662, %v438
        %v664 = vpop.permute.xlu0 %663
        %666 = vset.pattern.permute.xlu0 1
        %667 = vperm.xlu0 %666, %v439
        %v668 = vpop.permute.xlu0 %667
        %670 = vset.pattern.permute.xlu0 1
        %671 = vperm.xlu0 %670, %v440
        %v672 = vpop.permute.xlu0 %671
        %674 = vset.pattern.permute.xlu0 1
        %675 = vperm.xlu0 %674, %v441
        %v676 = vpop.permute.xlu0 %675
        %678 = vset.pattern.permute.xlu0 1
        %679 = vperm.xlu0 %678, %v442
        %v680 = vpop.permute.xlu0 %679
        %682 = vset.pattern.permute.xlu0 1
        %683 = vperm.xlu0 %682, %v443
        %v684 = vpop.permute.xlu0 %683
        %686 = vset.pattern.permute.xlu0 1
        %687 = vperm.xlu0 %686, %v444
        %v688 = vpop.permute.xlu0 %687
        %690 = vset.pattern.permute.xlu0 1
        %691 = vperm.xlu0 %690, %v445
        %v692 = vpop.permute.xlu0 %691
        %694 = vset.pattern.permute.xlu0 1
        %695 = vperm.xlu0 %694, %v446
        %v696 = vpop.permute.xlu0 %695
        %698 = vset.pattern.permute.xlu0 1
        %699 = vperm.xlu0 %698, %v447
        %v700 = vpop.permute.xlu0 %699
        %702 = vset.pattern.permute.xlu0 1
        %703 = vperm.xlu0 %702, %v448
        %v704 = vpop.permute.xlu0 %703
        %706 = vset.pattern.permute.xlu0 1
        %707 = vperm.xlu0 %706, %v449
        %v708 = vpop.permute.xlu0 %707
        %710 = vset.pattern.permute.xlu0 1
        %711 = vperm.xlu0 %710, %v450
        %v712 = vpop.permute.xlu0 %711
        %714 = vset.pattern.permute.xlu0 1
        %715 = vperm.xlu0 %714, %v451
        %v716 = vpop.permute.xlu0 %715
        %718 = vset.pattern.permute.xlu0 1
        %719 = vperm.xlu0 %718, %v452
        %v720 = vpop.permute.xlu0 %719
        %v722 = vlaneseq
        %v723 = vshrl.u32 %v722, 7
        %v724 = vsub.s32 1, %v723
        %v725 = vrot.slane %v435, %v724
        %v726 = vlaneseq
        %v727 = vshrl.u32 %v726, 7
        %v728 = vsub.s32 5, %v727
        %v729 = vrot.slane %v435, %v728
        %v730 = vlaneseq
        %v731 = vshrl.u32 %v730, 7
        %v732 = vsub.s32 1, %v731
        %v733 = vrot.slane %v436, %v732
        %v737 = vlaneseq
        %v738 = vshrl.u32 %v737, 7
        %v739 = vsub.s32 1, %v738
        %v740 = vrot.slane %v725, %v739
        %v741 = vlaneseq
        %v742 = vshrl.u32 %v741, 7
        %v743 = vsub.s32 1, %v742
        %v744 = vrot.slane %v729, %v743
        %v745 = vlaneseq
        %v746 = vshrl.u32 %v745, 7
        %v747 = vsub.s32 1, %v746
        %v748 = vrot.slane %v733, %v747
        %v749 = vsub.f32 %v660, %v740
        %v750 = vsub.f32 %v660, %v744
        %v751 = vsub.f32 %v660, %v748
        %v752 = vsub.f32 %v664, %v740
        %v753 = vsub.f32 %v664, %v744
        %v754 = vsub.f32 %v664, %v748
        %v755 = vsub.f32 %v668, %v740
        %v756 = vsub.f32 %v668, %v744
        %v757 = vsub.f32 %v668, %v748
        %v758 = vsub.f32 %v672, %v740
        %v759 = vsub.f32 %v672, %v744
        %v760 = vsub.f32 %v672, %v748
        %v761 = vsub.f32 %v676, %v740
        %v762 = vsub.f32 %v676, %v744
        %v763 = vsub.f32 %v676, %v748
        %v764 = vsub.f32 %v680, %v740
        %v765 = vsub.f32 %v680, %v744
        %v766 = vsub.f32 %v680, %v748
        %v767 = vsub.f32 %v684, %v740
        %v768 = vsub.f32 %v684, %v744
        %v769 = vsub.f32 %v684, %v748
        %v770 = vsub.f32 %v688, %v740
        %v771 = vsub.f32 %v688, %v744
        %v772 = vsub.f32 %v688, %v748
        %v773 = vsub.f32 %v692, %v740
        %v774 = vsub.f32 %v692, %v744
        %v775 = vsub.f32 %v692, %v748
        %v776 = vsub.f32 %v696, %v740
        %v777 = vsub.f32 %v696, %v744
        %v778 = vsub.f32 %v696, %v748
        %v779 = vsub.f32 %v700, %v740
        %v780 = vsub.f32 %v700, %v744
        %v781 = vsub.f32 %v700, %v748
        %v782 = vsub.f32 %v704, %v740
        %v783 = vsub.f32 %v704, %v744
        %v784 = vsub.f32 %v704, %v748
        %v785 = vsub.f32 %v708, %v740
        %v786 = vsub.f32 %v708, %v744
        %v787 = vsub.f32 %v708, %v748
        %v788 = vsub.f32 %v712, %v740
        %v789 = vsub.f32 %v712, %v744
        %v790 = vsub.f32 %v712, %v748
        %v791 = vsub.f32 %v716, %v740
        %v792 = vsub.f32 %v716, %v744
        %v793 = vsub.f32 %v716, %v748
        %v794 = vsub.f32 %v720, %v740
        %v795 = vsub.f32 %v720, %v744
        %v796 = vsub.f32 %v720, %v748
        %v797 = vmul.f32 %v749, %v749
        %v798 = vmul.f32 %v750, %v750
        %v799 = vmul.f32 %v751, %v751
        %v800 = vmul.f32 %v752, %v752
        %v801 = vmul.f32 %v753, %v753
        %v802 = vmul.f32 %v754, %v754
        %v803 = vmul.f32 %v755, %v755
        %v804 = vmul.f32 %v756, %v756
        %v805 = vmul.f32 %v757, %v757
        %v806 = vmul.f32 %v758, %v758
        %v807 = vmul.f32 %v759, %v759
        %v808 = vmul.f32 %v760, %v760
        %v809 = vmul.f32 %v761, %v761
        %v810 = vmul.f32 %v762, %v762
        %v811 = vmul.f32 %v763, %v763
        %v812 = vmul.f32 %v764, %v764
        %v813 = vmul.f32 %v765, %v765
        %v814 = vmul.f32 %v766, %v766
        %v815 = vmul.f32 %v767, %v767
        %v816 = vmul.f32 %v768, %v768
        %v817 = vmul.f32 %v769, %v769
        %v818 = vmul.f32 %v770, %v770
        %v819 = vmul.f32 %v771, %v771
        %v820 = vmul.f32 %v772, %v772
        %v821 = vmul.f32 %v773, %v773
        %v822 = vmul.f32 %v774, %v774
        %v823 = vmul.f32 %v775, %v775
        %v824 = vmul.f32 %v776, %v776
        %v825 = vmul.f32 %v777, %v777
        %v826 = vmul.f32 %v778, %v778
        %v827 = vmul.f32 %v779, %v779
        %v828 = vmul.f32 %v780, %v780
        %v829 = vmul.f32 %v781, %v781
        %v830 = vmul.f32 %v782, %v782
        %v831 = vmul.f32 %v783, %v783
        %v832 = vmul.f32 %v784, %v784
        %v833 = vmul.f32 %v785, %v785
        %v834 = vmul.f32 %v786, %v786
        %v835 = vmul.f32 %v787, %v787
        %v836 = vmul.f32 %v788, %v788
        %v837 = vmul.f32 %v789, %v789
        %v838 = vmul.f32 %v790, %v790
        %v839 = vmul.f32 %v791, %v791
        %v840 = vmul.f32 %v792, %v792
        %v841 = vmul.f32 %v793, %v793
        %v842 = vmul.f32 %v794, %v794
        %v843 = vmul.f32 %v795, %v795
        %v844 = vmul.f32 %v796, %v796
        %v845 = vadd.f32 %v610, %v797
        %v846 = vadd.f32 %v611, %v798
        %v847 = vadd.f32 %v612, %v799
        %v848 = vadd.f32 %v613, %v800
        %v849 = vadd.f32 %v614, %v801
        %v850 = vadd.f32 %v615, %v802
        %v851 = vadd.f32 %v616, %v803
        %v852 = vadd.f32 %v617, %v804
        %v853 = vadd.f32 %v618, %v805
        %v854 = vadd.f32 %v619, %v806
        %v855 = vadd.f32 %v620, %v807
        %v856 = vadd.f32 %v621, %v808
        %v857 = vadd.f32 %v622, %v809
        %v858 = vadd.f32 %v623, %v810
        %v859 = vadd.f32 %v624, %v811
        %v860 = vadd.f32 %v625, %v812
        %v861 = vadd.f32 %v626, %v813
        %v862 = vadd.f32 %v627, %v814
        %v863 = vadd.f32 %v628, %v815
        %v864 = vadd.f32 %v629, %v816
        %v865 = vadd.f32 %v630, %v817
        %v866 = vadd.f32 %v631, %v818
        %v867 = vadd.f32 %v632, %v819
        %v868 = vadd.f32 %v633, %v820
        %v869 = vadd.f32 %v634, %v821
        %v870 = vadd.f32 %v635, %v822
        %v871 = vadd.f32 %v636, %v823
        %v872 = vadd.f32 %v637, %v824
        %v873 = vadd.f32 %v638, %v825
        %v874 = vadd.f32 %v639, %v826
        %v875 = vadd.f32 %v640, %v827
        %v876 = vadd.f32 %v641, %v828
        %v877 = vadd.f32 %v642, %v829
        %v878 = vadd.f32 %v643, %v830
        %v879 = vadd.f32 %v644, %v831
        %v880 = vadd.f32 %v645, %v832
        %v881 = vadd.f32 %v646, %v833
        %v882 = vadd.f32 %v647, %v834
        %v883 = vadd.f32 %v648, %v835
        %v884 = vadd.f32 %v649, %v836
        %v885 = vadd.f32 %v650, %v837
        %v886 = vadd.f32 %v651, %v838
        %v887 = vadd.f32 %v652, %v839
        %v888 = vadd.f32 %v653, %v840
        %v889 = vadd.f32 %v654, %v841
        %v890 = vadd.f32 %v655, %v842
        %v891 = vadd.f32 %v656, %v843
        %v892 = vadd.f32 %v657, %v844
        %893 = vset.pattern.permute.xlu0 2
        %894 = vperm.xlu0 %893, %v437
        %v895 = vpop.permute.xlu0 %894
        %897 = vset.pattern.permute.xlu0 2
        %898 = vperm.xlu0 %897, %v438
        %v899 = vpop.permute.xlu0 %898
        %901 = vset.pattern.permute.xlu0 2
        %902 = vperm.xlu0 %901, %v439
        %v903 = vpop.permute.xlu0 %902
        %905 = vset.pattern.permute.xlu0 2
        %906 = vperm.xlu0 %905, %v440
        %v907 = vpop.permute.xlu0 %906
        %909 = vset.pattern.permute.xlu0 2
        %910 = vperm.xlu0 %909, %v441
        %v911 = vpop.permute.xlu0 %910
        %913 = vset.pattern.permute.xlu0 2
        %914 = vperm.xlu0 %913, %v442
        %v915 = vpop.permute.xlu0 %914
        %917 = vset.pattern.permute.xlu0 2
        %918 = vperm.xlu0 %917, %v443
        %v919 = vpop.permute.xlu0 %918
        %921 = vset.pattern.permute.xlu0 2
        %922 = vperm.xlu0 %921, %v444
        %v923 = vpop.permute.xlu0 %922
        %925 = vset.pattern.permute.xlu0 2
        %926 = vperm.xlu0 %925, %v445
        %v927 = vpop.permute.xlu0 %926
        %929 = vset.pattern.permute.xlu0 2
        %930 = vperm.xlu0 %929, %v446
        %v931 = vpop.permute.xlu0 %930
        %933 = vset.pattern.permute.xlu0 2
        %934 = vperm.xlu0 %933, %v447
        %v935 = vpop.permute.xlu0 %934
        %937 = vset.pattern.permute.xlu0 2
        %938 = vperm.xlu0 %937, %v448
        %v939 = vpop.permute.xlu0 %938
        %941 = vset.pattern.permute.xlu0 2
        %942 = vperm.xlu0 %941, %v449
        %v943 = vpop.permute.xlu0 %942
        %945 = vset.pattern.permute.xlu0 2
        %946 = vperm.xlu0 %945, %v450
        %v947 = vpop.permute.xlu0 %946
        %949 = vset.pattern.permute.xlu0 2
        %950 = vperm.xlu0 %949, %v451
        %v951 = vpop.permute.xlu0 %950
        %953 = vset.pattern.permute.xlu0 2
        %954 = vperm.xlu0 %953, %v452
        %v955 = vpop.permute.xlu0 %954
        %v957 = vlaneseq
        %v958 = vshrl.u32 %v957, 7
        %v959 = vsub.s32 2, %v958
        %v960 = vrot.slane %v435, %v959
        %v961 = vlaneseq
        %v962 = vshrl.u32 %v961, 7
        %v963 = vsub.s32 6, %v962
        %v964 = vrot.slane %v435, %v963
        %v965 = vlaneseq
        %v966 = vshrl.u32 %v965, 7
        %v967 = vsub.s32 2, %v966
        %v968 = vrot.slane %v436, %v967
        %v972 = vlaneseq
        %v973 = vshrl.u32 %v972, 7
        %v974 = vsub.s32 2, %v973
        %v975 = vrot.slane %v960, %v974
        %v976 = vlaneseq
        %v977 = vshrl.u32 %v976, 7
        %v978 = vsub.s32 2, %v977
        %v979 = vrot.slane %v964, %v978
        %v980 = vlaneseq
        %v981 = vshrl.u32 %v980, 7
        %v982 = vsub.s32 2, %v981
        %v983 = vrot.slane %v968, %v982
        %v984 = vsub.f32 %v895, %v975
        %v985 = vsub.f32 %v895, %v979
        %v986 = vsub.f32 %v895, %v983
        %v987 = vsub.f32 %v899, %v975
        %v988 = vsub.f32 %v899, %v979
        %v989 = vsub.f32 %v899, %v983
        %v990 = vsub.f32 %v903, %v975
        %v991 = vsub.f32 %v903, %v979
        %v992 = vsub.f32 %v903, %v983
        %v993 = vsub.f32 %v907, %v975
        %v994 = vsub.f32 %v907, %v979
        %v995 = vsub.f32 %v907, %v983
        %v996 = vsub.f32 %v911, %v975
        %v997 = vsub.f32 %v911, %v979
        %v998 = vsub.f32 %v911, %v983
        %v999 = vsub.f32 %v915, %v975
        %v1000 = vsub.f32 %v915, %v979
        %v1001 = vsub.f32 %v915, %v983
        %v1002 = vsub.f32 %v919, %v975
        %v1003 = vsub.f32 %v919, %v979
        %v1004 = vsub.f32 %v919, %v983
        %v1005 = vsub.f32 %v923, %v975
        %v1006 = vsub.f32 %v923, %v979
        %v1007 = vsub.f32 %v923, %v983
        %v1008 = vsub.f32 %v927, %v975
        %v1009 = vsub.f32 %v927, %v979
        %v1010 = vsub.f32 %v927, %v983
        %v1011 = vsub.f32 %v931, %v975
        %v1012 = vsub.f32 %v931, %v979
        %v1013 = vsub.f32 %v931, %v983
        %v1014 = vsub.f32 %v935, %v975
        %v1015 = vsub.f32 %v935, %v979
        %v1016 = vsub.f32 %v935, %v983
        %v1017 = vsub.f32 %v939, %v975
        %v1018 = vsub.f32 %v939, %v979
        %v1019 = vsub.f32 %v939, %v983
        %v1020 = vsub.f32 %v943, %v975
        %v1021 = vsub.f32 %v943, %v979
        %v1022 = vsub.f32 %v943, %v983
        %v1023 = vsub.f32 %v947, %v975
        %v1024 = vsub.f32 %v947, %v979
        %v1025 = vsub.f32 %v947, %v983
        %v1026 = vsub.f32 %v951, %v975
        %v1027 = vsub.f32 %v951, %v979
        %v1028 = vsub.f32 %v951, %v983
        %v1029 = vsub.f32 %v955, %v975
        %v1030 = vsub.f32 %v955, %v979
        %v1031 = vsub.f32 %v955, %v983
        %v1032 = vmul.f32 %v984, %v984
        %v1033 = vmul.f32 %v985, %v985
        %v1034 = vmul.f32 %v986, %v986
        %v1035 = vmul.f32 %v987, %v987
        %v1036 = vmul.f32 %v988, %v988
        %v1037 = vmul.f32 %v989, %v989
        %v1038 = vmul.f32 %v990, %v990
        %v1039 = vmul.f32 %v991, %v991
        %v1040 = vmul.f32 %v992, %v992
        %v1041 = vmul.f32 %v993, %v993
        %v1042 = vmul.f32 %v994, %v994
        %v1043 = vmul.f32 %v995, %v995
        %v1044 = vmul.f32 %v996, %v996
        %v1045 = vmul.f32 %v997, %v997
        %v1046 = vmul.f32 %v998, %v998
        %v1047 = vmul.f32 %v999, %v999
        %v1048 = vmul.f32 %v1000, %v1000
        %v1049 = vmul.f32 %v1001, %v1001
        %v1050 = vmul.f32 %v1002, %v1002
        %v1051 = vmul.f32 %v1003, %v1003
        %v1052 = vmul.f32 %v1004, %v1004
        %v1053 = vmul.f32 %v1005, %v1005
        %v1054 = vmul.f32 %v1006, %v1006
        %v1055 = vmul.f32 %v1007, %v1007
        %v1056 = vmul.f32 %v1008, %v1008
        %v1057 = vmul.f32 %v1009, %v1009
        %v1058 = vmul.f32 %v1010, %v1010
        %v1059 = vmul.f32 %v1011, %v1011
        %v1060 = vmul.f32 %v1012, %v1012
        %v1061 = vmul.f32 %v1013, %v1013
        %v1062 = vmul.f32 %v1014, %v1014
        %v1063 = vmul.f32 %v1015, %v1015
        %v1064 = vmul.f32 %v1016, %v1016
        %v1065 = vmul.f32 %v1017, %v1017
        %v1066 = vmul.f32 %v1018, %v1018
        %v1067 = vmul.f32 %v1019, %v1019
        %v1068 = vmul.f32 %v1020, %v1020
        %v1069 = vmul.f32 %v1021, %v1021
        %v1070 = vmul.f32 %v1022, %v1022
        %v1071 = vmul.f32 %v1023, %v1023
        %v1072 = vmul.f32 %v1024, %v1024
        %v1073 = vmul.f32 %v1025, %v1025
        %v1074 = vmul.f32 %v1026, %v1026
        %v1075 = vmul.f32 %v1027, %v1027
        %v1076 = vmul.f32 %v1028, %v1028
        %v1077 = vmul.f32 %v1029, %v1029
        %v1078 = vmul.f32 %v1030, %v1030
        %v1079 = vmul.f32 %v1031, %v1031
        %v1080 = vadd.f32 %v845, %v1032
        %v1081 = vadd.f32 %v846, %v1033
        %v1082 = vadd.f32 %v847, %v1034
        %v1083 = vadd.f32 %v848, %v1035
        %v1084 = vadd.f32 %v849, %v1036
        %v1085 = vadd.f32 %v850, %v1037
        %v1086 = vadd.f32 %v851, %v1038
        %v1087 = vadd.f32 %v852, %v1039
        %v1088 = vadd.f32 %v853, %v1040
        %v1089 = vadd.f32 %v854, %v1041
        %v1090 = vadd.f32 %v855, %v1042
        %v1091 = vadd.f32 %v856, %v1043
        %v1092 = vadd.f32 %v857, %v1044
        %v1093 = vadd.f32 %v858, %v1045
        %v1094 = vadd.f32 %v859, %v1046
        %v1095 = vadd.f32 %v860, %v1047
        %v1096 = vadd.f32 %v861, %v1048
        %v1097 = vadd.f32 %v862, %v1049
        %v1098 = vadd.f32 %v863, %v1050
        %v1099 = vadd.f32 %v864, %v1051
        %v1100 = vadd.f32 %v865, %v1052
        %v1101 = vadd.f32 %v866, %v1053
        %v1102 = vadd.f32 %v867, %v1054
        %v1103 = vadd.f32 %v868, %v1055
        %v1104 = vadd.f32 %v869, %v1056
        %v1105 = vadd.f32 %v870, %v1057
        %v1106 = vadd.f32 %v871, %v1058
        %v1107 = vadd.f32 %v872, %v1059
        %v1108 = vadd.f32 %v873, %v1060
        %v1109 = vadd.f32 %v874, %v1061
        %v1110 = vadd.f32 %v875, %v1062
        %v1111 = vadd.f32 %v876, %v1063
        %v1112 = vadd.f32 %v877, %v1064
        %v1113 = vadd.f32 %v878, %v1065
        %v1114 = vadd.f32 %v879, %v1066
        %v1115 = vadd.f32 %v880, %v1067
        %v1116 = vadd.f32 %v881, %v1068
        %v1117 = vadd.f32 %v882, %v1069
        %v1118 = vadd.f32 %v883, %v1070
        %v1119 = vadd.f32 %v884, %v1071
        %v1120 = vadd.f32 %v885, %v1072
        %v1121 = vadd.f32 %v886, %v1073
        %v1122 = vadd.f32 %v887, %v1074
        %v1123 = vadd.f32 %v888, %v1075
        %v1124 = vadd.f32 %v889, %v1076
        %v1125 = vadd.f32 %v890, %v1077
        %v1126 = vadd.f32 %v891, %v1078
        %v1127 = vadd.f32 %v892, %v1079
        %v1128 = vlaneseq
        %v1129 = vshrl.u32 %v1128, 7
        %v1130 = vadd.s32 %v1129, 8
        %v1131 = vadd.s32 %v1129, 16
        %v1132 = vadd.s32 %v1129, 24
        %v1133 = vadd.s32 %v1129, 32
        %v1134 = vadd.s32 %v1129, 40
        %v1135 = vadd.s32 %v1129, 48
        %v1136 = vadd.s32 %v1129, 56
        %v1137 = vadd.s32 %v1129, 64
        %v1138 = vadd.s32 %v1129, 72
        %v1139 = vadd.s32 %v1129, 80
        %v1140 = vadd.s32 %v1129, 88
        %v1141 = vadd.s32 %v1129, 96
        %v1142 = vadd.s32 %v1129, 104
        %v1143 = vadd.s32 %v1129, 112
        %v1144 = vadd.s32 %v1129, 120
        %v1145 = vmin.f32 %v1080, %v1086
        %v1146 = vmin.f32 %v1083, %v1089
        %v1147 = vmin.f32 %v1145, %v1092
        %v1148 = vmin.f32 %v1146, %v1095
        %v1149 = vmin.f32 %v1147, %v1098
        %v1150 = vmin.f32 %v1148, %v1101
        %v1151 = vmin.f32 %v1149, %v1104
        %v1152 = vmin.f32 %v1150, %v1107
        %v1153 = vmin.f32 %v1151, %v1110
        %v1154 = vmin.f32 %v1152, %v1113
        %v1155 = vmin.f32 %v1153, %v1116
        %v1156 = vmin.f32 %v1154, %v1119
        %v1157 = vmin.f32 %v1155, %v1122
        %v1158 = vmin.f32 %v1156, %v1125
        %v1159 = vmin.f32 %v1157, %v1158
        %v1160 = vrot.slane %v1159, 4
        %v1161 = vmin.f32 %v1159, %v1160
        %v1162 = vrot.slane %v1161, 2
        %v1163 = vmin.f32 %v1161, %v1162
        %v1164 = vrot.slane %v1163, 1
        %v1165 = vmin.f32 %v1163, %v1164
        %v1166 = vmin.f32 %v1081, %v1087
        %v1167 = vmin.f32 %v1084, %v1090
        %v1168 = vmin.f32 %v1166, %v1093
        %v1169 = vmin.f32 %v1167, %v1096
        %v1170 = vmin.f32 %v1168, %v1099
        %v1171 = vmin.f32 %v1169, %v1102
        %v1172 = vmin.f32 %v1170, %v1105
        %v1173 = vmin.f32 %v1171, %v1108
        %v1174 = vmin.f32 %v1172, %v1111
        %v1175 = vmin.f32 %v1173, %v1114
        %v1176 = vmin.f32 %v1174, %v1117
        %v1177 = vmin.f32 %v1175, %v1120
        %v1178 = vmin.f32 %v1176, %v1123
        %v1179 = vmin.f32 %v1177, %v1126
        %v1180 = vmin.f32 %v1178, %v1179
        %v1181 = vrot.slane %v1180, 4
        %v1182 = vmin.f32 %v1180, %v1181
        %v1183 = vrot.slane %v1182, 2
        %v1184 = vmin.f32 %v1182, %v1183
        %v1185 = vrot.slane %v1184, 1
        %v1186 = vmin.f32 %v1184, %v1185
        %v1187 = vmin.f32 %v1082, %v1088
        %v1188 = vmin.f32 %v1085, %v1091
        %v1189 = vmin.f32 %v1187, %v1094
        %v1190 = vmin.f32 %v1188, %v1097
        %v1191 = vmin.f32 %v1189, %v1100
        %v1192 = vmin.f32 %v1190, %v1103
        %v1193 = vmin.f32 %v1191, %v1106
        %v1194 = vmin.f32 %v1192, %v1109
        %v1195 = vmin.f32 %v1193, %v1112
        %v1196 = vmin.f32 %v1194, %v1115
        %v1197 = vmin.f32 %v1195, %v1118
        %v1198 = vmin.f32 %v1196, %v1121
        %v1199 = vmin.f32 %v1197, %v1124
        %v1200 = vmin.f32 %v1198, %v1127
        %v1201 = vmin.f32 %v1199, %v1200
        %v1202 = vrot.slane %v1201, 4
        %v1203 = vmin.f32 %v1201, %v1202
        %v1204 = vrot.slane %v1203, 2
        %v1205 = vmin.f32 %v1203, %v1204
        %v1206 = vrot.slane %v1205, 1
        %v1207 = vmin.f32 %v1205, %v1206
        %vm1208 = vcmp.eq.f32.partialorder %v1080, %v1165
        %vm1209 = vcmp.eq.f32.partialorder %v1081, %v1186
        %vm1210 = vcmp.eq.f32.partialorder %v1082, %v1207
        %vm1211 = vcmp.eq.f32.partialorder %v1083, %v1165
        %vm1212 = vcmp.eq.f32.partialorder %v1084, %v1186
        %vm1213 = vcmp.eq.f32.partialorder %v1085, %v1207
        %vm1214 = vcmp.eq.f32.partialorder %v1086, %v1165
        %vm1215 = vcmp.eq.f32.partialorder %v1087, %v1186
        %vm1216 = vcmp.eq.f32.partialorder %v1088, %v1207
        %vm1217 = vcmp.eq.f32.partialorder %v1089, %v1165
        %vm1218 = vcmp.eq.f32.partialorder %v1090, %v1186
        %vm1219 = vcmp.eq.f32.partialorder %v1091, %v1207
        %vm1220 = vcmp.eq.f32.partialorder %v1092, %v1165
        %vm1221 = vcmp.eq.f32.partialorder %v1093, %v1186
        %vm1222 = vcmp.eq.f32.partialorder %v1094, %v1207
        %vm1223 = vcmp.eq.f32.partialorder %v1095, %v1165
        %vm1224 = vcmp.eq.f32.partialorder %v1096, %v1186
        %vm1225 = vcmp.eq.f32.partialorder %v1097, %v1207
        %vm1226 = vcmp.eq.f32.partialorder %v1098, %v1165
        %vm1227 = vcmp.eq.f32.partialorder %v1099, %v1186
        %vm1228 = vcmp.eq.f32.partialorder %v1100, %v1207
        %vm1229 = vcmp.eq.f32.partialorder %v1101, %v1165
        %vm1230 = vcmp.eq.f32.partialorder %v1102, %v1186
        %vm1231 = vcmp.eq.f32.partialorder %v1103, %v1207
        %vm1232 = vcmp.eq.f32.partialorder %v1104, %v1165
        %vm1233 = vcmp.eq.f32.partialorder %v1105, %v1186
        %vm1234 = vcmp.eq.f32.partialorder %v1106, %v1207
        %vm1235 = vcmp.eq.f32.partialorder %v1107, %v1165
        %vm1236 = vcmp.eq.f32.partialorder %v1108, %v1186
        %vm1237 = vcmp.eq.f32.partialorder %v1109, %v1207
        %vm1238 = vcmp.eq.f32.partialorder %v1110, %v1165
        %vm1239 = vcmp.eq.f32.partialorder %v1111, %v1186
        %vm1240 = vcmp.eq.f32.partialorder %v1112, %v1207
        %vm1241 = vcmp.eq.f32.partialorder %v1113, %v1165
        %vm1242 = vcmp.eq.f32.partialorder %v1114, %v1186
        %vm1243 = vcmp.eq.f32.partialorder %v1115, %v1207
        %vm1244 = vcmp.eq.f32.partialorder %v1116, %v1165
        %vm1245 = vcmp.eq.f32.partialorder %v1117, %v1186
        %vm1246 = vcmp.eq.f32.partialorder %v1118, %v1207
        %vm1247 = vcmp.eq.f32.partialorder %v1119, %v1165
        %vm1248 = vcmp.eq.f32.partialorder %v1120, %v1186
        %vm1249 = vcmp.eq.f32.partialorder %v1121, %v1207
        %vm1250 = vcmp.eq.f32.partialorder %v1122, %v1165
        %vm1251 = vcmp.eq.f32.partialorder %v1123, %v1186
        %vm1252 = vcmp.eq.f32.partialorder %v1124, %v1207
        %vm1253 = vcmp.eq.f32.partialorder %v1125, %v1165
        %vm1254 = vcmp.eq.f32.partialorder %v1126, %v1186
        %vm1255 = vcmp.eq.f32.partialorder %v1127, %v1207
        %v1256 = vsel %vm1208, %v1129, 128
        %v1257 = vsel %vm1209, %v1129, 128
        %v1258 = vsel %vm1210, %v1129, 128
        %v1259 = vsel %vm1211, %v1130, 128
        %v1260 = vsel %vm1212, %v1130, 128
        %v1261 = vsel %vm1213, %v1130, 128
        %v1262 = vsel %vm1214, %v1131, 128
        %v1263 = vsel %vm1215, %v1131, 128
        %v1264 = vsel %vm1216, %v1131, 128
        %v1265 = vsel %vm1217, %v1132, 128
        %v1266 = vsel %vm1218, %v1132, 128
        %v1267 = vsel %vm1219, %v1132, 128
        %v1268 = vsel %vm1220, %v1133, 128
        %v1269 = vsel %vm1221, %v1133, 128
        %v1270 = vsel %vm1222, %v1133, 128
        %v1271 = vsel %vm1223, %v1134, 128
        %v1272 = vsel %vm1224, %v1134, 128
        %v1273 = vsel %vm1225, %v1134, 128
        %v1274 = vsel %vm1226, %v1135, 128
        %v1275 = vsel %vm1227, %v1135, 128
        %v1276 = vsel %vm1228, %v1135, 128
        %v1277 = vsel %vm1229, %v1136, 128
        %v1278 = vsel %vm1230, %v1136, 128
        %v1279 = vsel %vm1231, %v1136, 128
        %v1280 = vsel %vm1232, %v1137, 128
        %v1281 = vsel %vm1233, %v1137, 128
        %v1282 = vsel %vm1234, %v1137, 128
        %v1283 = vsel %vm1235, %v1138, 128
        %v1284 = vsel %vm1236, %v1138, 128
        %v1285 = vsel %vm1237, %v1138, 128
        %v1286 = vsel %vm1238, %v1139, 128
        %v1287 = vsel %vm1239, %v1139, 128
        %v1288 = vsel %vm1240, %v1139, 128
        %v1289 = vsel %vm1241, %v1140, 128
        %v1290 = vsel %vm1242, %v1140, 128
        %v1291 = vsel %vm1243, %v1140, 128
        %v1292 = vsel %vm1244, %v1141, 128
        %v1293 = vsel %vm1245, %v1141, 128
        %v1294 = vsel %vm1246, %v1141, 128
        %v1295 = vsel %vm1247, %v1142, 128
        %v1296 = vsel %vm1248, %v1142, 128
        %v1297 = vsel %vm1249, %v1142, 128
        %v1298 = vsel %vm1250, %v1143, 128
        %v1299 = vsel %vm1251, %v1143, 128
        %v1300 = vsel %vm1252, %v1143, 128
        %v1301 = vsel %vm1253, %v1144, 128
        %v1302 = vsel %vm1254, %v1144, 128
        %v1303 = vsel %vm1255, %v1144, 128
        %vm1304 = vcmp.lt.s32.totalorder %v1256, %v1262
        %v1305 = vsel %vm1304, %v1256, %v1262
        %vm1306 = vcmp.lt.s32.totalorder %v1259, %v1265
        %v1307 = vsel %vm1306, %v1259, %v1265
        %vm1308 = vcmp.lt.s32.totalorder %v1305, %v1268
        %v1309 = vsel %vm1308, %v1305, %v1268
        %vm1310 = vcmp.lt.s32.totalorder %v1307, %v1271
        %v1311 = vsel %vm1310, %v1307, %v1271
        %vm1312 = vcmp.lt.s32.totalorder %v1309, %v1274
        %v1313 = vsel %vm1312, %v1309, %v1274
        %vm1314 = vcmp.lt.s32.totalorder %v1311, %v1277
        %v1315 = vsel %vm1314, %v1311, %v1277
        %vm1316 = vcmp.lt.s32.totalorder %v1313, %v1280
        %v1317 = vsel %vm1316, %v1313, %v1280
        %vm1318 = vcmp.lt.s32.totalorder %v1315, %v1283
        %v1319 = vsel %vm1318, %v1315, %v1283
        %vm1320 = vcmp.lt.s32.totalorder %v1317, %v1286
        %v1321 = vsel %vm1320, %v1317, %v1286
        %vm1322 = vcmp.lt.s32.totalorder %v1319, %v1289
        %v1323 = vsel %vm1322, %v1319, %v1289
        %vm1324 = vcmp.lt.s32.totalorder %v1321, %v1292
        %v1325 = vsel %vm1324, %v1321, %v1292
        %vm1326 = vcmp.lt.s32.totalorder %v1323, %v1295
        %v1327 = vsel %vm1326, %v1323, %v1295
        %vm1328 = vcmp.lt.s32.totalorder %v1325, %v1298
        %v1329 = vsel %vm1328, %v1325, %v1298
        %vm1330 = vcmp.lt.s32.totalorder %v1327, %v1301
        %v1331 = vsel %vm1330, %v1327, %v1301
        %vm1332 = vcmp.lt.s32.totalorder %v1329, %v1331
        %v1333 = vsel %vm1332, %v1329, %v1331
        %v1334 = vrot.slane %v1333, 4
        %vm1335 = vcmp.lt.s32.totalorder %v1333, %v1334
        %v1336 = vsel %vm1335, %v1333, %v1334
        %v1337 = vrot.slane %v1336, 2
        %vm1338 = vcmp.lt.s32.totalorder %v1336, %v1337
        %v1339 = vsel %vm1338, %v1336, %v1337
        %v1340 = vrot.slane %v1339, 1
        %vm1341 = vcmp.lt.s32.totalorder %v1339, %v1340
        %v1342 = vsel %vm1341, %v1339, %v1340
        %vm1343 = vcmp.lt.s32.totalorder %v1257, %v1263
        %v1344 = vsel %vm1343, %v1257, %v1263
        %vm1345 = vcmp.lt.s32.totalorder %v1260, %v1266
        %v1346 = vsel %vm1345, %v1260, %v1266
        %vm1347 = vcmp.lt.s32.totalorder %v1344, %v1269
        %v1348 = vsel %vm1347, %v1344, %v1269
        %vm1349 = vcmp.lt.s32.totalorder %v1346, %v1272
        %v1350 = vsel %vm1349, %v1346, %v1272
        %vm1351 = vcmp.lt.s32.totalorder %v1348, %v1275
        %v1352 = vsel %vm1351, %v1348, %v1275
        %vm1353 = vcmp.lt.s32.totalorder %v1350, %v1278
        %v1354 = vsel %vm1353, %v1350, %v1278
        %vm1355 = vcmp.lt.s32.totalorder %v1352, %v1281
        %v1356 = vsel %vm1355, %v1352, %v1281
        %vm1357 = vcmp.lt.s32.totalorder %v1354, %v1284
        %v1358 = vsel %vm1357, %v1354, %v1284
        %vm1359 = vcmp.lt.s32.totalorder %v1356, %v1287
        %v1360 = vsel %vm1359, %v1356, %v1287
        %vm1361 = vcmp.lt.s32.totalorder %v1358, %v1290
        %v1362 = vsel %vm1361, %v1358, %v1290
        %vm1363 = vcmp.lt.s32.totalorder %v1360, %v1293
        %v1364 = vsel %vm1363, %v1360, %v1293
        %vm1365 = vcmp.lt.s32.totalorder %v1362, %v1296
        %v1366 = vsel %vm1365, %v1362, %v1296
        %vm1367 = vcmp.lt.s32.totalorder %v1364, %v1299
        %v1368 = vsel %vm1367, %v1364, %v1299
        %vm1369 = vcmp.lt.s32.totalorder %v1366, %v1302
        %v1370 = vsel %vm1369, %v1366, %v1302
        %vm1371 = vcmp.lt.s32.totalorder %v1368, %v1370
        %v1372 = vsel %vm1371, %v1368, %v1370
        %v1373 = vrot.slane %v1372, 4
        %vm1374 = vcmp.lt.s32.totalorder %v1372, %v1373
        %v1375 = vsel %vm1374, %v1372, %v1373
        %v1376 = vrot.slane %v1375, 2
        %vm1377 = vcmp.lt.s32.totalorder %v1375, %v1376
        %v1378 = vsel %vm1377, %v1375, %v1376
        %v1379 = vrot.slane %v1378, 1
        %vm1380 = vcmp.lt.s32.totalorder %v1378, %v1379
        %v1381 = vsel %vm1380, %v1378, %v1379
        %vm1382 = vcmp.lt.s32.totalorder %v1258, %v1264
        %v1383 = vsel %vm1382, %v1258, %v1264
        %vm1384 = vcmp.lt.s32.totalorder %v1261, %v1267
        %v1385 = vsel %vm1384, %v1261, %v1267
        %vm1386 = vcmp.lt.s32.totalorder %v1383, %v1270
        %v1387 = vsel %vm1386, %v1383, %v1270
        %vm1388 = vcmp.lt.s32.totalorder %v1385, %v1273
        %v1389 = vsel %vm1388, %v1385, %v1273
        %vm1390 = vcmp.lt.s32.totalorder %v1387, %v1276
        %v1391 = vsel %vm1390, %v1387, %v1276
        %vm1392 = vcmp.lt.s32.totalorder %v1389, %v1279
        %v1393 = vsel %vm1392, %v1389, %v1279
        %vm1394 = vcmp.lt.s32.totalorder %v1391, %v1282
        %v1395 = vsel %vm1394, %v1391, %v1282
        %vm1396 = vcmp.lt.s32.totalorder %v1393, %v1285
        %v1397 = vsel %vm1396, %v1393, %v1285
        %vm1398 = vcmp.lt.s32.totalorder %v1395, %v1288
        %v1399 = vsel %vm1398, %v1395, %v1288
        %vm1400 = vcmp.lt.s32.totalorder %v1397, %v1291
        %v1401 = vsel %vm1400, %v1397, %v1291
        %vm1402 = vcmp.lt.s32.totalorder %v1399, %v1294
        %v1403 = vsel %vm1402, %v1399, %v1294
        %vm1404 = vcmp.lt.s32.totalorder %v1401, %v1297
        %v1405 = vsel %vm1404, %v1401, %v1297
        %vm1406 = vcmp.lt.s32.totalorder %v1403, %v1300
        %v1407 = vsel %vm1406, %v1403, %v1300
        %vm1408 = vcmp.lt.s32.totalorder %v1405, %v1303
        %v1409 = vsel %vm1408, %v1405, %v1303
        %vm1410 = vcmp.lt.s32.totalorder %v1407, %v1409
        %v1411 = vsel %vm1410, %v1407, %v1409
        %v1412 = vrot.slane %v1411, 4
        %vm1413 = vcmp.lt.s32.totalorder %v1411, %v1412
        %v1414 = vsel %vm1413, %v1411, %v1412
        %v1415 = vrot.slane %v1414, 2
        %vm1416 = vcmp.lt.s32.totalorder %v1414, %v1415
        %v1417 = vsel %vm1416, %v1414, %v1415
        %v1418 = vrot.slane %v1417, 1
        %vm1419 = vcmp.lt.s32.totalorder %v1417, %v1418
        %v1420 = vsel %vm1419, %v1417, %v1418
        %vm1421 = vcmp.eq.s32.totalorder %v1129, %v1342
        %vm1422 = vcmp.eq.s32.totalorder %v1129, %v1381
        %vm1423 = vcmp.eq.s32.totalorder %v1129, %v1420
        %vm1424 = vcmp.eq.s32.totalorder %v1130, %v1342
        %vm1425 = vcmp.eq.s32.totalorder %v1130, %v1381
        %vm1426 = vcmp.eq.s32.totalorder %v1130, %v1420
        %vm1427 = vcmp.eq.s32.totalorder %v1131, %v1342
        %vm1428 = vcmp.eq.s32.totalorder %v1131, %v1381
        %vm1429 = vcmp.eq.s32.totalorder %v1131, %v1420
        %vm1430 = vcmp.eq.s32.totalorder %v1132, %v1342
        %vm1431 = vcmp.eq.s32.totalorder %v1132, %v1381
        %vm1432 = vcmp.eq.s32.totalorder %v1132, %v1420
        %vm1433 = vcmp.eq.s32.totalorder %v1133, %v1342
        %vm1434 = vcmp.eq.s32.totalorder %v1133, %v1381
        %vm1435 = vcmp.eq.s32.totalorder %v1133, %v1420
        %vm1436 = vcmp.eq.s32.totalorder %v1134, %v1342
        %vm1437 = vcmp.eq.s32.totalorder %v1134, %v1381
        %vm1438 = vcmp.eq.s32.totalorder %v1134, %v1420
        %vm1439 = vcmp.eq.s32.totalorder %v1135, %v1342
        %vm1440 = vcmp.eq.s32.totalorder %v1135, %v1381
        %vm1441 = vcmp.eq.s32.totalorder %v1135, %v1420
        %vm1442 = vcmp.eq.s32.totalorder %v1136, %v1342
        %vm1443 = vcmp.eq.s32.totalorder %v1136, %v1381
        %vm1444 = vcmp.eq.s32.totalorder %v1136, %v1420
        %vm1445 = vcmp.eq.s32.totalorder %v1137, %v1342
        %vm1446 = vcmp.eq.s32.totalorder %v1137, %v1381
        %vm1447 = vcmp.eq.s32.totalorder %v1137, %v1420
        %vm1448 = vcmp.eq.s32.totalorder %v1138, %v1342
        %vm1449 = vcmp.eq.s32.totalorder %v1138, %v1381
        %vm1450 = vcmp.eq.s32.totalorder %v1138, %v1420
        %vm1451 = vcmp.eq.s32.totalorder %v1139, %v1342
        %vm1452 = vcmp.eq.s32.totalorder %v1139, %v1381
        %vm1453 = vcmp.eq.s32.totalorder %v1139, %v1420
        %vm1454 = vcmp.eq.s32.totalorder %v1140, %v1342
        %vm1455 = vcmp.eq.s32.totalorder %v1140, %v1381
        %vm1456 = vcmp.eq.s32.totalorder %v1140, %v1420
        %vm1457 = vcmp.eq.s32.totalorder %v1141, %v1342
        %vm1458 = vcmp.eq.s32.totalorder %v1141, %v1381
        %vm1459 = vcmp.eq.s32.totalorder %v1141, %v1420
        %vm1460 = vcmp.eq.s32.totalorder %v1142, %v1342
        %vm1461 = vcmp.eq.s32.totalorder %v1142, %v1381
        %vm1462 = vcmp.eq.s32.totalorder %v1142, %v1420
        %vm1463 = vcmp.eq.s32.totalorder %v1143, %v1342
        %vm1464 = vcmp.eq.s32.totalorder %v1143, %v1381
        %vm1465 = vcmp.eq.s32.totalorder %v1143, %v1420
        %vm1466 = vcmp.eq.s32.totalorder %v1144, %v1342
        %vm1467 = vcmp.eq.s32.totalorder %v1144, %v1381
        %vm1468 = vcmp.eq.s32.totalorder %v1144, %v1420
        %v1469 = vadd.f32 %v1165, 1e-08
        %v1470 = vadd.f32 %v1186, 1e-08
        %v1471 = vadd.f32 %v1207, 1e-08
        %v1472 = vrcp.pop %v1469
        %v1473 = vmul.f32 1.0, %v1472
        %v1474 = vrcp.pop %v1470
        %v1475 = vmul.f32 1.0, %v1474
        %v1476 = vrcp.pop %v1471
        %v1477 = vmul.f32 1.0, %v1476
        %v1478 = vadd.f32 %v1473, 0.0
        %v1479 = vadd.f32 %v1475, 0.0
        %v1480 = vadd.f32 %v1477, 0.0
        %v1481 = vsel %vm1421, %v1473, 0.0
        %v1482 = vsel %vm1422, %v1475, 0.0
        %v1483 = vsel %vm1423, %v1477, 0.0
        %v1484 = vsel %vm1424, %v1473, 0.0
        %v1485 = vsel %vm1425, %v1475, 0.0
        %v1486 = vsel %vm1426, %v1477, 0.0
        %v1487 = vsel %vm1427, %v1473, 0.0
        %v1488 = vsel %vm1428, %v1475, 0.0
        %v1489 = vsel %vm1429, %v1477, 0.0
        %v1490 = vsel %vm1430, %v1473, 0.0
        %v1491 = vsel %vm1431, %v1475, 0.0
        %v1492 = vsel %vm1432, %v1477, 0.0
        %v1493 = vsel %vm1433, %v1473, 0.0
        %v1494 = vsel %vm1434, %v1475, 0.0
        %v1495 = vsel %vm1435, %v1477, 0.0
        %v1496 = vsel %vm1436, %v1473, 0.0
        %v1497 = vsel %vm1437, %v1475, 0.0
        %v1498 = vsel %vm1438, %v1477, 0.0
        %v1499 = vsel %vm1439, %v1473, 0.0
        %v1500 = vsel %vm1440, %v1475, 0.0
        %v1501 = vsel %vm1441, %v1477, 0.0
        %v1502 = vsel %vm1442, %v1473, 0.0
        %v1503 = vsel %vm1443, %v1475, 0.0
        %v1504 = vsel %vm1444, %v1477, 0.0
        %v1505 = vsel %vm1445, %v1473, 0.0
        %v1506 = vsel %vm1446, %v1475, 0.0
        %v1507 = vsel %vm1447, %v1477, 0.0
        %v1508 = vsel %vm1448, %v1473, 0.0
        %v1509 = vsel %vm1449, %v1475, 0.0
        %v1510 = vsel %vm1450, %v1477, 0.0
        %v1511 = vsel %vm1451, %v1473, 0.0
        %v1512 = vsel %vm1452, %v1475, 0.0
        %v1513 = vsel %vm1453, %v1477, 0.0
        %v1514 = vsel %vm1454, %v1473, 0.0
        %v1515 = vsel %vm1455, %v1475, 0.0
        %v1516 = vsel %vm1456, %v1477, 0.0
        %v1517 = vsel %vm1457, %v1473, 0.0
        %v1518 = vsel %vm1458, %v1475, 0.0
        %v1519 = vsel %vm1459, %v1477, 0.0
        %v1520 = vsel %vm1460, %v1473, 0.0
        %v1521 = vsel %vm1461, %v1475, 0.0
        %v1522 = vsel %vm1462, %v1477, 0.0
        %v1523 = vsel %vm1463, %v1473, 0.0
        %v1524 = vsel %vm1464, %v1475, 0.0
        %v1525 = vsel %vm1465, %v1477, 0.0
        %v1526 = vsel %vm1466, %v1473, 0.0
        %v1527 = vsel %vm1467, %v1475, 0.0
        %v1528 = vsel %vm1468, %v1477, 0.0
        %v1529 = vadd.f32 %v1481, 0.0
        %v1530 = vadd.f32 %v1482, 0.0
        %v1531 = vadd.f32 %v1483, 0.0
        %v1532 = vadd.f32 %v1484, 0.0
        %v1533 = vadd.f32 %v1485, 0.0
        %v1534 = vadd.f32 %v1486, 0.0
        %v1535 = vadd.f32 %v1487, 0.0
        %v1536 = vadd.f32 %v1488, 0.0
        %v1537 = vadd.f32 %v1489, 0.0
        %v1538 = vadd.f32 %v1490, 0.0
        %v1539 = vadd.f32 %v1491, 0.0
        %v1540 = vadd.f32 %v1492, 0.0
        %v1541 = vadd.f32 %v1493, 0.0
        %v1542 = vadd.f32 %v1494, 0.0
        %v1543 = vadd.f32 %v1495, 0.0
        %v1544 = vadd.f32 %v1496, 0.0
        %v1545 = vadd.f32 %v1497, 0.0
        %v1546 = vadd.f32 %v1498, 0.0
        %v1547 = vadd.f32 %v1499, 0.0
        %v1548 = vadd.f32 %v1500, 0.0
        %v1549 = vadd.f32 %v1501, 0.0
        %v1550 = vadd.f32 %v1502, 0.0
        %v1551 = vadd.f32 %v1503, 0.0
        %v1552 = vadd.f32 %v1504, 0.0
        %v1553 = vadd.f32 %v1505, 0.0
        %v1554 = vadd.f32 %v1506, 0.0
        %v1555 = vadd.f32 %v1507, 0.0
        %v1556 = vadd.f32 %v1508, 0.0
        %v1557 = vadd.f32 %v1509, 0.0
        %v1558 = vadd.f32 %v1510, 0.0
        %v1559 = vadd.f32 %v1511, 0.0
        %v1560 = vadd.f32 %v1512, 0.0
        %v1561 = vadd.f32 %v1513, 0.0
        %v1562 = vadd.f32 %v1514, 0.0
        %v1563 = vadd.f32 %v1515, 0.0
        %v1564 = vadd.f32 %v1516, 0.0
        %v1565 = vadd.f32 %v1517, 0.0
        %v1566 = vadd.f32 %v1518, 0.0
        %v1567 = vadd.f32 %v1519, 0.0
        %v1568 = vadd.f32 %v1520, 0.0
        %v1569 = vadd.f32 %v1521, 0.0
        %v1570 = vadd.f32 %v1522, 0.0
        %v1571 = vadd.f32 %v1523, 0.0
        %v1572 = vadd.f32 %v1524, 0.0
        %v1573 = vadd.f32 %v1525, 0.0
        %v1574 = vadd.f32 %v1526, 0.0
        %v1575 = vadd.f32 %v1527, 0.0
        %v1576 = vadd.f32 %v1528, 0.0
        %v1577 = vsel %vm1421, 1e+30, %v1080
        %v1578 = vsel %vm1422, 1e+30, %v1081
        %v1579 = vsel %vm1423, 1e+30, %v1082
        %v1580 = vsel %vm1424, 1e+30, %v1083
        %v1581 = vsel %vm1425, 1e+30, %v1084
        %v1582 = vsel %vm1426, 1e+30, %v1085
        %v1583 = vsel %vm1427, 1e+30, %v1086
        %v1584 = vsel %vm1428, 1e+30, %v1087
        %v1585 = vsel %vm1429, 1e+30, %v1088
        %v1586 = vsel %vm1430, 1e+30, %v1089
        %v1587 = vsel %vm1431, 1e+30, %v1090
        %v1588 = vsel %vm1432, 1e+30, %v1091
        %v1589 = vsel %vm1433, 1e+30, %v1092
        %v1590 = vsel %vm1434, 1e+30, %v1093
        %v1591 = vsel %vm1435, 1e+30, %v1094
        %v1592 = vsel %vm1436, 1e+30, %v1095
        %v1593 = vsel %vm1437, 1e+30, %v1096
        %v1594 = vsel %vm1438, 1e+30, %v1097
        %v1595 = vsel %vm1439, 1e+30, %v1098
        %v1596 = vsel %vm1440, 1e+30, %v1099
        %v1597 = vsel %vm1441, 1e+30, %v1100
        %v1598 = vsel %vm1442, 1e+30, %v1101
        %v1599 = vsel %vm1443, 1e+30, %v1102
        %v1600 = vsel %vm1444, 1e+30, %v1103
        %v1601 = vsel %vm1445, 1e+30, %v1104
        %v1602 = vsel %vm1446, 1e+30, %v1105
        %v1603 = vsel %vm1447, 1e+30, %v1106
        %v1604 = vsel %vm1448, 1e+30, %v1107
        %v1605 = vsel %vm1449, 1e+30, %v1108
        %v1606 = vsel %vm1450, 1e+30, %v1109
        %v1607 = vsel %vm1451, 1e+30, %v1110
        %v1608 = vsel %vm1452, 1e+30, %v1111
        %v1609 = vsel %vm1453, 1e+30, %v1112
        %v1610 = vsel %vm1454, 1e+30, %v1113
        %v1611 = vsel %vm1455, 1e+30, %v1114
        %v1612 = vsel %vm1456, 1e+30, %v1115
        %v1613 = vsel %vm1457, 1e+30, %v1116
        %v1614 = vsel %vm1458, 1e+30, %v1117
        %v1615 = vsel %vm1459, 1e+30, %v1118
        %v1616 = vsel %vm1460, 1e+30, %v1119
        %v1617 = vsel %vm1461, 1e+30, %v1120
        %v1618 = vsel %vm1462, 1e+30, %v1121
        %v1619 = vsel %vm1463, 1e+30, %v1122
        %v1620 = vsel %vm1464, 1e+30, %v1123
        %v1621 = vsel %vm1465, 1e+30, %v1124
        %v1622 = vsel %vm1466, 1e+30, %v1125
        %v1623 = vsel %vm1467, 1e+30, %v1126
        %v1624 = vsel %vm1468, 1e+30, %v1127
        %v1625 = vmin.f32 %v1577, %v1583
        %v1626 = vmin.f32 %v1580, %v1586
        %v1627 = vmin.f32 %v1625, %v1589
        %v1628 = vmin.f32 %v1626, %v1592
        %v1629 = vmin.f32 %v1627, %v1595
        %v1630 = vmin.f32 %v1628, %v1598
        %v1631 = vmin.f32 %v1629, %v1601
        %v1632 = vmin.f32 %v1630, %v1604
        %v1633 = vmin.f32 %v1631, %v1607
        %v1634 = vmin.f32 %v1632, %v1610
        %v1635 = vmin.f32 %v1633, %v1613
        %v1636 = vmin.f32 %v1634, %v1616
        %v1637 = vmin.f32 %v1635, %v1619
        %v1638 = vmin.f32 %v1636, %v1622
        %v1639 = vmin.f32 %v1637, %v1638
        %v1640 = vrot.slane %v1639, 4
        %v1641 = vmin.f32 %v1639, %v1640
        %v1642 = vrot.slane %v1641, 2
        %v1643 = vmin.f32 %v1641, %v1642
        %v1644 = vrot.slane %v1643, 1
        %v1645 = vmin.f32 %v1643, %v1644
        %v1646 = vmin.f32 %v1578, %v1584
        %v1647 = vmin.f32 %v1581, %v1587
        %v1648 = vmin.f32 %v1646, %v1590
        %v1649 = vmin.f32 %v1647, %v1593
        %v1650 = vmin.f32 %v1648, %v1596
        %v1651 = vmin.f32 %v1649, %v1599
        %v1652 = vmin.f32 %v1650, %v1602
        %v1653 = vmin.f32 %v1651, %v1605
        %v1654 = vmin.f32 %v1652, %v1608
        %v1655 = vmin.f32 %v1653, %v1611
        %v1656 = vmin.f32 %v1654, %v1614
        %v1657 = vmin.f32 %v1655, %v1617
        %v1658 = vmin.f32 %v1656, %v1620
        %v1659 = vmin.f32 %v1657, %v1623
        %v1660 = vmin.f32 %v1658, %v1659
        %v1661 = vrot.slane %v1660, 4
        %v1662 = vmin.f32 %v1660, %v1661
        %v1663 = vrot.slane %v1662, 2
        %v1664 = vmin.f32 %v1662, %v1663
        %v1665 = vrot.slane %v1664, 1
        %v1666 = vmin.f32 %v1664, %v1665
        %v1667 = vmin.f32 %v1579, %v1585
        %v1668 = vmin.f32 %v1582, %v1588
        %v1669 = vmin.f32 %v1667, %v1591
        %v1670 = vmin.f32 %v1668, %v1594
        %v1671 = vmin.f32 %v1669, %v1597
        %v1672 = vmin.f32 %v1670, %v1600
        %v1673 = vmin.f32 %v1671, %v1603
        %v1674 = vmin.f32 %v1672, %v1606
        %v1675 = vmin.f32 %v1673, %v1609
        %v1676 = vmin.f32 %v1674, %v1612
        %v1677 = vmin.f32 %v1675, %v1615
        %v1678 = vmin.f32 %v1676, %v1618
        %v1679 = vmin.f32 %v1677, %v1621
        %v1680 = vmin.f32 %v1678, %v1624
        %v1681 = vmin.f32 %v1679, %v1680
        %v1682 = vrot.slane %v1681, 4
        %v1683 = vmin.f32 %v1681, %v1682
        %v1684 = vrot.slane %v1683, 2
        %v1685 = vmin.f32 %v1683, %v1684
        %v1686 = vrot.slane %v1685, 1
        %v1687 = vmin.f32 %v1685, %v1686
        %vm1688 = vcmp.eq.f32.partialorder %v1577, %v1645
        %vm1689 = vcmp.eq.f32.partialorder %v1578, %v1666
        %vm1690 = vcmp.eq.f32.partialorder %v1579, %v1687
        %vm1691 = vcmp.eq.f32.partialorder %v1580, %v1645
        %vm1692 = vcmp.eq.f32.partialorder %v1581, %v1666
        %vm1693 = vcmp.eq.f32.partialorder %v1582, %v1687
        %vm1694 = vcmp.eq.f32.partialorder %v1583, %v1645
        %vm1695 = vcmp.eq.f32.partialorder %v1584, %v1666
        %vm1696 = vcmp.eq.f32.partialorder %v1585, %v1687
        %vm1697 = vcmp.eq.f32.partialorder %v1586, %v1645
        %vm1698 = vcmp.eq.f32.partialorder %v1587, %v1666
        %vm1699 = vcmp.eq.f32.partialorder %v1588, %v1687
        %vm1700 = vcmp.eq.f32.partialorder %v1589, %v1645
        %vm1701 = vcmp.eq.f32.partialorder %v1590, %v1666
        %vm1702 = vcmp.eq.f32.partialorder %v1591, %v1687
        %vm1703 = vcmp.eq.f32.partialorder %v1592, %v1645
        %vm1704 = vcmp.eq.f32.partialorder %v1593, %v1666
        %vm1705 = vcmp.eq.f32.partialorder %v1594, %v1687
        %vm1706 = vcmp.eq.f32.partialorder %v1595, %v1645
        %vm1707 = vcmp.eq.f32.partialorder %v1596, %v1666
        %vm1708 = vcmp.eq.f32.partialorder %v1597, %v1687
        %vm1709 = vcmp.eq.f32.partialorder %v1598, %v1645
        %vm1710 = vcmp.eq.f32.partialorder %v1599, %v1666
        %vm1711 = vcmp.eq.f32.partialorder %v1600, %v1687
        %vm1712 = vcmp.eq.f32.partialorder %v1601, %v1645
        %vm1713 = vcmp.eq.f32.partialorder %v1602, %v1666
        %vm1714 = vcmp.eq.f32.partialorder %v1603, %v1687
        %vm1715 = vcmp.eq.f32.partialorder %v1604, %v1645
        %vm1716 = vcmp.eq.f32.partialorder %v1605, %v1666
        %vm1717 = vcmp.eq.f32.partialorder %v1606, %v1687
        %vm1718 = vcmp.eq.f32.partialorder %v1607, %v1645
        %vm1719 = vcmp.eq.f32.partialorder %v1608, %v1666
        %vm1720 = vcmp.eq.f32.partialorder %v1609, %v1687
        %vm1721 = vcmp.eq.f32.partialorder %v1610, %v1645
        %vm1722 = vcmp.eq.f32.partialorder %v1611, %v1666
        %vm1723 = vcmp.eq.f32.partialorder %v1612, %v1687
        %vm1724 = vcmp.eq.f32.partialorder %v1613, %v1645
        %vm1725 = vcmp.eq.f32.partialorder %v1614, %v1666
        %vm1726 = vcmp.eq.f32.partialorder %v1615, %v1687
        %vm1727 = vcmp.eq.f32.partialorder %v1616, %v1645
        %vm1728 = vcmp.eq.f32.partialorder %v1617, %v1666
        %vm1729 = vcmp.eq.f32.partialorder %v1618, %v1687
        %vm1730 = vcmp.eq.f32.partialorder %v1619, %v1645
        %vm1731 = vcmp.eq.f32.partialorder %v1620, %v1666
        %vm1732 = vcmp.eq.f32.partialorder %v1621, %v1687
        %vm1733 = vcmp.eq.f32.partialorder %v1622, %v1645
        %vm1734 = vcmp.eq.f32.partialorder %v1623, %v1666
        %vm1735 = vcmp.eq.f32.partialorder %v1624, %v1687
        %v1736 = vsel %vm1688, %v1129, 128
        %v1737 = vsel %vm1689, %v1129, 128
        %v1738 = vsel %vm1690, %v1129, 128
        %v1739 = vsel %vm1691, %v1130, 128
        %v1740 = vsel %vm1692, %v1130, 128
        %v1741 = vsel %vm1693, %v1130, 128
        %v1742 = vsel %vm1694, %v1131, 128
        %v1743 = vsel %vm1695, %v1131, 128
        %v1744 = vsel %vm1696, %v1131, 128
        %v1745 = vsel %vm1697, %v1132, 128
        %v1746 = vsel %vm1698, %v1132, 128
        %v1747 = vsel %vm1699, %v1132, 128
        %v1748 = vsel %vm1700, %v1133, 128
        %v1749 = vsel %vm1701, %v1133, 128
        %v1750 = vsel %vm1702, %v1133, 128
        %v1751 = vsel %vm1703, %v1134, 128
        %v1752 = vsel %vm1704, %v1134, 128
        %v1753 = vsel %vm1705, %v1134, 128
        %v1754 = vsel %vm1706, %v1135, 128
        %v1755 = vsel %vm1707, %v1135, 128
        %v1756 = vsel %vm1708, %v1135, 128
        %v1757 = vsel %vm1709, %v1136, 128
        %v1758 = vsel %vm1710, %v1136, 128
        %v1759 = vsel %vm1711, %v1136, 128
        %v1760 = vsel %vm1712, %v1137, 128
        %v1761 = vsel %vm1713, %v1137, 128
        %v1762 = vsel %vm1714, %v1137, 128
        %v1763 = vsel %vm1715, %v1138, 128
        %v1764 = vsel %vm1716, %v1138, 128
        %v1765 = vsel %vm1717, %v1138, 128
        %v1766 = vsel %vm1718, %v1139, 128
        %v1767 = vsel %vm1719, %v1139, 128
        %v1768 = vsel %vm1720, %v1139, 128
        %v1769 = vsel %vm1721, %v1140, 128
        %v1770 = vsel %vm1722, %v1140, 128
        %v1771 = vsel %vm1723, %v1140, 128
        %v1772 = vsel %vm1724, %v1141, 128
        %v1773 = vsel %vm1725, %v1141, 128
        %v1774 = vsel %vm1726, %v1141, 128
        %v1775 = vsel %vm1727, %v1142, 128
        %v1776 = vsel %vm1728, %v1142, 128
        %v1777 = vsel %vm1729, %v1142, 128
        %v1778 = vsel %vm1730, %v1143, 128
        %v1779 = vsel %vm1731, %v1143, 128
        %v1780 = vsel %vm1732, %v1143, 128
        %v1781 = vsel %vm1733, %v1144, 128
        %v1782 = vsel %vm1734, %v1144, 128
        %v1783 = vsel %vm1735, %v1144, 128
        %vm1784 = vcmp.lt.s32.totalorder %v1736, %v1742
        %v1785 = vsel %vm1784, %v1736, %v1742
        %vm1786 = vcmp.lt.s32.totalorder %v1739, %v1745
        %v1787 = vsel %vm1786, %v1739, %v1745
        %vm1788 = vcmp.lt.s32.totalorder %v1785, %v1748
        %v1789 = vsel %vm1788, %v1785, %v1748
        %vm1790 = vcmp.lt.s32.totalorder %v1787, %v1751
        %v1791 = vsel %vm1790, %v1787, %v1751
        %vm1792 = vcmp.lt.s32.totalorder %v1789, %v1754
        %v1793 = vsel %vm1792, %v1789, %v1754
        %vm1794 = vcmp.lt.s32.totalorder %v1791, %v1757
        %v1795 = vsel %vm1794, %v1791, %v1757
        %vm1796 = vcmp.lt.s32.totalorder %v1793, %v1760
        %v1797 = vsel %vm1796, %v1793, %v1760
        %vm1798 = vcmp.lt.s32.totalorder %v1795, %v1763
        %v1799 = vsel %vm1798, %v1795, %v1763
        %vm1800 = vcmp.lt.s32.totalorder %v1797, %v1766
        %v1801 = vsel %vm1800, %v1797, %v1766
        %vm1802 = vcmp.lt.s32.totalorder %v1799, %v1769
        %v1803 = vsel %vm1802, %v1799, %v1769
        %vm1804 = vcmp.lt.s32.totalorder %v1801, %v1772
        %v1805 = vsel %vm1804, %v1801, %v1772
        %vm1806 = vcmp.lt.s32.totalorder %v1803, %v1775
        %v1807 = vsel %vm1806, %v1803, %v1775
        %vm1808 = vcmp.lt.s32.totalorder %v1805, %v1778
        %v1809 = vsel %vm1808, %v1805, %v1778
        %vm1810 = vcmp.lt.s32.totalorder %v1807, %v1781
        %v1811 = vsel %vm1810, %v1807, %v1781
        %vm1812 = vcmp.lt.s32.totalorder %v1809, %v1811
        %v1813 = vsel %vm1812, %v1809, %v1811
        %v1814 = vrot.slane %v1813, 4
        %vm1815 = vcmp.lt.s32.totalorder %v1813, %v1814
        %v1816 = vsel %vm1815, %v1813, %v1814
        %v1817 = vrot.slane %v1816, 2
        %vm1818 = vcmp.lt.s32.totalorder %v1816, %v1817
        %v1819 = vsel %vm1818, %v1816, %v1817
        %v1820 = vrot.slane %v1819, 1
        %vm1821 = vcmp.lt.s32.totalorder %v1819, %v1820
        %v1822 = vsel %vm1821, %v1819, %v1820
        %vm1823 = vcmp.lt.s32.totalorder %v1737, %v1743
        %v1824 = vsel %vm1823, %v1737, %v1743
        %vm1825 = vcmp.lt.s32.totalorder %v1740, %v1746
        %v1826 = vsel %vm1825, %v1740, %v1746
        %vm1827 = vcmp.lt.s32.totalorder %v1824, %v1749
        %v1828 = vsel %vm1827, %v1824, %v1749
        %vm1829 = vcmp.lt.s32.totalorder %v1826, %v1752
        %v1830 = vsel %vm1829, %v1826, %v1752
        %vm1831 = vcmp.lt.s32.totalorder %v1828, %v1755
        %v1832 = vsel %vm1831, %v1828, %v1755
        %vm1833 = vcmp.lt.s32.totalorder %v1830, %v1758
        %v1834 = vsel %vm1833, %v1830, %v1758
        %vm1835 = vcmp.lt.s32.totalorder %v1832, %v1761
        %v1836 = vsel %vm1835, %v1832, %v1761
        %vm1837 = vcmp.lt.s32.totalorder %v1834, %v1764
        %v1838 = vsel %vm1837, %v1834, %v1764
        %vm1839 = vcmp.lt.s32.totalorder %v1836, %v1767
        %v1840 = vsel %vm1839, %v1836, %v1767
        %vm1841 = vcmp.lt.s32.totalorder %v1838, %v1770
        %v1842 = vsel %vm1841, %v1838, %v1770
        %vm1843 = vcmp.lt.s32.totalorder %v1840, %v1773
        %v1844 = vsel %vm1843, %v1840, %v1773
        %vm1845 = vcmp.lt.s32.totalorder %v1842, %v1776
        %v1846 = vsel %vm1845, %v1842, %v1776
        %vm1847 = vcmp.lt.s32.totalorder %v1844, %v1779
        %v1848 = vsel %vm1847, %v1844, %v1779
        %vm1849 = vcmp.lt.s32.totalorder %v1846, %v1782
        %v1850 = vsel %vm1849, %v1846, %v1782
        %vm1851 = vcmp.lt.s32.totalorder %v1848, %v1850
        %v1852 = vsel %vm1851, %v1848, %v1850
        %v1853 = vrot.slane %v1852, 4
        %vm1854 = vcmp.lt.s32.totalorder %v1852, %v1853
        %v1855 = vsel %vm1854, %v1852, %v1853
        %v1856 = vrot.slane %v1855, 2
        %vm1857 = vcmp.lt.s32.totalorder %v1855, %v1856
        %v1858 = vsel %vm1857, %v1855, %v1856
        %v1859 = vrot.slane %v1858, 1
        %vm1860 = vcmp.lt.s32.totalorder %v1858, %v1859
        %v1861 = vsel %vm1860, %v1858, %v1859
        %vm1862 = vcmp.lt.s32.totalorder %v1738, %v1744
        %v1863 = vsel %vm1862, %v1738, %v1744
        %vm1864 = vcmp.lt.s32.totalorder %v1741, %v1747
        %v1865 = vsel %vm1864, %v1741, %v1747
        %vm1866 = vcmp.lt.s32.totalorder %v1863, %v1750
        %v1867 = vsel %vm1866, %v1863, %v1750
        %vm1868 = vcmp.lt.s32.totalorder %v1865, %v1753
        %v1869 = vsel %vm1868, %v1865, %v1753
        %vm1870 = vcmp.lt.s32.totalorder %v1867, %v1756
        %v1871 = vsel %vm1870, %v1867, %v1756
        %vm1872 = vcmp.lt.s32.totalorder %v1869, %v1759
        %v1873 = vsel %vm1872, %v1869, %v1759
        %vm1874 = vcmp.lt.s32.totalorder %v1871, %v1762
        %v1875 = vsel %vm1874, %v1871, %v1762
        %vm1876 = vcmp.lt.s32.totalorder %v1873, %v1765
        %v1877 = vsel %vm1876, %v1873, %v1765
        %vm1878 = vcmp.lt.s32.totalorder %v1875, %v1768
        %v1879 = vsel %vm1878, %v1875, %v1768
        %vm1880 = vcmp.lt.s32.totalorder %v1877, %v1771
        %v1881 = vsel %vm1880, %v1877, %v1771
        %vm1882 = vcmp.lt.s32.totalorder %v1879, %v1774
        %v1883 = vsel %vm1882, %v1879, %v1774
        %vm1884 = vcmp.lt.s32.totalorder %v1881, %v1777
        %v1885 = vsel %vm1884, %v1881, %v1777
        %vm1886 = vcmp.lt.s32.totalorder %v1883, %v1780
        %v1887 = vsel %vm1886, %v1883, %v1780
        %vm1888 = vcmp.lt.s32.totalorder %v1885, %v1783
        %v1889 = vsel %vm1888, %v1885, %v1783
        %vm1890 = vcmp.lt.s32.totalorder %v1887, %v1889
        %v1891 = vsel %vm1890, %v1887, %v1889
        %v1892 = vrot.slane %v1891, 4
        %vm1893 = vcmp.lt.s32.totalorder %v1891, %v1892
        %v1894 = vsel %vm1893, %v1891, %v1892
        %v1895 = vrot.slane %v1894, 2
        %vm1896 = vcmp.lt.s32.totalorder %v1894, %v1895
        %v1897 = vsel %vm1896, %v1894, %v1895
        %v1898 = vrot.slane %v1897, 1
        %vm1899 = vcmp.lt.s32.totalorder %v1897, %v1898
        %v1900 = vsel %vm1899, %v1897, %v1898
        %vm1901 = vcmp.eq.s32.totalorder %v1129, %v1822
        %vm1902 = vcmp.eq.s32.totalorder %v1129, %v1861
        %vm1903 = vcmp.eq.s32.totalorder %v1129, %v1900
        %vm1904 = vcmp.eq.s32.totalorder %v1130, %v1822
        %vm1905 = vcmp.eq.s32.totalorder %v1130, %v1861
        %vm1906 = vcmp.eq.s32.totalorder %v1130, %v1900
        %vm1907 = vcmp.eq.s32.totalorder %v1131, %v1822
        %vm1908 = vcmp.eq.s32.totalorder %v1131, %v1861
        %vm1909 = vcmp.eq.s32.totalorder %v1131, %v1900
        %vm1910 = vcmp.eq.s32.totalorder %v1132, %v1822
        %vm1911 = vcmp.eq.s32.totalorder %v1132, %v1861
        %vm1912 = vcmp.eq.s32.totalorder %v1132, %v1900
        %vm1913 = vcmp.eq.s32.totalorder %v1133, %v1822
        %vm1914 = vcmp.eq.s32.totalorder %v1133, %v1861
        %vm1915 = vcmp.eq.s32.totalorder %v1133, %v1900
        %vm1916 = vcmp.eq.s32.totalorder %v1134, %v1822
        %vm1917 = vcmp.eq.s32.totalorder %v1134, %v1861
        %vm1918 = vcmp.eq.s32.totalorder %v1134, %v1900
        %vm1919 = vcmp.eq.s32.totalorder %v1135, %v1822
        %vm1920 = vcmp.eq.s32.totalorder %v1135, %v1861
        %vm1921 = vcmp.eq.s32.totalorder %v1135, %v1900
        %vm1922 = vcmp.eq.s32.totalorder %v1136, %v1822
        %vm1923 = vcmp.eq.s32.totalorder %v1136, %v1861
        %vm1924 = vcmp.eq.s32.totalorder %v1136, %v1900
        %vm1925 = vcmp.eq.s32.totalorder %v1137, %v1822
        %vm1926 = vcmp.eq.s32.totalorder %v1137, %v1861
        %vm1927 = vcmp.eq.s32.totalorder %v1137, %v1900
        %vm1928 = vcmp.eq.s32.totalorder %v1138, %v1822
        %vm1929 = vcmp.eq.s32.totalorder %v1138, %v1861
        %vm1930 = vcmp.eq.s32.totalorder %v1138, %v1900
        %vm1931 = vcmp.eq.s32.totalorder %v1139, %v1822
        %vm1932 = vcmp.eq.s32.totalorder %v1139, %v1861
        %vm1933 = vcmp.eq.s32.totalorder %v1139, %v1900
        %vm1934 = vcmp.eq.s32.totalorder %v1140, %v1822
        %vm1935 = vcmp.eq.s32.totalorder %v1140, %v1861
        %vm1936 = vcmp.eq.s32.totalorder %v1140, %v1900
        %vm1937 = vcmp.eq.s32.totalorder %v1141, %v1822
        %vm1938 = vcmp.eq.s32.totalorder %v1141, %v1861
        %vm1939 = vcmp.eq.s32.totalorder %v1141, %v1900
        %vm1940 = vcmp.eq.s32.totalorder %v1142, %v1822
        %vm1941 = vcmp.eq.s32.totalorder %v1142, %v1861
        %vm1942 = vcmp.eq.s32.totalorder %v1142, %v1900
        %vm1943 = vcmp.eq.s32.totalorder %v1143, %v1822
        %vm1944 = vcmp.eq.s32.totalorder %v1143, %v1861
        %vm1945 = vcmp.eq.s32.totalorder %v1143, %v1900
        %vm1946 = vcmp.eq.s32.totalorder %v1144, %v1822
        %vm1947 = vcmp.eq.s32.totalorder %v1144, %v1861
        %vm1948 = vcmp.eq.s32.totalorder %v1144, %v1900
        %v1949 = vadd.f32 %v1645, 1e-08
        %v1950 = vadd.f32 %v1666, 1e-08
        %v1951 = vadd.f32 %v1687, 1e-08
        %v1952 = vrcp.pop %v1949
        %v1953 = vmul.f32 1.0, %v1952
        %v1954 = vrcp.pop %v1950
        %v1955 = vmul.f32 1.0, %v1954
        %v1956 = vrcp.pop %v1951
        %v1957 = vmul.f32 1.0, %v1956
        %v1958 = vadd.f32 %v1478, %v1953
        %v1959 = vadd.f32 %v1479, %v1955
        %v1960 = vadd.f32 %v1480, %v1957
        %v1961 = vsel %vm1901, %v1953, 0.0
        %v1962 = vsel %vm1902, %v1955, 0.0
        %v1963 = vsel %vm1903, %v1957, 0.0
        %v1964 = vsel %vm1904, %v1953, 0.0
        %v1965 = vsel %vm1905, %v1955, 0.0
        %v1966 = vsel %vm1906, %v1957, 0.0
        %v1967 = vsel %vm1907, %v1953, 0.0
        %v1968 = vsel %vm1908, %v1955, 0.0
        %v1969 = vsel %vm1909, %v1957, 0.0
        %v1970 = vsel %vm1910, %v1953, 0.0
        %v1971 = vsel %vm1911, %v1955, 0.0
        %v1972 = vsel %vm1912, %v1957, 0.0
        %v1973 = vsel %vm1913, %v1953, 0.0
        %v1974 = vsel %vm1914, %v1955, 0.0
        %v1975 = vsel %vm1915, %v1957, 0.0
        %v1976 = vsel %vm1916, %v1953, 0.0
        %v1977 = vsel %vm1917, %v1955, 0.0
        %v1978 = vsel %vm1918, %v1957, 0.0
        %v1979 = vsel %vm1919, %v1953, 0.0
        %v1980 = vsel %vm1920, %v1955, 0.0
        %v1981 = vsel %vm1921, %v1957, 0.0
        %v1982 = vsel %vm1922, %v1953, 0.0
        %v1983 = vsel %vm1923, %v1955, 0.0
        %v1984 = vsel %vm1924, %v1957, 0.0
        %v1985 = vsel %vm1925, %v1953, 0.0
        %v1986 = vsel %vm1926, %v1955, 0.0
        %v1987 = vsel %vm1927, %v1957, 0.0
        %v1988 = vsel %vm1928, %v1953, 0.0
        %v1989 = vsel %vm1929, %v1955, 0.0
        %v1990 = vsel %vm1930, %v1957, 0.0
        %v1991 = vsel %vm1931, %v1953, 0.0
        %v1992 = vsel %vm1932, %v1955, 0.0
        %v1993 = vsel %vm1933, %v1957, 0.0
        %v1994 = vsel %vm1934, %v1953, 0.0
        %v1995 = vsel %vm1935, %v1955, 0.0
        %v1996 = vsel %vm1936, %v1957, 0.0
        %v1997 = vsel %vm1937, %v1953, 0.0
        %v1998 = vsel %vm1938, %v1955, 0.0
        %v1999 = vsel %vm1939, %v1957, 0.0
        %v2000 = vsel %vm1940, %v1953, 0.0
        %v2001 = vsel %vm1941, %v1955, 0.0
        %v2002 = vsel %vm1942, %v1957, 0.0
        %v2003 = vsel %vm1943, %v1953, 0.0
        %v2004 = vsel %vm1944, %v1955, 0.0
        %v2005 = vsel %vm1945, %v1957, 0.0
        %v2006 = vsel %vm1946, %v1953, 0.0
        %v2007 = vsel %vm1947, %v1955, 0.0
        %v2008 = vsel %vm1948, %v1957, 0.0
        %v2009 = vadd.f32 %v1529, %v1961
        %v2010 = vadd.f32 %v1530, %v1962
        %v2011 = vadd.f32 %v1531, %v1963
        %v2012 = vadd.f32 %v1532, %v1964
        %v2013 = vadd.f32 %v1533, %v1965
        %v2014 = vadd.f32 %v1534, %v1966
        %v2015 = vadd.f32 %v1535, %v1967
        %v2016 = vadd.f32 %v1536, %v1968
        %v2017 = vadd.f32 %v1537, %v1969
        %v2018 = vadd.f32 %v1538, %v1970
        %v2019 = vadd.f32 %v1539, %v1971
        %v2020 = vadd.f32 %v1540, %v1972
        %v2021 = vadd.f32 %v1541, %v1973
        %v2022 = vadd.f32 %v1542, %v1974
        %v2023 = vadd.f32 %v1543, %v1975
        %v2024 = vadd.f32 %v1544, %v1976
        %v2025 = vadd.f32 %v1545, %v1977
        %v2026 = vadd.f32 %v1546, %v1978
        %v2027 = vadd.f32 %v1547, %v1979
        %v2028 = vadd.f32 %v1548, %v1980
        %v2029 = vadd.f32 %v1549, %v1981
        %v2030 = vadd.f32 %v1550, %v1982
        %v2031 = vadd.f32 %v1551, %v1983
        %v2032 = vadd.f32 %v1552, %v1984
        %v2033 = vadd.f32 %v1553, %v1985
        %v2034 = vadd.f32 %v1554, %v1986
        %v2035 = vadd.f32 %v1555, %v1987
        %v2036 = vadd.f32 %v1556, %v1988
        %v2037 = vadd.f32 %v1557, %v1989
        %v2038 = vadd.f32 %v1558, %v1990
        %v2039 = vadd.f32 %v1559, %v1991
        %v2040 = vadd.f32 %v1560, %v1992
        %v2041 = vadd.f32 %v1561, %v1993
        %v2042 = vadd.f32 %v1562, %v1994
        %v2043 = vadd.f32 %v1563, %v1995
        %v2044 = vadd.f32 %v1564, %v1996
        %v2045 = vadd.f32 %v1565, %v1997
        %v2046 = vadd.f32 %v1566, %v1998
        %v2047 = vadd.f32 %v1567, %v1999
        %v2048 = vadd.f32 %v1568, %v2000
        %v2049 = vadd.f32 %v1569, %v2001
        %v2050 = vadd.f32 %v1570, %v2002
        %v2051 = vadd.f32 %v1571, %v2003
        %v2052 = vadd.f32 %v1572, %v2004
        %v2053 = vadd.f32 %v1573, %v2005
        %v2054 = vadd.f32 %v1574, %v2006
        %v2055 = vadd.f32 %v1575, %v2007
        %v2056 = vadd.f32 %v1576, %v2008
        %v2057 = vsel %vm1901, 1e+30, %v1577
        %v2058 = vsel %vm1902, 1e+30, %v1578
        %v2059 = vsel %vm1903, 1e+30, %v1579
        %v2060 = vsel %vm1904, 1e+30, %v1580
        %v2061 = vsel %vm1905, 1e+30, %v1581
        %v2062 = vsel %vm1906, 1e+30, %v1582
        %v2063 = vsel %vm1907, 1e+30, %v1583
        %v2064 = vsel %vm1908, 1e+30, %v1584
        %v2065 = vsel %vm1909, 1e+30, %v1585
        %v2066 = vsel %vm1910, 1e+30, %v1586
        %v2067 = vsel %vm1911, 1e+30, %v1587
        %v2068 = vsel %vm1912, 1e+30, %v1588
        %v2069 = vsel %vm1913, 1e+30, %v1589
        %v2070 = vsel %vm1914, 1e+30, %v1590
        %v2071 = vsel %vm1915, 1e+30, %v1591
        %v2072 = vsel %vm1916, 1e+30, %v1592
        %v2073 = vsel %vm1917, 1e+30, %v1593
        %v2074 = vsel %vm1918, 1e+30, %v1594
        %v2075 = vsel %vm1919, 1e+30, %v1595
        %v2076 = vsel %vm1920, 1e+30, %v1596
        %v2077 = vsel %vm1921, 1e+30, %v1597
        %v2078 = vsel %vm1922, 1e+30, %v1598
        %v2079 = vsel %vm1923, 1e+30, %v1599
        %v2080 = vsel %vm1924, 1e+30, %v1600
        %v2081 = vsel %vm1925, 1e+30, %v1601
        %v2082 = vsel %vm1926, 1e+30, %v1602
        %v2083 = vsel %vm1927, 1e+30, %v1603
        %v2084 = vsel %vm1928, 1e+30, %v1604
        %v2085 = vsel %vm1929, 1e+30, %v1605
        %v2086 = vsel %vm1930, 1e+30, %v1606
        %v2087 = vsel %vm1931, 1e+30, %v1607
        %v2088 = vsel %vm1932, 1e+30, %v1608
        %v2089 = vsel %vm1933, 1e+30, %v1609
        %v2090 = vsel %vm1934, 1e+30, %v1610
        %v2091 = vsel %vm1935, 1e+30, %v1611
        %v2092 = vsel %vm1936, 1e+30, %v1612
        %v2093 = vsel %vm1937, 1e+30, %v1613
        %v2094 = vsel %vm1938, 1e+30, %v1614
        %v2095 = vsel %vm1939, 1e+30, %v1615
        %v2096 = vsel %vm1940, 1e+30, %v1616
        %v2097 = vsel %vm1941, 1e+30, %v1617
        %v2098 = vsel %vm1942, 1e+30, %v1618
        %v2099 = vsel %vm1943, 1e+30, %v1619
        %v2100 = vsel %vm1944, 1e+30, %v1620
        %v2101 = vsel %vm1945, 1e+30, %v1621
        %v2102 = vsel %vm1946, 1e+30, %v1622
        %v2103 = vsel %vm1947, 1e+30, %v1623
        %v2104 = vsel %vm1948, 1e+30, %v1624
        %v2105 = vmin.f32 %v2057, %v2063
        %v2106 = vmin.f32 %v2060, %v2066
        %v2107 = vmin.f32 %v2105, %v2069
        %v2108 = vmin.f32 %v2106, %v2072
        %v2109 = vmin.f32 %v2107, %v2075
        %v2110 = vmin.f32 %v2108, %v2078
        %v2111 = vmin.f32 %v2109, %v2081
        %v2112 = vmin.f32 %v2110, %v2084
        %v2113 = vmin.f32 %v2111, %v2087
        %v2114 = vmin.f32 %v2112, %v2090
        %v2115 = vmin.f32 %v2113, %v2093
        %v2116 = vmin.f32 %v2114, %v2096
        %v2117 = vmin.f32 %v2115, %v2099
        %v2118 = vmin.f32 %v2116, %v2102
        %v2119 = vmin.f32 %v2117, %v2118
        %v2120 = vrot.slane %v2119, 4
        %v2121 = vmin.f32 %v2119, %v2120
        %v2122 = vrot.slane %v2121, 2
        %v2123 = vmin.f32 %v2121, %v2122
        %v2124 = vrot.slane %v2123, 1
        %v2125 = vmin.f32 %v2123, %v2124
        %v2126 = vmin.f32 %v2058, %v2064
        %v2127 = vmin.f32 %v2061, %v2067
        %v2128 = vmin.f32 %v2126, %v2070
        %v2129 = vmin.f32 %v2127, %v2073
        %v2130 = vmin.f32 %v2128, %v2076
        %v2131 = vmin.f32 %v2129, %v2079
        %v2132 = vmin.f32 %v2130, %v2082
        %v2133 = vmin.f32 %v2131, %v2085
        %v2134 = vmin.f32 %v2132, %v2088
        %v2135 = vmin.f32 %v2133, %v2091
        %v2136 = vmin.f32 %v2134, %v2094
        %v2137 = vmin.f32 %v2135, %v2097
        %v2138 = vmin.f32 %v2136, %v2100
        %v2139 = vmin.f32 %v2137, %v2103
        %v2140 = vmin.f32 %v2138, %v2139
        %v2141 = vrot.slane %v2140, 4
        %v2142 = vmin.f32 %v2140, %v2141
        %v2143 = vrot.slane %v2142, 2
        %v2144 = vmin.f32 %v2142, %v2143
        %v2145 = vrot.slane %v2144, 1
        %v2146 = vmin.f32 %v2144, %v2145
        %v2147 = vmin.f32 %v2059, %v2065
        %v2148 = vmin.f32 %v2062, %v2068
        %v2149 = vmin.f32 %v2147, %v2071
        %v2150 = vmin.f32 %v2148, %v2074
        %v2151 = vmin.f32 %v2149, %v2077
        %v2152 = vmin.f32 %v2150, %v2080
        %v2153 = vmin.f32 %v2151, %v2083
        %v2154 = vmin.f32 %v2152, %v2086
        %v2155 = vmin.f32 %v2153, %v2089
        %v2156 = vmin.f32 %v2154, %v2092
        %v2157 = vmin.f32 %v2155, %v2095
        %v2158 = vmin.f32 %v2156, %v2098
        %v2159 = vmin.f32 %v2157, %v2101
        %v2160 = vmin.f32 %v2158, %v2104
        %v2161 = vmin.f32 %v2159, %v2160
        %v2162 = vrot.slane %v2161, 4
        %v2163 = vmin.f32 %v2161, %v2162
        %v2164 = vrot.slane %v2163, 2
        %v2165 = vmin.f32 %v2163, %v2164
        %v2166 = vrot.slane %v2165, 1
        %v2167 = vmin.f32 %v2165, %v2166
        %vm2168 = vcmp.eq.f32.partialorder %v2057, %v2125
        %vm2169 = vcmp.eq.f32.partialorder %v2058, %v2146
        %vm2170 = vcmp.eq.f32.partialorder %v2059, %v2167
        %vm2171 = vcmp.eq.f32.partialorder %v2060, %v2125
        %vm2172 = vcmp.eq.f32.partialorder %v2061, %v2146
        %vm2173 = vcmp.eq.f32.partialorder %v2062, %v2167
        %vm2174 = vcmp.eq.f32.partialorder %v2063, %v2125
        %vm2175 = vcmp.eq.f32.partialorder %v2064, %v2146
        %vm2176 = vcmp.eq.f32.partialorder %v2065, %v2167
        %vm2177 = vcmp.eq.f32.partialorder %v2066, %v2125
        %vm2178 = vcmp.eq.f32.partialorder %v2067, %v2146
        %vm2179 = vcmp.eq.f32.partialorder %v2068, %v2167
        %vm2180 = vcmp.eq.f32.partialorder %v2069, %v2125
        %vm2181 = vcmp.eq.f32.partialorder %v2070, %v2146
        %vm2182 = vcmp.eq.f32.partialorder %v2071, %v2167
        %vm2183 = vcmp.eq.f32.partialorder %v2072, %v2125
        %vm2184 = vcmp.eq.f32.partialorder %v2073, %v2146
        %vm2185 = vcmp.eq.f32.partialorder %v2074, %v2167
        %vm2186 = vcmp.eq.f32.partialorder %v2075, %v2125
        %vm2187 = vcmp.eq.f32.partialorder %v2076, %v2146
        %vm2188 = vcmp.eq.f32.partialorder %v2077, %v2167
        %vm2189 = vcmp.eq.f32.partialorder %v2078, %v2125
        %vm2190 = vcmp.eq.f32.partialorder %v2079, %v2146
        %vm2191 = vcmp.eq.f32.partialorder %v2080, %v2167
        %vm2192 = vcmp.eq.f32.partialorder %v2081, %v2125
        %vm2193 = vcmp.eq.f32.partialorder %v2082, %v2146
        %vm2194 = vcmp.eq.f32.partialorder %v2083, %v2167
        %vm2195 = vcmp.eq.f32.partialorder %v2084, %v2125
        %vm2196 = vcmp.eq.f32.partialorder %v2085, %v2146
        %vm2197 = vcmp.eq.f32.partialorder %v2086, %v2167
        %vm2198 = vcmp.eq.f32.partialorder %v2087, %v2125
        %vm2199 = vcmp.eq.f32.partialorder %v2088, %v2146
        %vm2200 = vcmp.eq.f32.partialorder %v2089, %v2167
        %vm2201 = vcmp.eq.f32.partialorder %v2090, %v2125
        %vm2202 = vcmp.eq.f32.partialorder %v2091, %v2146
        %vm2203 = vcmp.eq.f32.partialorder %v2092, %v2167
        %vm2204 = vcmp.eq.f32.partialorder %v2093, %v2125
        %vm2205 = vcmp.eq.f32.partialorder %v2094, %v2146
        %vm2206 = vcmp.eq.f32.partialorder %v2095, %v2167
        %vm2207 = vcmp.eq.f32.partialorder %v2096, %v2125
        %vm2208 = vcmp.eq.f32.partialorder %v2097, %v2146
        %vm2209 = vcmp.eq.f32.partialorder %v2098, %v2167
        %vm2210 = vcmp.eq.f32.partialorder %v2099, %v2125
        %vm2211 = vcmp.eq.f32.partialorder %v2100, %v2146
        %vm2212 = vcmp.eq.f32.partialorder %v2101, %v2167
        %vm2213 = vcmp.eq.f32.partialorder %v2102, %v2125
        %vm2214 = vcmp.eq.f32.partialorder %v2103, %v2146
        %vm2215 = vcmp.eq.f32.partialorder %v2104, %v2167
        %v2216 = vsel %vm2168, %v1129, 128
        %v2217 = vsel %vm2169, %v1129, 128
        %v2218 = vsel %vm2170, %v1129, 128
        %v2219 = vsel %vm2171, %v1130, 128
        %v2220 = vsel %vm2172, %v1130, 128
        %v2221 = vsel %vm2173, %v1130, 128
        %v2222 = vsel %vm2174, %v1131, 128
        %v2223 = vsel %vm2175, %v1131, 128
        %v2224 = vsel %vm2176, %v1131, 128
        %v2225 = vsel %vm2177, %v1132, 128
        %v2226 = vsel %vm2178, %v1132, 128
        %v2227 = vsel %vm2179, %v1132, 128
        %v2228 = vsel %vm2180, %v1133, 128
        %v2229 = vsel %vm2181, %v1133, 128
        %v2230 = vsel %vm2182, %v1133, 128
        %v2231 = vsel %vm2183, %v1134, 128
        %v2232 = vsel %vm2184, %v1134, 128
        %v2233 = vsel %vm2185, %v1134, 128
        %v2234 = vsel %vm2186, %v1135, 128
        %v2235 = vsel %vm2187, %v1135, 128
        %v2236 = vsel %vm2188, %v1135, 128
        %v2237 = vsel %vm2189, %v1136, 128
        %v2238 = vsel %vm2190, %v1136, 128
        %v2239 = vsel %vm2191, %v1136, 128
        %v2240 = vsel %vm2192, %v1137, 128
        %v2241 = vsel %vm2193, %v1137, 128
        %v2242 = vsel %vm2194, %v1137, 128
        %v2243 = vsel %vm2195, %v1138, 128
        %v2244 = vsel %vm2196, %v1138, 128
        %v2245 = vsel %vm2197, %v1138, 128
        %v2246 = vsel %vm2198, %v1139, 128
        %v2247 = vsel %vm2199, %v1139, 128
        %v2248 = vsel %vm2200, %v1139, 128
        %v2249 = vsel %vm2201, %v1140, 128
        %v2250 = vsel %vm2202, %v1140, 128
        %v2251 = vsel %vm2203, %v1140, 128
        %v2252 = vsel %vm2204, %v1141, 128
        %v2253 = vsel %vm2205, %v1141, 128
        %v2254 = vsel %vm2206, %v1141, 128
        %v2255 = vsel %vm2207, %v1142, 128
        %v2256 = vsel %vm2208, %v1142, 128
        %v2257 = vsel %vm2209, %v1142, 128
        %v2258 = vsel %vm2210, %v1143, 128
        %v2259 = vsel %vm2211, %v1143, 128
        %v2260 = vsel %vm2212, %v1143, 128
        %v2261 = vsel %vm2213, %v1144, 128
        %v2262 = vsel %vm2214, %v1144, 128
        %v2263 = vsel %vm2215, %v1144, 128
        %vm2264 = vcmp.lt.s32.totalorder %v2216, %v2222
        %v2265 = vsel %vm2264, %v2216, %v2222
        %vm2266 = vcmp.lt.s32.totalorder %v2219, %v2225
        %v2267 = vsel %vm2266, %v2219, %v2225
        %vm2268 = vcmp.lt.s32.totalorder %v2265, %v2228
        %v2269 = vsel %vm2268, %v2265, %v2228
        %vm2270 = vcmp.lt.s32.totalorder %v2267, %v2231
        %v2271 = vsel %vm2270, %v2267, %v2231
        %vm2272 = vcmp.lt.s32.totalorder %v2269, %v2234
        %v2273 = vsel %vm2272, %v2269, %v2234
        %vm2274 = vcmp.lt.s32.totalorder %v2271, %v2237
        %v2275 = vsel %vm2274, %v2271, %v2237
        %vm2276 = vcmp.lt.s32.totalorder %v2273, %v2240
        %v2277 = vsel %vm2276, %v2273, %v2240
        %vm2278 = vcmp.lt.s32.totalorder %v2275, %v2243
        %v2279 = vsel %vm2278, %v2275, %v2243
        %vm2280 = vcmp.lt.s32.totalorder %v2277, %v2246
        %v2281 = vsel %vm2280, %v2277, %v2246
        %vm2282 = vcmp.lt.s32.totalorder %v2279, %v2249
        %v2283 = vsel %vm2282, %v2279, %v2249
        %vm2284 = vcmp.lt.s32.totalorder %v2281, %v2252
        %v2285 = vsel %vm2284, %v2281, %v2252
        %vm2286 = vcmp.lt.s32.totalorder %v2283, %v2255
        %v2287 = vsel %vm2286, %v2283, %v2255
        %vm2288 = vcmp.lt.s32.totalorder %v2285, %v2258
        %v2289 = vsel %vm2288, %v2285, %v2258
        %vm2290 = vcmp.lt.s32.totalorder %v2287, %v2261
        %v2291 = vsel %vm2290, %v2287, %v2261
        %vm2292 = vcmp.lt.s32.totalorder %v2289, %v2291
        %v2293 = vsel %vm2292, %v2289, %v2291
        %v2294 = vrot.slane %v2293, 4
        %vm2295 = vcmp.lt.s32.totalorder %v2293, %v2294
        %v2296 = vsel %vm2295, %v2293, %v2294
        %v2297 = vrot.slane %v2296, 2
        %vm2298 = vcmp.lt.s32.totalorder %v2296, %v2297
        %v2299 = vsel %vm2298, %v2296, %v2297
        %v2300 = vrot.slane %v2299, 1
        %vm2301 = vcmp.lt.s32.totalorder %v2299, %v2300
        %v2302 = vsel %vm2301, %v2299, %v2300
        %vm2303 = vcmp.lt.s32.totalorder %v2217, %v2223
        %v2304 = vsel %vm2303, %v2217, %v2223
        %vm2305 = vcmp.lt.s32.totalorder %v2220, %v2226
        %v2306 = vsel %vm2305, %v2220, %v2226
        %vm2307 = vcmp.lt.s32.totalorder %v2304, %v2229
        %v2308 = vsel %vm2307, %v2304, %v2229
        %vm2309 = vcmp.lt.s32.totalorder %v2306, %v2232
        %v2310 = vsel %vm2309, %v2306, %v2232
        %vm2311 = vcmp.lt.s32.totalorder %v2308, %v2235
        %v2312 = vsel %vm2311, %v2308, %v2235
        %vm2313 = vcmp.lt.s32.totalorder %v2310, %v2238
        %v2314 = vsel %vm2313, %v2310, %v2238
        %vm2315 = vcmp.lt.s32.totalorder %v2312, %v2241
        %v2316 = vsel %vm2315, %v2312, %v2241
        %vm2317 = vcmp.lt.s32.totalorder %v2314, %v2244
        %v2318 = vsel %vm2317, %v2314, %v2244
        %vm2319 = vcmp.lt.s32.totalorder %v2316, %v2247
        %v2320 = vsel %vm2319, %v2316, %v2247
        %vm2321 = vcmp.lt.s32.totalorder %v2318, %v2250
        %v2322 = vsel %vm2321, %v2318, %v2250
        %vm2323 = vcmp.lt.s32.totalorder %v2320, %v2253
        %v2324 = vsel %vm2323, %v2320, %v2253
        %vm2325 = vcmp.lt.s32.totalorder %v2322, %v2256
        %v2326 = vsel %vm2325, %v2322, %v2256
        %vm2327 = vcmp.lt.s32.totalorder %v2324, %v2259
        %v2328 = vsel %vm2327, %v2324, %v2259
        %vm2329 = vcmp.lt.s32.totalorder %v2326, %v2262
        %v2330 = vsel %vm2329, %v2326, %v2262
        %vm2331 = vcmp.lt.s32.totalorder %v2328, %v2330
        %v2332 = vsel %vm2331, %v2328, %v2330
        %v2333 = vrot.slane %v2332, 4
        %vm2334 = vcmp.lt.s32.totalorder %v2332, %v2333
        %v2335 = vsel %vm2334, %v2332, %v2333
        %v2336 = vrot.slane %v2335, 2
        %vm2337 = vcmp.lt.s32.totalorder %v2335, %v2336
        %v2338 = vsel %vm2337, %v2335, %v2336
        %v2339 = vrot.slane %v2338, 1
        %vm2340 = vcmp.lt.s32.totalorder %v2338, %v2339
        %v2341 = vsel %vm2340, %v2338, %v2339
        %vm2342 = vcmp.lt.s32.totalorder %v2218, %v2224
        %v2343 = vsel %vm2342, %v2218, %v2224
        %vm2344 = vcmp.lt.s32.totalorder %v2221, %v2227
        %v2345 = vsel %vm2344, %v2221, %v2227
        %vm2346 = vcmp.lt.s32.totalorder %v2343, %v2230
        %v2347 = vsel %vm2346, %v2343, %v2230
        %vm2348 = vcmp.lt.s32.totalorder %v2345, %v2233
        %v2349 = vsel %vm2348, %v2345, %v2233
        %vm2350 = vcmp.lt.s32.totalorder %v2347, %v2236
        %v2351 = vsel %vm2350, %v2347, %v2236
        %vm2352 = vcmp.lt.s32.totalorder %v2349, %v2239
        %v2353 = vsel %vm2352, %v2349, %v2239
        %vm2354 = vcmp.lt.s32.totalorder %v2351, %v2242
        %v2355 = vsel %vm2354, %v2351, %v2242
        %vm2356 = vcmp.lt.s32.totalorder %v2353, %v2245
        %v2357 = vsel %vm2356, %v2353, %v2245
        %vm2358 = vcmp.lt.s32.totalorder %v2355, %v2248
        %v2359 = vsel %vm2358, %v2355, %v2248
        %vm2360 = vcmp.lt.s32.totalorder %v2357, %v2251
        %v2361 = vsel %vm2360, %v2357, %v2251
        %vm2362 = vcmp.lt.s32.totalorder %v2359, %v2254
        %v2363 = vsel %vm2362, %v2359, %v2254
        %vm2364 = vcmp.lt.s32.totalorder %v2361, %v2257
        %v2365 = vsel %vm2364, %v2361, %v2257
        %vm2366 = vcmp.lt.s32.totalorder %v2363, %v2260
        %v2367 = vsel %vm2366, %v2363, %v2260
        %vm2368 = vcmp.lt.s32.totalorder %v2365, %v2263
        %v2369 = vsel %vm2368, %v2365, %v2263
        %vm2370 = vcmp.lt.s32.totalorder %v2367, %v2369
        %v2371 = vsel %vm2370, %v2367, %v2369
        %v2372 = vrot.slane %v2371, 4
        %vm2373 = vcmp.lt.s32.totalorder %v2371, %v2372
        %v2374 = vsel %vm2373, %v2371, %v2372
        %v2375 = vrot.slane %v2374, 2
        %vm2376 = vcmp.lt.s32.totalorder %v2374, %v2375
        %v2377 = vsel %vm2376, %v2374, %v2375
        %v2378 = vrot.slane %v2377, 1
        %vm2379 = vcmp.lt.s32.totalorder %v2377, %v2378
        %v2380 = vsel %vm2379, %v2377, %v2378
        %vm2381 = vcmp.eq.s32.totalorder %v1129, %v2302
        %vm2382 = vcmp.eq.s32.totalorder %v1129, %v2341
        %vm2383 = vcmp.eq.s32.totalorder %v1129, %v2380
        %vm2384 = vcmp.eq.s32.totalorder %v1130, %v2302
        %vm2385 = vcmp.eq.s32.totalorder %v1130, %v2341
        %vm2386 = vcmp.eq.s32.totalorder %v1130, %v2380
        %vm2387 = vcmp.eq.s32.totalorder %v1131, %v2302
        %vm2388 = vcmp.eq.s32.totalorder %v1131, %v2341
        %vm2389 = vcmp.eq.s32.totalorder %v1131, %v2380
        %vm2390 = vcmp.eq.s32.totalorder %v1132, %v2302
        %vm2391 = vcmp.eq.s32.totalorder %v1132, %v2341
        %vm2392 = vcmp.eq.s32.totalorder %v1132, %v2380
        %vm2393 = vcmp.eq.s32.totalorder %v1133, %v2302
        %vm2394 = vcmp.eq.s32.totalorder %v1133, %v2341
        %vm2395 = vcmp.eq.s32.totalorder %v1133, %v2380
        %vm2396 = vcmp.eq.s32.totalorder %v1134, %v2302
        %vm2397 = vcmp.eq.s32.totalorder %v1134, %v2341
        %vm2398 = vcmp.eq.s32.totalorder %v1134, %v2380
        %vm2399 = vcmp.eq.s32.totalorder %v1135, %v2302
        %vm2400 = vcmp.eq.s32.totalorder %v1135, %v2341
        %vm2401 = vcmp.eq.s32.totalorder %v1135, %v2380
        %vm2402 = vcmp.eq.s32.totalorder %v1136, %v2302
        %vm2403 = vcmp.eq.s32.totalorder %v1136, %v2341
        %vm2404 = vcmp.eq.s32.totalorder %v1136, %v2380
        %vm2405 = vcmp.eq.s32.totalorder %v1137, %v2302
        %vm2406 = vcmp.eq.s32.totalorder %v1137, %v2341
        %vm2407 = vcmp.eq.s32.totalorder %v1137, %v2380
        %vm2408 = vcmp.eq.s32.totalorder %v1138, %v2302
        %vm2409 = vcmp.eq.s32.totalorder %v1138, %v2341
        %vm2410 = vcmp.eq.s32.totalorder %v1138, %v2380
        %vm2411 = vcmp.eq.s32.totalorder %v1139, %v2302
        %vm2412 = vcmp.eq.s32.totalorder %v1139, %v2341
        %vm2413 = vcmp.eq.s32.totalorder %v1139, %v2380
        %vm2414 = vcmp.eq.s32.totalorder %v1140, %v2302
        %vm2415 = vcmp.eq.s32.totalorder %v1140, %v2341
        %vm2416 = vcmp.eq.s32.totalorder %v1140, %v2380
        %vm2417 = vcmp.eq.s32.totalorder %v1141, %v2302
        %vm2418 = vcmp.eq.s32.totalorder %v1141, %v2341
        %vm2419 = vcmp.eq.s32.totalorder %v1141, %v2380
        %vm2420 = vcmp.eq.s32.totalorder %v1142, %v2302
        %vm2421 = vcmp.eq.s32.totalorder %v1142, %v2341
        %vm2422 = vcmp.eq.s32.totalorder %v1142, %v2380
        %vm2423 = vcmp.eq.s32.totalorder %v1143, %v2302
        %vm2424 = vcmp.eq.s32.totalorder %v1143, %v2341
        %vm2425 = vcmp.eq.s32.totalorder %v1143, %v2380
        %vm2426 = vcmp.eq.s32.totalorder %v1144, %v2302
        %vm2427 = vcmp.eq.s32.totalorder %v1144, %v2341
        %vm2428 = vcmp.eq.s32.totalorder %v1144, %v2380
        %v2429 = vadd.f32 %v2125, 1e-08
        %v2430 = vadd.f32 %v2146, 1e-08
        %v2431 = vadd.f32 %v2167, 1e-08
        %v2432 = vrcp.pop %v2429
        %v2433 = vmul.f32 1.0, %v2432
        %v2434 = vrcp.pop %v2430
        %v2435 = vmul.f32 1.0, %v2434
        %v2436 = vrcp.pop %v2431
        %v2437 = vmul.f32 1.0, %v2436
        %v2438 = vadd.f32 %v1958, %v2433
        %v2439 = vadd.f32 %v1959, %v2435
        %v2440 = vadd.f32 %v1960, %v2437
        %v2441 = vsel %vm2381, %v2433, 0.0
        %v2442 = vsel %vm2382, %v2435, 0.0
        %v2443 = vsel %vm2383, %v2437, 0.0
        %v2444 = vsel %vm2384, %v2433, 0.0
        %v2445 = vsel %vm2385, %v2435, 0.0
        %v2446 = vsel %vm2386, %v2437, 0.0
        %v2447 = vsel %vm2387, %v2433, 0.0
        %v2448 = vsel %vm2388, %v2435, 0.0
        %v2449 = vsel %vm2389, %v2437, 0.0
        %v2450 = vsel %vm2390, %v2433, 0.0
        %v2451 = vsel %vm2391, %v2435, 0.0
        %v2452 = vsel %vm2392, %v2437, 0.0
        %v2453 = vsel %vm2393, %v2433, 0.0
        %v2454 = vsel %vm2394, %v2435, 0.0
        %v2455 = vsel %vm2395, %v2437, 0.0
        %v2456 = vsel %vm2396, %v2433, 0.0
        %v2457 = vsel %vm2397, %v2435, 0.0
        %v2458 = vsel %vm2398, %v2437, 0.0
        %v2459 = vsel %vm2399, %v2433, 0.0
        %v2460 = vsel %vm2400, %v2435, 0.0
        %v2461 = vsel %vm2401, %v2437, 0.0
        %v2462 = vsel %vm2402, %v2433, 0.0
        %v2463 = vsel %vm2403, %v2435, 0.0
        %v2464 = vsel %vm2404, %v2437, 0.0
        %v2465 = vsel %vm2405, %v2433, 0.0
        %v2466 = vsel %vm2406, %v2435, 0.0
        %v2467 = vsel %vm2407, %v2437, 0.0
        %v2468 = vsel %vm2408, %v2433, 0.0
        %v2469 = vsel %vm2409, %v2435, 0.0
        %v2470 = vsel %vm2410, %v2437, 0.0
        %v2471 = vsel %vm2411, %v2433, 0.0
        %v2472 = vsel %vm2412, %v2435, 0.0
        %v2473 = vsel %vm2413, %v2437, 0.0
        %v2474 = vsel %vm2414, %v2433, 0.0
        %v2475 = vsel %vm2415, %v2435, 0.0
        %v2476 = vsel %vm2416, %v2437, 0.0
        %v2477 = vsel %vm2417, %v2433, 0.0
        %v2478 = vsel %vm2418, %v2435, 0.0
        %v2479 = vsel %vm2419, %v2437, 0.0
        %v2480 = vsel %vm2420, %v2433, 0.0
        %v2481 = vsel %vm2421, %v2435, 0.0
        %v2482 = vsel %vm2422, %v2437, 0.0
        %v2483 = vsel %vm2423, %v2433, 0.0
        %v2484 = vsel %vm2424, %v2435, 0.0
        %v2485 = vsel %vm2425, %v2437, 0.0
        %v2486 = vsel %vm2426, %v2433, 0.0
        %v2487 = vsel %vm2427, %v2435, 0.0
        %v2488 = vsel %vm2428, %v2437, 0.0
        %v2489 = vadd.f32 %v2009, %v2441
        %v2490 = vadd.f32 %v2010, %v2442
        %v2491 = vadd.f32 %v2011, %v2443
        %v2492 = vadd.f32 %v2012, %v2444
        %v2493 = vadd.f32 %v2013, %v2445
        %v2494 = vadd.f32 %v2014, %v2446
        %v2495 = vadd.f32 %v2015, %v2447
        %v2496 = vadd.f32 %v2016, %v2448
        %v2497 = vadd.f32 %v2017, %v2449
        %v2498 = vadd.f32 %v2018, %v2450
        %v2499 = vadd.f32 %v2019, %v2451
        %v2500 = vadd.f32 %v2020, %v2452
        %v2501 = vadd.f32 %v2021, %v2453
        %v2502 = vadd.f32 %v2022, %v2454
        %v2503 = vadd.f32 %v2023, %v2455
        %v2504 = vadd.f32 %v2024, %v2456
        %v2505 = vadd.f32 %v2025, %v2457
        %v2506 = vadd.f32 %v2026, %v2458
        %v2507 = vadd.f32 %v2027, %v2459
        %v2508 = vadd.f32 %v2028, %v2460
        %v2509 = vadd.f32 %v2029, %v2461
        %v2510 = vadd.f32 %v2030, %v2462
        %v2511 = vadd.f32 %v2031, %v2463
        %v2512 = vadd.f32 %v2032, %v2464
        %v2513 = vadd.f32 %v2033, %v2465
        %v2514 = vadd.f32 %v2034, %v2466
        %v2515 = vadd.f32 %v2035, %v2467
        %v2516 = vadd.f32 %v2036, %v2468
        %v2517 = vadd.f32 %v2037, %v2469
        %v2518 = vadd.f32 %v2038, %v2470
        %v2519 = vadd.f32 %v2039, %v2471
        %v2520 = vadd.f32 %v2040, %v2472
        %v2521 = vadd.f32 %v2041, %v2473
        %v2522 = vadd.f32 %v2042, %v2474
        %v2523 = vadd.f32 %v2043, %v2475
        %v2524 = vadd.f32 %v2044, %v2476
        %v2525 = vadd.f32 %v2045, %v2477
        %v2526 = vadd.f32 %v2046, %v2478
        %v2527 = vadd.f32 %v2047, %v2479
        %v2528 = vadd.f32 %v2048, %v2480
        %v2529 = vadd.f32 %v2049, %v2481
        %v2530 = vadd.f32 %v2050, %v2482
        %v2531 = vadd.f32 %v2051, %v2483
        %v2532 = vadd.f32 %v2052, %v2484
        %v2533 = vadd.f32 %v2053, %v2485
        %v2534 = vadd.f32 %v2054, %v2486
        %v2535 = vadd.f32 %v2055, %v2487
        %v2536 = vadd.f32 %v2056, %v2488
        %v2537 = vrcp.pop %v2438
        %v2538 = vmul.f32 1.0, %v2537
        %v2539 = vrcp.pop %v2439
        %v2540 = vmul.f32 1.0, %v2539
        %v2541 = vrcp.pop %v2440
        %v2542 = vmul.f32 1.0, %v2541
        %v2543 = vmul.f32 %v2489, %v2538
        %v2544 = vmul.f32 %v2490, %v2540
        %v2545 = vmul.f32 %v2491, %v2542
        %v2546 = vmul.f32 %v2492, %v2538
        %v2547 = vmul.f32 %v2493, %v2540
        %v2548 = vmul.f32 %v2494, %v2542
        %v2549 = vmul.f32 %v2495, %v2538
        %v2550 = vmul.f32 %v2496, %v2540
        %v2551 = vmul.f32 %v2497, %v2542
        %v2552 = vmul.f32 %v2498, %v2538
        %v2553 = vmul.f32 %v2499, %v2540
        %v2554 = vmul.f32 %v2500, %v2542
        %v2555 = vmul.f32 %v2501, %v2538
        %v2556 = vmul.f32 %v2502, %v2540
        %v2557 = vmul.f32 %v2503, %v2542
        %v2558 = vmul.f32 %v2504, %v2538
        %v2559 = vmul.f32 %v2505, %v2540
        %v2560 = vmul.f32 %v2506, %v2542
        %v2561 = vmul.f32 %v2507, %v2538
        %v2562 = vmul.f32 %v2508, %v2540
        %v2563 = vmul.f32 %v2509, %v2542
        %v2564 = vmul.f32 %v2510, %v2538
        %v2565 = vmul.f32 %v2511, %v2540
        %v2566 = vmul.f32 %v2512, %v2542
        %v2567 = vmul.f32 %v2513, %v2538
        %v2568 = vmul.f32 %v2514, %v2540
        %v2569 = vmul.f32 %v2515, %v2542
        %v2570 = vmul.f32 %v2516, %v2538
        %v2571 = vmul.f32 %v2517, %v2540
        %v2572 = vmul.f32 %v2518, %v2542
        %v2573 = vmul.f32 %v2519, %v2538
        %v2574 = vmul.f32 %v2520, %v2540
        %v2575 = vmul.f32 %v2521, %v2542
        %v2576 = vmul.f32 %v2522, %v2538
        %v2577 = vmul.f32 %v2523, %v2540
        %v2578 = vmul.f32 %v2524, %v2542
        %v2579 = vmul.f32 %v2525, %v2538
        %v2580 = vmul.f32 %v2526, %v2540
        %v2581 = vmul.f32 %v2527, %v2542
        %v2582 = vmul.f32 %v2528, %v2538
        %v2583 = vmul.f32 %v2529, %v2540
        %v2584 = vmul.f32 %v2530, %v2542
        %v2585 = vmul.f32 %v2531, %v2538
        %v2586 = vmul.f32 %v2532, %v2540
        %v2587 = vmul.f32 %v2533, %v2542
        %v2588 = vmul.f32 %v2534, %v2538
        %v2589 = vmul.f32 %v2535, %v2540
        %v2590 = vmul.f32 %v2536, %v2542
        %v2591 = vld [vmem:[%s433] sm:$0xff]
        %2592 = vmatprep.subr.mxu0 %v2544
        %2593 = vmatpush1.msra.mxu0 %v2543
        %2594 = vmatprep.subr.mxu0 %v2547
        %2595 = vmatpush1.msra.mxu0 %v2546
        %2596 = vmatprep.subr.mxu0 %v2550
        %2597 = vmatpush1.msra.mxu0 %v2549
        %2598 = vmatprep.subr.mxu0 %v2553
        %2599 = vmatpush1.msra.mxu0 %v2552
        %2600 = vmatprep.subr.mxu0 %v2556
        %2601 = vmatpush1.msra.mxu0 %v2555
        %2602 = vmatprep.subr.mxu0 %v2559
        %2603 = vmatpush1.msra.mxu0 %v2558
        %2604 = vmatprep.subr.mxu0 %v2562
        %2605 = vmatpush1.msra.mxu0 %v2561
        %2606 = vmatprep.subr.mxu0 %v2565
        %2607 = vmatpush1.msra.mxu0 %v2564
        %2608 = vmatprep.subr.mxu0 %v2568
        %2609 = vmatpush1.msra.mxu0 %v2567
        %2610 = vmatprep.subr.mxu0 %v2571
        %2611 = vmatpush1.msra.mxu0 %v2570
        %2612 = vmatprep.subr.mxu0 %v2574
        %2613 = vmatpush1.msra.mxu0 %v2573
        %2614 = vmatprep.subr.mxu0 %v2577
        %2615 = vmatpush1.msra.mxu0 %v2576
        %2616 = vmatprep.subr.mxu0 %v2580
        %2617 = vmatpush1.msra.mxu0 %v2579
        %2618 = vmatprep.subr.mxu0 %v2583
        %2619 = vmatpush1.msra.mxu0 %v2582
        %2620 = vmatprep.subr.mxu0 %v2586
        %2621 = vmatpush1.msra.mxu0 %v2585
        %2622 = vmatprep.subr.mxu0 %v2589
        %2623 = vmatpush1.msra.mxu0 %v2588
        %2624 = vmatprep.subr.mxu0 0.0
        %2625 = vmatpush1.msra.mxu0 0.0
        %2626 = vmatprep.subr.mxu0 0.0
        %2627 = vmatpush1.msra.mxu0 0.0
        %2628 = vmatprep.subr.mxu0 0.0
        %2629 = vmatpush1.msra.mxu0 0.0
        %2630 = vmatprep.subr.mxu0 0.0
        %2631 = vmatpush1.msra.mxu0 0.0
        %2632 = vmatprep.subr.mxu0 0.0
        %2633 = vmatpush1.msra.mxu0 0.0
        %2634 = vmatprep.subr.mxu0 0.0
        %2635 = vmatpush1.msra.mxu0 0.0
        %2636 = vmatprep.subr.mxu0 0.0
        %2637 = vmatpush1.msra.mxu0 0.0
        %2638 = vmatprep.subr.mxu0 0.0
        %2639 = vmatpush1.msra.mxu0 0.0
        %2640 = vmatprep.subr.mxu0 0.0
        %2641 = vmatpush1.msra.mxu0 0.0
        %2642 = vmatprep.subr.mxu0 0.0
        %2643 = vmatpush1.msra.mxu0 0.0
        %2644 = vmatprep.subr.mxu0 0.0
        %2645 = vmatpush1.msra.mxu0 0.0
        %2646 = vmatprep.subr.mxu0 0.0
        %2647 = vmatpush1.msra.mxu0 0.0
        %2648 = vmatprep.subr.mxu0 0.0
        %2649 = vmatpush1.msra.mxu0 0.0
        %2650 = vmatprep.subr.mxu0 0.0
        %2651 = vmatpush1.msra.mxu0 0.0
        %2652 = vmatprep.subr.mxu0 0.0
        %2653 = vmatpush1.msra.mxu0 0.0
        %2654 = vmatprep.subr.mxu0 0.0
        %2655 = vmatpush1.msra.mxu0 0.0
        %2656 = vmatprep.mubr.f32.mxu0 0.0
        %2657 = vmatmul.mubr.f32.gmra.mrb[0].mxu0 %v2591
        %v2658 = vpop.f32.mrb[0].mxu0
        %v2659 = vadd.f32 0.0, %v2658
        %v2660 = vpop.f32.mrb[0].mxu0
        %v2661 = vadd.f32 0.0, %v2660
        %2662 = vdwg.mxu0
        %2663 = vmatprep.subr.mxu0 0.0
        %2664 = vmatpush1.msra.mxu0 %v2545
        %2665 = vmatprep.subr.mxu0 0.0
        %2666 = vmatpush1.msra.mxu0 %v2548
        %2667 = vmatprep.subr.mxu0 0.0
        %2668 = vmatpush1.msra.mxu0 %v2551
        %2669 = vmatprep.subr.mxu0 0.0
        %2670 = vmatpush1.msra.mxu0 %v2554
        %2671 = vmatprep.subr.mxu0 0.0
        %2672 = vmatpush1.msra.mxu0 %v2557
        %2673 = vmatprep.subr.mxu0 0.0
        %2674 = vmatpush1.msra.mxu0 %v2560
        %2675 = vmatprep.subr.mxu0 0.0
        %2676 = vmatpush1.msra.mxu0 %v2563
        %2677 = vmatprep.subr.mxu0 0.0
        %2678 = vmatpush1.msra.mxu0 %v2566
        %2679 = vmatprep.subr.mxu0 0.0
        %2680 = vmatpush1.msra.mxu0 %v2569
        %2681 = vmatprep.subr.mxu0 0.0
        %2682 = vmatpush1.msra.mxu0 %v2572
        %2683 = vmatprep.subr.mxu0 0.0
        %2684 = vmatpush1.msra.mxu0 %v2575
        %2685 = vmatprep.subr.mxu0 0.0
        %2686 = vmatpush1.msra.mxu0 %v2578
        %2687 = vmatprep.subr.mxu0 0.0
        %2688 = vmatpush1.msra.mxu0 %v2581
        %2689 = vmatprep.subr.mxu0 0.0
        %2690 = vmatpush1.msra.mxu0 %v2584
        %2691 = vmatprep.subr.mxu0 0.0
        %2692 = vmatpush1.msra.mxu0 %v2587
        %2693 = vmatprep.subr.mxu0 0.0
        %2694 = vmatpush1.msra.mxu0 %v2590
        %2695 = vmatprep.subr.mxu0 0.0
        %2696 = vmatpush1.msra.mxu0 0.0
        %2697 = vmatprep.subr.mxu0 0.0
        %2698 = vmatpush1.msra.mxu0 0.0
        %2699 = vmatprep.subr.mxu0 0.0
        %2700 = vmatpush1.msra.mxu0 0.0
        %2701 = vmatprep.subr.mxu0 0.0
        %2702 = vmatpush1.msra.mxu0 0.0
        %2703 = vmatprep.subr.mxu0 0.0
        %2704 = vmatpush1.msra.mxu0 0.0
        %2705 = vmatprep.subr.mxu0 0.0
        %2706 = vmatpush1.msra.mxu0 0.0
        %2707 = vmatprep.subr.mxu0 0.0
        %2708 = vmatpush1.msra.mxu0 0.0
        %2709 = vmatprep.subr.mxu0 0.0
        %2710 = vmatpush1.msra.mxu0 0.0
        %2711 = vmatprep.subr.mxu0 0.0
        %2712 = vmatpush1.msra.mxu0 0.0
        %2713 = vmatprep.subr.mxu0 0.0
        %2714 = vmatpush1.msra.mxu0 0.0
        %2715 = vmatprep.subr.mxu0 0.0
        %2716 = vmatpush1.msra.mxu0 0.0
        %2717 = vmatprep.subr.mxu0 0.0
        %2718 = vmatpush1.msra.mxu0 0.0
        %2719 = vmatprep.subr.mxu0 0.0
        %2720 = vmatpush1.msra.mxu0 0.0
        %2721 = vmatprep.subr.mxu0 0.0
        %2722 = vmatpush1.msra.mxu0 0.0
        %2723 = vmatprep.subr.mxu0 0.0
        %2724 = vmatpush1.msra.mxu0 0.0
        %2725 = vmatprep.subr.mxu0 0.0
        %2726 = vmatpush1.msra.mxu0 0.0
        %2727 = vmatprep.mubr.f32.mxu0 0.0
        %2728 = vmatmul.mubr.f32.gmra.mrb[0].mxu0 %v2591
        %v2729 = vpop.f32.mrb[0].mxu0
        %v2730 = vadd.f32 0.0, %v2729
        %v2731 = vpop.f32.mrb[0].mxu0
        %2732 = vdwg.mxu0
        %v2733 = vld [vmem:[%s4] sm:$0xff]
        %v2734 = vld [vmem:[%s4 + $0x8] sm:$0xff]
        %v2735 = vld [vmem:[%s5] sm:$0xff]
        %v2736 = vld [vmem:[%s5 + $0x8] sm:$0xff]
        %v2737 = vld [vmem:[%s428] sm:$0xff]
        %v2738 = vld [vmem:[%s428 + $0x8] sm:$0xf]
        %v2741 = vcombine.high %v2737, %v2737
        %vm2742 = vcmask 31744
        %v2744 = vsel %vm2742, %v2735, 0
        %v2747 = vsel %vm2742, %v2736, 0
        %vm2749 = vcmask 1043456
        %v2750 = vsel %vm2749, %v2737, 0
        %v2752 = vsel %vm2749, %v2741, 0
        %v2754 = vsel %vm2749, %v2738, 0
        %2756 = vmatprep.subr.mxu0 %v2752
        %2757 = vmatpush1.msra.mxu0 %v2750
        %2758 = vmatprep.subr.mxu0 0.0
        %2759 = vmatpush1.msra.mxu0 0.0
        %2760 = vmatprep.subr.mxu0 0.0
        %2761 = vmatpush1.msra.mxu0 0.0
        %2762 = vmatprep.subr.mxu0 0.0
        %2763 = vmatpush1.msra.mxu0 0.0
        %2764 = vmatprep.subr.mxu0 0.0
        %2765 = vmatpush1.msra.mxu0 0.0
        %2766 = vmatprep.subr.mxu0 0.0
        %2767 = vmatpush1.msra.mxu0 0.0
        %2768 = vmatprep.subr.mxu0 0.0
        %2769 = vmatpush1.msra.mxu0 0.0
        %2770 = vmatprep.subr.mxu0 0.0
        %2771 = vmatpush1.msra.mxu0 0.0
        %2772 = vmatprep.subr.mxu0 0.0
        %2773 = vmatpush1.msra.mxu0 0.0
        %2774 = vmatprep.subr.mxu0 0.0
        %2775 = vmatpush1.msra.mxu0 0.0
        %2776 = vmatprep.subr.mxu0 0.0
        %2777 = vmatpush1.msra.mxu0 0.0
        %2778 = vmatprep.subr.mxu0 0.0
        %2779 = vmatpush1.msra.mxu0 0.0
        %2780 = vmatprep.subr.mxu0 0.0
        %2781 = vmatpush1.msra.mxu0 0.0
        %2782 = vmatprep.subr.mxu0 0.0
        %2783 = vmatpush1.msra.mxu0 0.0
        %2784 = vmatprep.subr.mxu0 0.0
        %2785 = vmatpush1.msra.mxu0 0.0
        %2786 = vmatprep.subr.mxu0 0.0
        %2787 = vmatpush1.msra.mxu0 0.0
        %2788 = vmatprep.subr.mxu0 0.0
        %2789 = vmatpush1.msra.mxu0 0.0
        %2790 = vmatprep.subr.mxu0 0.0
        %2791 = vmatpush1.msra.mxu0 0.0
        %2792 = vmatprep.subr.mxu0 0.0
        %2793 = vmatpush1.msra.mxu0 0.0
        %2794 = vmatprep.subr.mxu0 0.0
        %2795 = vmatpush1.msra.mxu0 0.0
        %2796 = vmatprep.subr.mxu0 0.0
        %2797 = vmatpush1.msra.mxu0 0.0
        %2798 = vmatprep.subr.mxu0 0.0
        %2799 = vmatpush1.msra.mxu0 0.0
        %2800 = vmatprep.subr.mxu0 0.0
        %2801 = vmatpush1.msra.mxu0 0.0
        %2802 = vmatprep.subr.mxu0 0.0
        %2803 = vmatpush1.msra.mxu0 0.0
        %2804 = vmatprep.subr.mxu0 0.0
        %2805 = vmatpush1.msra.mxu0 0.0
        %2806 = vmatprep.subr.mxu0 0.0
        %2807 = vmatpush1.msra.mxu0 0.0
        %2808 = vmatprep.subr.mxu0 0.0
        %2809 = vmatpush1.msra.mxu0 0.0
        %2810 = vmatprep.subr.mxu0 0.0
        %2811 = vmatpush1.msra.mxu0 0.0
        %2812 = vmatprep.subr.mxu0 0.0
        %2813 = vmatpush1.msra.mxu0 0.0
        %2814 = vmatprep.subr.mxu0 0.0
        %2815 = vmatpush1.msra.mxu0 0.0
        %2816 = vmatprep.subr.mxu0 0.0
        %2817 = vmatpush1.msra.mxu0 0.0
        %2818 = vmatprep.subr.mxu0 0.0
        %2819 = vmatpush1.msra.mxu0 0.0
        %2820 = vmatprep.mubr.f32.mxu0 0.0
        %2821 = vmatmul.mubr.f32.gmra.mrb[0].mxu0 %v2744
        %v2822 = vpop.f32.mrb[0].mxu0
        %v2823 = vadd.f32 0.0, %v2822
        %v2824 = vpop.f32.mrb[0].mxu0
        %v2825 = vadd.f32 0.0, %v2824
        %2826 = vmatprep.mubr.f32.mxu0 0.0
        %2827 = vmatmul.mubr.f32.gmra.mrb[0].mxu0 %v2747
        %v2828 = vpop.f32.mrb[0].mxu0
        %v2829 = vadd.f32 0.0, %v2828
        %v2830 = vpop.f32.mrb[0].mxu0
        %v2831 = vadd.f32 0.0, %v2830
        %2832 = vdwg.mxu0
        %2833 = vmatprep.subr.mxu0 0.0
        %2834 = vmatpush1.msra.mxu0 %v2754
        %2835 = vmatprep.subr.mxu0 0.0
        %2836 = vmatpush1.msra.mxu0 0.0
        %2837 = vmatprep.subr.mxu0 0.0
        %2838 = vmatpush1.msra.mxu0 0.0
        %2839 = vmatprep.subr.mxu0 0.0
        %2840 = vmatpush1.msra.mxu0 0.0
        %2841 = vmatprep.subr.mxu0 0.0
        %2842 = vmatpush1.msra.mxu0 0.0
        %2843 = vmatprep.subr.mxu0 0.0
        %2844 = vmatpush1.msra.mxu0 0.0
        %2845 = vmatprep.subr.mxu0 0.0
        %2846 = vmatpush1.msra.mxu0 0.0
        %2847 = vmatprep.subr.mxu0 0.0
        %2848 = vmatpush1.msra.mxu0 0.0
        %2849 = vmatprep.subr.mxu0 0.0
        %2850 = vmatpush1.msra.mxu0 0.0
        %2851 = vmatprep.subr.mxu0 0.0
        %2852 = vmatpush1.msra.mxu0 0.0
        %2853 = vmatprep.subr.mxu0 0.0
        %2854 = vmatpush1.msra.mxu0 0.0
        %2855 = vmatprep.subr.mxu0 0.0
        %2856 = vmatpush1.msra.mxu0 0.0
        %2857 = vmatprep.subr.mxu0 0.0
        %2858 = vmatpush1.msra.mxu0 0.0
        %2859 = vmatprep.subr.mxu0 0.0
        %2860 = vmatpush1.msra.mxu0 0.0
        %2861 = vmatprep.subr.mxu0 0.0
        %2862 = vmatpush1.msra.mxu0 0.0
        %2863 = vmatprep.subr.mxu0 0.0
        %2864 = vmatpush1.msra.mxu0 0.0
        %2865 = vmatprep.subr.mxu0 0.0
        %2866 = vmatpush1.msra.mxu0 0.0
        %2867 = vmatprep.subr.mxu0 0.0
        %2868 = vmatpush1.msra.mxu0 0.0
        %2869 = vmatprep.subr.mxu0 0.0
        %2870 = vmatpush1.msra.mxu0 0.0
        %2871 = vmatprep.subr.mxu0 0.0
        %2872 = vmatpush1.msra.mxu0 0.0
        %2873 = vmatprep.subr.mxu0 0.0
        %2874 = vmatpush1.msra.mxu0 0.0
        %2875 = vmatprep.subr.mxu0 0.0
        %2876 = vmatpush1.msra.mxu0 0.0
        %2877 = vmatprep.subr.mxu0 0.0
        %2878 = vmatpush1.msra.mxu0 0.0
        %2879 = vmatprep.subr.mxu0 0.0
        %2880 = vmatpush1.msra.mxu0 0.0
        %2881 = vmatprep.subr.mxu0 0.0
        %2882 = vmatpush1.msra.mxu0 0.0
        %2883 = vmatprep.subr.mxu0 0.0
        %2884 = vmatpush1.msra.mxu0 0.0
        %2885 = vmatprep.subr.mxu0 0.0
        %2886 = vmatpush1.msra.mxu0 0.0
        %2887 = vmatprep.subr.mxu0 0.0
        %2888 = vmatpush1.msra.mxu0 0.0
        %2889 = vmatprep.subr.mxu0 0.0
        %2890 = vmatpush1.msra.mxu0 0.0
        %2891 = vmatprep.subr.mxu0 0.0
        %2892 = vmatpush1.msra.mxu0 0.0
        %2893 = vmatprep.subr.mxu0 0.0
        %2894 = vmatpush1.msra.mxu0 0.0
        %2895 = vmatprep.subr.mxu0 0.0
        %2896 = vmatpush1.msra.mxu0 0.0
        %2897 = vmatprep.mubr.f32.mxu0 0.0
        %2898 = vmatmul.mubr.f32.gmra.mrb[0].mxu0 %v2744
        %v2899 = vpop.f32.mrb[0].mxu0
        %v2900 = vadd.f32 0.0, %v2899
        %v2901 = vpop.f32.mrb[0].mxu0
        %2902 = vmatprep.mubr.f32.mxu0 0.0
        %2903 = vmatmul.mubr.f32.gmra.mrb[0].mxu0 %v2747
        %v2904 = vpop.f32.mrb[0].mxu0
        %v2905 = vadd.f32 0.0, %v2904
        %v2906 = vpop.f32.mrb[0].mxu0
        %2907 = vdwg.mxu0
        %vm2908 = vcmask 64512
        %v2910 = vsel %vm2908, %v2733, 0
        %v2913 = vsel %vm2908, %v2734, 0
        %2915 = vmatprep.subr.mxu0 %v2661
        %2916 = vmatpush1.msra.mxu0 %v2659
        %2917 = vmatprep.subr.mxu0 0.0
        %2918 = vmatpush1.msra.mxu0 0.0
        %2919 = vmatprep.subr.mxu0 0.0
        %2920 = vmatpush1.msra.mxu0 0.0
        %2921 = vmatprep.subr.mxu0 0.0
        %2922 = vmatpush1.msra.mxu0 0.0
        %2923 = vmatprep.subr.mxu0 0.0
        %2924 = vmatpush1.msra.mxu0 0.0
        %2925 = vmatprep.subr.mxu0 0.0
        %2926 = vmatpush1.msra.mxu0 0.0
        %2927 = vmatprep.subr.mxu0 0.0
        %2928 = vmatpush1.msra.mxu0 0.0
        %2929 = vmatprep.subr.mxu0 0.0
        %2930 = vmatpush1.msra.mxu0 0.0
        %2931 = vmatprep.subr.mxu0 0.0
        %2932 = vmatpush1.msra.mxu0 0.0
        %2933 = vmatprep.subr.mxu0 0.0
        %2934 = vmatpush1.msra.mxu0 0.0
        %2935 = vmatprep.subr.mxu0 0.0
        %2936 = vmatpush1.msra.mxu0 0.0
        %2937 = vmatprep.subr.mxu0 0.0
        %2938 = vmatpush1.msra.mxu0 0.0
        %2939 = vmatprep.subr.mxu0 0.0
        %2940 = vmatpush1.msra.mxu0 0.0
        %2941 = vmatprep.subr.mxu0 0.0
        %2942 = vmatpush1.msra.mxu0 0.0
        %2943 = vmatprep.subr.mxu0 0.0
        %2944 = vmatpush1.msra.mxu0 0.0
        %2945 = vmatprep.subr.mxu0 0.0
        %2946 = vmatpush1.msra.mxu0 0.0
        %2947 = vmatprep.subr.mxu0 0.0
        %2948 = vmatpush1.msra.mxu0 0.0
        %2949 = vmatprep.subr.mxu0 0.0
        %2950 = vmatpush1.msra.mxu0 0.0
        %2951 = vmatprep.subr.mxu0 0.0
        %2952 = vmatpush1.msra.mxu0 0.0
        %2953 = vmatprep.subr.mxu0 0.0
        %2954 = vmatpush1.msra.mxu0 0.0
        %2955 = vmatprep.subr.mxu0 0.0
        %2956 = vmatpush1.msra.mxu0 0.0
        %2957 = vmatprep.subr.mxu0 0.0
        %2958 = vmatpush1.msra.mxu0 0.0
        %2959 = vmatprep.subr.mxu0 0.0
        %2960 = vmatpush1.msra.mxu0 0.0
        %2961 = vmatprep.subr.mxu0 0.0
        %2962 = vmatpush1.msra.mxu0 0.0
        %2963 = vmatprep.subr.mxu0 0.0
        %2964 = vmatpush1.msra.mxu0 0.0
        %2965 = vmatprep.subr.mxu0 0.0
        %2966 = vmatpush1.msra.mxu0 0.0
        %2967 = vmatprep.subr.mxu0 0.0
        %2968 = vmatpush1.msra.mxu0 0.0
        %2969 = vmatprep.subr.mxu0 0.0
        %2970 = vmatpush1.msra.mxu0 0.0
        %2971 = vmatprep.subr.mxu0 0.0
        %2972 = vmatpush1.msra.mxu0 0.0
        %2973 = vmatprep.subr.mxu0 0.0
        %2974 = vmatpush1.msra.mxu0 0.0
        %2975 = vmatprep.subr.mxu0 0.0
        %2976 = vmatpush1.msra.mxu0 0.0
        %2977 = vmatprep.subr.mxu0 0.0
        %2978 = vmatpush1.msra.mxu0 0.0
        %2979 = vmatprep.mubr.f32.mxu0 0.0
        %2980 = vmatmul.mubr.f32.gmra.mrb[0].mxu0 %v2910
        %v2981 = vpop.f32.mrb[0].mxu0
        %v2982 = vadd.f32 %v2823, %v2981
        %v2983 = vpop.f32.mrb[0].mxu0
        %v2984 = vadd.f32 %v2825, %v2983
        %2985 = vmatprep.mubr.f32.mxu0 0.0
        %2986 = vmatmul.mubr.f32.gmra.mrb[0].mxu0 %v2913
        %v2987 = vpop.f32.mrb[0].mxu0
        %v2988 = vadd.f32 %v2829, %v2987
        %v2989 = vpop.f32.mrb[0].mxu0
        %v2990 = vadd.f32 %v2831, %v2989
        %2991 = vdwg.mxu0
        %2992 = vmatprep.subr.mxu0 0.0
        %2993 = vmatpush1.msra.mxu0 %v2730
        %2994 = vmatprep.subr.mxu0 0.0
        %2995 = vmatpush1.msra.mxu0 0.0
        %2996 = vmatprep.subr.mxu0 0.0
        %2997 = vmatpush1.msra.mxu0 0.0
        %2998 = vmatprep.subr.mxu0 0.0
        %2999 = vmatpush1.msra.mxu0 0.0
        %3000 = vmatprep.subr.mxu0 0.0
        %3001 = vmatpush1.msra.mxu0 0.0
        %3002 = vmatprep.subr.mxu0 0.0
        %3003 = vmatpush1.msra.mxu0 0.0
        %3004 = vmatprep.subr.mxu0 0.0
        %3005 = vmatpush1.msra.mxu0 0.0
        %3006 = vmatprep.subr.mxu0 0.0
        %3007 = vmatpush1.msra.mxu0 0.0
        %3008 = vmatprep.subr.mxu0 0.0
        %3009 = vmatpush1.msra.mxu0 0.0
        %3010 = vmatprep.subr.mxu0 0.0
        %3011 = vmatpush1.msra.mxu0 0.0
        %3012 = vmatprep.subr.mxu0 0.0
        %3013 = vmatpush1.msra.mxu0 0.0
        %3014 = vmatprep.subr.mxu0 0.0
        %3015 = vmatpush1.msra.mxu0 0.0
        %3016 = vmatprep.subr.mxu0 0.0
        %3017 = vmatpush1.msra.mxu0 0.0
        %3018 = vmatprep.subr.mxu0 0.0
        %3019 = vmatpush1.msra.mxu0 0.0
        %3020 = vmatprep.subr.mxu0 0.0
        %3021 = vmatpush1.msra.mxu0 0.0
        %3022 = vmatprep.subr.mxu0 0.0
        %3023 = vmatpush1.msra.mxu0 0.0
        %3024 = vmatprep.subr.mxu0 0.0
        %3025 = vmatpush1.msra.mxu0 0.0
        %3026 = vmatprep.subr.mxu0 0.0
        %3027 = vmatpush1.msra.mxu0 0.0
        %3028 = vmatprep.subr.mxu0 0.0
        %3029 = vmatpush1.msra.mxu0 0.0
        %3030 = vmatprep.subr.mxu0 0.0
        %3031 = vmatpush1.msra.mxu0 0.0
        %3032 = vmatprep.subr.mxu0 0.0
        %3033 = vmatpush1.msra.mxu0 0.0
        %3034 = vmatprep.subr.mxu0 0.0
        %3035 = vmatpush1.msra.mxu0 0.0
        %3036 = vmatprep.subr.mxu0 0.0
        %3037 = vmatpush1.msra.mxu0 0.0
        %3038 = vmatprep.subr.mxu0 0.0
        %3039 = vmatpush1.msra.mxu0 0.0
        %3040 = vmatprep.subr.mxu0 0.0
        %3041 = vmatpush1.msra.mxu0 0.0
        %3042 = vmatprep.subr.mxu0 0.0
        %3043 = vmatpush1.msra.mxu0 0.0
        %3044 = vmatprep.subr.mxu0 0.0
        %3045 = vmatpush1.msra.mxu0 0.0
        %3046 = vmatprep.subr.mxu0 0.0
        %3047 = vmatpush1.msra.mxu0 0.0
        %3048 = vmatprep.subr.mxu0 0.0
        %3049 = vmatpush1.msra.mxu0 0.0
        %3050 = vmatprep.subr.mxu0 0.0
        %3051 = vmatpush1.msra.mxu0 0.0
        %3052 = vmatprep.subr.mxu0 0.0
        %3053 = vmatpush1.msra.mxu0 0.0
        %3054 = vmatprep.subr.mxu0 0.0
        %3055 = vmatpush1.msra.mxu0 0.0
        %3056 = vmatprep.mubr.f32.mxu0 0.0
        %3057 = vmatmul.mubr.f32.gmra.mrb[0].mxu0 %v2910
        %v3058 = vpop.f32.mrb[0].mxu0
        %v3059 = vadd.f32 %v2900, %v3058
        %v3060 = vpop.f32.mrb[0].mxu0
        %3061 = vmatprep.mubr.f32.mxu0 0.0
        %3062 = vmatmul.mubr.f32.gmra.mrb[0].mxu0 %v2913
        %v3063 = vpop.f32.mrb[0].mxu0
        %v3064 = vadd.f32 %v2905, %v3063
        %v3065 = vpop.f32.mrb[0].mxu0
        %3066 = vdwg.mxu0
        %v3067 = vld [vmem:[%s6] sm:$0xff]
        %v3068 = vld [vmem:[%s6 + $0x8] sm:$0xff]
        %3070 = vset.pattern.permute.xlu0 0
        %3071 = vperm.xlu0 %3070, %v3067
        %v3072 = vpop.permute.xlu0 %3071
        %3075 = vset.pattern.permute.xlu0 0
        %3076 = vperm.xlu0 %3075, %v3068
        %v3077 = vpop.permute.xlu0 %3076
        %v3079 = vadd.f32 %v2982, %v3072
        %v3080 = vadd.f32 %v2984, %v3072
        %v3081 = vadd.f32 %v3059, %v3072
        %v3082 = vadd.f32 %v2988, %v3077
        %v3083 = vadd.f32 %v2990, %v3077
        %v3084 = vadd.f32 %v3064, %v3077
        %v3085 = vmax.f32 %v3079, 0.0
        %v3086 = vmax.f32 %v3080, 0.0
        %v3087 = vmax.f32 %v3081, 0.0
        %v3088 = vmax.f32 %v3082, 0.0
        %v3089 = vmax.f32 %v3083, 0.0
        %v3090 = vmax.f32 %v3084, 0.0
        %v3091 = vld [vmem:[%s7] sm:$0xff]
        %v3092 = vld [vmem:[%s8] sm:$0xff]
        %3094 = vset.pattern.permute.xlu0 0
        %3095 = vperm.xlu0 %3094, %v3092
        %v3096 = vpop.permute.xlu0 %3095
        %vm3098 = vcmask 130048
        %v3100 = vsel %vm3098, %v3091, 0
        %3102 = vmatprep.subr.mxu0 %v3086
        %3103 = vmatpush1.msra.mxu0 %v3085
        %3104 = vmatprep.subr.mxu0 %v3089
        %3105 = vmatpush1.msra.mxu0 %v3088
        %3106 = vmatprep.subr.mxu0 0.0
        %3107 = vmatpush1.msra.mxu0 0.0
        %3108 = vmatprep.subr.mxu0 0.0
        %3109 = vmatpush1.msra.mxu0 0.0
        %3110 = vmatprep.subr.mxu0 0.0
        %3111 = vmatpush1.msra.mxu0 0.0
        %3112 = vmatprep.subr.mxu0 0.0
        %3113 = vmatpush1.msra.mxu0 0.0
        %3114 = vmatprep.subr.mxu0 0.0
        %3115 = vmatpush1.msra.mxu0 0.0
        %3116 = vmatprep.subr.mxu0 0.0
        %3117 = vmatpush1.msra.mxu0 0.0
        %3118 = vmatprep.subr.mxu0 0.0
        %3119 = vmatpush1.msra.mxu0 0.0
        %3120 = vmatprep.subr.mxu0 0.0
        %3121 = vmatpush1.msra.mxu0 0.0
        %3122 = vmatprep.subr.mxu0 0.0
        %3123 = vmatpush1.msra.mxu0 0.0
        %3124 = vmatprep.subr.mxu0 0.0
        %3125 = vmatpush1.msra.mxu0 0.0
        %3126 = vmatprep.subr.mxu0 0.0
        %3127 = vmatpush1.msra.mxu0 0.0
        %3128 = vmatprep.subr.mxu0 0.0
        %3129 = vmatpush1.msra.mxu0 0.0
        %3130 = vmatprep.subr.mxu0 0.0
        %3131 = vmatpush1.msra.mxu0 0.0
        %3132 = vmatprep.subr.mxu0 0.0
        %3133 = vmatpush1.msra.mxu0 0.0
        %3134 = vmatprep.subr.mxu0 0.0
        %3135 = vmatpush1.msra.mxu0 0.0
        %3136 = vmatprep.subr.mxu0 0.0
        %3137 = vmatpush1.msra.mxu0 0.0
        %3138 = vmatprep.subr.mxu0 0.0
        %3139 = vmatpush1.msra.mxu0 0.0
        %3140 = vmatprep.subr.mxu0 0.0
        %3141 = vmatpush1.msra.mxu0 0.0
        %3142 = vmatprep.subr.mxu0 0.0
        %3143 = vmatpush1.msra.mxu0 0.0
        %3144 = vmatprep.subr.mxu0 0.0
        %3145 = vmatpush1.msra.mxu0 0.0
        %3146 = vmatprep.subr.mxu0 0.0
        %3147 = vmatpush1.msra.mxu0 0.0
        %3148 = vmatprep.subr.mxu0 0.0
        %3149 = vmatpush1.msra.mxu0 0.0
        %3150 = vmatprep.subr.mxu0 0.0
        %3151 = vmatpush1.msra.mxu0 0.0
        %3152 = vmatprep.subr.mxu0 0.0
        %3153 = vmatpush1.msra.mxu0 0.0
        %3154 = vmatprep.subr.mxu0 0.0
        %3155 = vmatpush1.msra.mxu0 0.0
        %3156 = vmatprep.subr.mxu0 0.0
        %3157 = vmatpush1.msra.mxu0 0.0
        %3158 = vmatprep.subr.mxu0 0.0
        %3159 = vmatpush1.msra.mxu0 0.0
        %3160 = vmatprep.subr.mxu0 0.0
        %3161 = vmatpush1.msra.mxu0 0.0
        %3162 = vmatprep.subr.mxu0 0.0
        %3163 = vmatpush1.msra.mxu0 0.0
        %3164 = vmatprep.subr.mxu0 0.0
        %3165 = vmatpush1.msra.mxu0 0.0
        %3166 = vmatprep.mubr.f32.mxu0 0.0
        %3167 = vmatmul.mubr.f32.gmra.mrb[0].mxu0 %v3100
        %v3168 = vpop.f32.mrb[0].mxu0
        %v3169 = vadd.f32 %v3096, %v3168
        %v3170 = vpop.f32.mrb[0].mxu0
        %v3171 = vadd.f32 %v3096, %v3170
        %3172 = vdwg.mxu0
        %3173 = vmatprep.subr.mxu0 0.0
        %3174 = vmatpush1.msra.mxu0 %v3087
        %3175 = vmatprep.subr.mxu0 0.0
        %3176 = vmatpush1.msra.mxu0 %v3090
        %3177 = vmatprep.subr.mxu0 0.0
        %3178 = vmatpush1.msra.mxu0 0.0
        %3179 = vmatprep.subr.mxu0 0.0
        %3180 = vmatpush1.msra.mxu0 0.0
        %3181 = vmatprep.subr.mxu0 0.0
        %3182 = vmatpush1.msra.mxu0 0.0
        %3183 = vmatprep.subr.mxu0 0.0
        %3184 = vmatpush1.msra.mxu0 0.0
        %3185 = vmatprep.subr.mxu0 0.0
        %3186 = vmatpush1.msra.mxu0 0.0
        %3187 = vmatprep.subr.mxu0 0.0
        %3188 = vmatpush1.msra.mxu0 0.0
        %3189 = vmatprep.subr.mxu0 0.0
        %3190 = vmatpush1.msra.mxu0 0.0
        %3191 = vmatprep.subr.mxu0 0.0
        %3192 = vmatpush1.msra.mxu0 0.0
        %3193 = vmatprep.subr.mxu0 0.0
        %3194 = vmatpush1.msra.mxu0 0.0
        %3195 = vmatprep.subr.mxu0 0.0
        %3196 = vmatpush1.msra.mxu0 0.0
        %3197 = vmatprep.subr.mxu0 0.0
        %3198 = vmatpush1.msra.mxu0 0.0
        %3199 = vmatprep.subr.mxu0 0.0
        %3200 = vmatpush1.msra.mxu0 0.0
        %3201 = vmatprep.subr.mxu0 0.0
        %3202 = vmatpush1.msra.mxu0 0.0
        %3203 = vmatprep.subr.mxu0 0.0
        %3204 = vmatpush1.msra.mxu0 0.0
        %3205 = vmatprep.subr.mxu0 0.0
        %3206 = vmatpush1.msra.mxu0 0.0
        %3207 = vmatprep.subr.mxu0 0.0
        %3208 = vmatpush1.msra.mxu0 0.0
        %3209 = vmatprep.subr.mxu0 0.0
        %3210 = vmatpush1.msra.mxu0 0.0
        %3211 = vmatprep.subr.mxu0 0.0
        %3212 = vmatpush1.msra.mxu0 0.0
        %3213 = vmatprep.subr.mxu0 0.0
        %3214 = vmatpush1.msra.mxu0 0.0
        %3215 = vmatprep.subr.mxu0 0.0
        %3216 = vmatpush1.msra.mxu0 0.0
        %3217 = vmatprep.subr.mxu0 0.0
        %3218 = vmatpush1.msra.mxu0 0.0
        %3219 = vmatprep.subr.mxu0 0.0
        %3220 = vmatpush1.msra.mxu0 0.0
        %3221 = vmatprep.subr.mxu0 0.0
        %3222 = vmatpush1.msra.mxu0 0.0
        %3223 = vmatprep.subr.mxu0 0.0
        %3224 = vmatpush1.msra.mxu0 0.0
        %3225 = vmatprep.subr.mxu0 0.0
        %3226 = vmatpush1.msra.mxu0 0.0
        %3227 = vmatprep.subr.mxu0 0.0
        %3228 = vmatpush1.msra.mxu0 0.0
        %3229 = vmatprep.subr.mxu0 0.0
        %3230 = vmatpush1.msra.mxu0 0.0
        %3231 = vmatprep.subr.mxu0 0.0
        %3232 = vmatpush1.msra.mxu0 0.0
        %3233 = vmatprep.subr.mxu0 0.0
        %3234 = vmatpush1.msra.mxu0 0.0
        %3235 = vmatprep.subr.mxu0 0.0
        %3236 = vmatpush1.msra.mxu0 0.0
        %3237 = vmatprep.mubr.f32.mxu0 0.0
        %3238 = vmatmul.mubr.f32.gmra.mrb[0].mxu0 %v3100
        %v3239 = vpop.f32.mrb[0].mxu0
        %v3240 = vadd.f32 %v3096, %v3239
        %v3241 = vpop.f32.mrb[0].mxu0
        %3242 = vdwg.mxu0
        %v3243 = vmax.f32 %v3169, 0.0
        %v3244 = vmax.f32 %v3171, 0.0
        %v3245 = vmax.f32 %v3240, 0.0
        %3246 = vst [vmem:[%s404] sm:$0xff] %v3243
        %3247 = vst [vmem:[%s404 + $0x8] sm:$0xff] %v3244
        %3248 = vst [vmem:[%s404 + $0x10] sm:$0xff] %v3245
        %s3249 = sand.u32 %s258, 1
        %s3250 = scalar_lea.sflag [#allocation3], %s3249
        %s3251 = sand.u32 %s258, 1
        %s3252 = smul.addr %s3251, 24
        %s3253 = scalar_lea.vmem [#allocation2], %s3252
        // Predicated region
        $region57: #{tpu_custom_call.1} parent=55 // pred_check
          %p3254 = pneg %p268
        $region58: #{tpu_custom_call.1} parent=55 // pred_check_branch
          %3256 = sbr.rel (%p3254) target = $region60
        $region59: #{tpu_custom_call.1} parent=55 // pred_region
          %s3257 = smul.u32 3, %s28
          %s3259 = ssub.s32 384, 384
          %3260 = vsyncadd %s3250, %s3259
          %s3261 = smul.addr %s27, 3
          %s3262 = sadd.s32 %s3257, %s3261
          %s3263 = smul.addr %s3262, 128
          %s3264 = scalar_lea.hbm %s9, %s3263
          %s3266 = sshll.u32 %s3253, 4
          %s3267 = int_to_ptr.vmem [resolvable:$true] %s3266
          %3269 = dma.vmem_to_hbm [thread:$0]  %s3267, 384, %s3264, %s3250
        $region60: #{tpu_custom_call.1} parent=55 // pred_fallthru
          _
      $region56: #{tpu_custom_call.1} parent=5 // pred_fallthru
        _
      %p3270 = scmp.le.s32.totalorder 2, %s18
      // Predicated region
      $region61: #{tpu_custom_call.1} parent=5 // pred_check
        %p3271 = pneg %p3270
      $region62: #{tpu_custom_call.1} parent=5 // pred_check_branch
        %3273 = sbr.rel (%p3271) target = $region64
      $region63: #{tpu_custom_call.1} parent=5 // pred_region
        %s3274 = ssub.s32 %s18, 2
        // Predicated region
        $region65: #{tpu_custom_call.1} parent=63 // pred_check
          %p3275 = pneg %p274
        $region66: #{tpu_custom_call.1} parent=63 // pred_check_branch
          %3277 = sbr.rel (%p3275) target = $region68
        $region67: #{tpu_custom_call.1} parent=63 // pred_region
          %s3278 = sand.u32 %s259, 1
          %s3279 = scalar_lea.sflag [#allocation3], %s3278
          %s3280 = sand.u32 %s259, 1
          %s3281 = smul.addr %s3280, 24
          %s3282 = scalar_lea.vmem [#allocation2], %s3281
          %3283 = dma.done %s3279, 384
        $region68: #{tpu_custom_call.1} parent=63 // pred_fallthru
          _
      $region64: #{tpu_custom_call.1} parent=5 // pred_fallthru
        _
    $region6: #{tpu_custom_call.1} parent=1 // loop_footer
      %s22 = sadd.s32 1, %s18
    $region7: #{tpu_custom_call.1} parent=1 // loop_footer_branch
      %17 = sbr.rel target = $region3
    $region8: #{tpu_custom_call.1} parent=1 // loop_exit
      _
    %3284 = vsyncpa [#allocation3], 1
    %s3285 = scalar_lea.sflag [#allocation3], 1
    %3286 = vsyncpa %s3285, 1

</llo_original>
